<compile_context>
chip_gen: v7x
topology: tpu7x:2x2x1
jax: 0.10.0
libtpu: 0.0.40
codegen_flags: <defaults>
</compile_context>

<pallas_src>
import math

import jax
import jax.numpy as jnp
from jax.experimental import pallas as pl
from jax.experimental.pallas import tpu as pltpu

# TPU-friendly stand-ins for d_model=1536 / nhead=4 / d_hid=768.
D_MODEL = 512
NHEAD = 4
HEAD_DIM = D_MODEL // NHEAD          # 128 -> lane-aligned head blocks
D_HID = 256
MLP_HID = 128                        # padded to a full 128-lane group
LN_EPS = 1e-5
MASK_NEG = -1e9


def _layer_norm(x, gamma, beta):
    mu = jnp.mean(x, axis=-1, keepdims=True)
    var = jnp.mean((x - mu) ** 2, axis=-1, keepdims=True)
    return (x - mu) * jax.lax.rsqrt(var + LN_EPS) * gamma + beta


# ---------------------------------------------------------------------------
# Fused kernel: encoder layer + MLP regression head, Bt sequences per step.
# ---------------------------------------------------------------------------
def fused_encoder_mlp_kernel(
    x_ref, mb_ref,
    wqkv_ref, bqkv_ref, wo_ref, bo_ref,
    ln1_g_ref, ln1_b_ref,
    w1_ref, b1_ref, w2_ref, b2_ref,
    ln2_g_ref, ln2_b_ref,
    wm1_ref, bm1_ref, wm2_ref, bm2_ref,
    out_ref,
):
    Bt, S, D = x_ref.shape
    M = Bt * S

    x_bf = x_ref[...].reshape(M, D)              # bf16 streamed block (packed rows)
    x_f32 = x_bf.astype(jnp.float32)             # residual / LayerNorm path in f32

    # Fused QKV projection over packed rows (bf16 in, f32 accumulate).
    qkv = jnp.dot(x_bf, wqkv_ref[...], preferred_element_type=jnp.float32)
    qkv = (qkv + bqkv_ref[...]).astype(jnp.bfloat16)
    qkv3 = qkv.reshape(Bt, S, 3 * D)             # leading-dim split only (free)

    mb = mb_ref[...]                             # (Bt, 1, S) key-padding bias, f32
    scale = 1.0 / math.sqrt(HEAD_DIM)

    # Multi-head attention, batched over the Bt packed sequences.  Heads (4)
    # are unrolled with 128-lane-aligned slices; per-head contexts are
    # concatenated on 128-lane boundaries so the output projection is a
    # single K = D matmul.
    ctx_heads = []
    for h in range(NHEAD):
        c0 = h * HEAD_DIM
        qh = qkv3[:, :, c0:c0 + HEAD_DIM]
        kh = qkv3[:, :, D + c0:D + c0 + HEAD_DIM]
        vh = qkv3[:, :, 2 * D + c0:2 * D + c0 + HEAD_DIM]
        s = jnp.einsum('bqd,bkd->bqk', qh, kh,
                       preferred_element_type=jnp.float32) * scale + mb
        s = s - jnp.max(s, axis=-1, keepdims=True)
        p = jnp.exp(s)
        p = p * pl.reciprocal(jnp.sum(p, axis=-1, keepdims=True), approx=True)
        ctx_heads.append(jnp.einsum('bqk,bkd->bqd', p.astype(jnp.bfloat16), vh,
                                    preferred_element_type=jnp.float32))
    ctx = jnp.concatenate(ctx_heads, axis=-1).reshape(M, D)

    attn = jnp.dot(ctx.astype(jnp.bfloat16), wo_ref[...],
                   preferred_element_type=jnp.float32) + bo_ref[...]

    # Residual + post-norm LayerNorm 1 (PyTorch default, f32 math).
    x1 = _layer_norm(x_f32 + attn, ln1_g_ref[...], ln1_b_ref[...])

    # Feed-forward over packed rows.
    ff = jnp.maximum(
        jnp.dot(x1.astype(jnp.bfloat16), w1_ref[...],
                preferred_element_type=jnp.float32) + b1_ref[...], 0.0)
    ff = jnp.dot(ff.astype(jnp.bfloat16), w2_ref[...],
                 preferred_element_type=jnp.float32) + b2_ref[...]

    x2 = _layer_norm(x1 + ff, ln2_g_ref[...], ln2_b_ref[...])

    # Fused MLP regression head: Linear -> ReLU -> Linear(hid, 1).
    h1 = jnp.maximum(
        jnp.dot(x2.astype(jnp.bfloat16), wm1_ref[...],
                preferred_element_type=jnp.float32) + bm1_ref[...], 0.0)
    # hid -> 1 projection emitted directly as a lane-dense (1, M) row
    # (contract last dims, no transpose, no N=1 masked store path).
    y = jax.lax.dot_general(
        wm2_ref[...], h1, dimension_numbers=(((1,), (1,)), ((), ())),
        preferred_element_type=jnp.float32) + bm2_ref[...]
    out_ref[...] = y.reshape(1, 1, M).astype(out_ref.dtype)


def fused_forward(x_bf16, mask_bias, enc_params, mlp_params, bt):
    """x_bf16: (Bpad, S, D) bf16, mask_bias: (Bpad, 1, S) f32 -> (Bpad*S, 1) f32."""
    bpad, s, d = x_bf16.shape
    n_tiles = bpad // bt
    m = bt * s

    def full(shape):
        # TODO(synk): at real dims (1536/768) add pipeline_mode=pl.Buffered(1)
        # here (constant index_map -> no double-buffering of ~26 MB of weights)
        # and re-derive vmem_limit_bytes per TPU generation.
        return pl.BlockSpec(shape, lambda b: (0,) * len(shape))

    weights = (*enc_params, *mlp_params)
    in_specs = [
        pl.BlockSpec((bt, s, d), lambda b: (b, 0, 0)),   # packed embeddings (bf16)
        pl.BlockSpec((bt, 1, s), lambda b: (b, 0, 0)),   # key-padding bias
    ] + [full(w.shape) for w in weights]

    out = pl.pallas_call(
        fused_encoder_mlp_kernel,
        out_shape=jax.ShapeDtypeStruct((n_tiles, 1, m), jnp.float32),
        grid=(n_tiles,),
        in_specs=in_specs,
        out_specs=pl.BlockSpec((1, 1, m), lambda b: (b, 0, 0)),   # lane-dense rows
        compiler_params=pltpu.CompilerParams(
            dimension_semantics=("parallel",),
            vmem_limit_bytes=32 * 1024 * 1024),
    )(x_bf16, mask_bias, *weights)
    return out.reshape(bpad * s, 1)


# ---------------------------------------------------------------------------
# Full forward pass (glue in plain JAX)
# ---------------------------------------------------------------------------
def hierarchical_mater_forward(embeddings, attention_masks, enc_params, mlp_params):
    B, S, D = embeddings.shape
    # Pack bt sequences per grid step; keep n_tiles >= 2 so the "parallel"
    # grid axis can shard across v7x's two TensorCores. On v5e/v6e (128 MiB
    # VMEM, single TC) bt can be raised further for larger batches.
    bt = max(1, min(16, -(-B // 2)))
    n_tiles = -(-B // bt)
    bpad = n_tiles * bt
    masks = attention_masks
    if bpad != B:
        embeddings = jnp.pad(embeddings, ((0, bpad - B), (0, 0), (0, 0)))
        masks = jnp.pad(attention_masks, ((0, bpad - B), (0, 0)))

    mask_bias = jnp.where(masks == 0, MASK_NEG, 0.0).astype(jnp.float32)
    mask_bias = mask_bias.reshape(bpad, 1, S)

    scores = fused_forward(embeddings.astype(jnp.bfloat16), mask_bias,
                           enc_params, mlp_params, bt)        # (bpad*S, 1)
    scores = scores[: B * S]

    # Boolean row selection has a data-dependent output shape; it stays in
    # eager-mode glue (matches `encoding[attention_masks == 1]` in the module).
    mask_flat = attention_masks.reshape(-1)
    return scores[mask_flat == 1]


if __name__ == "__main__":
    key = jax.random.PRNGKey(0)
    B, S = 2, 8
    ks = jax.random.split(key, 8)

    def w_bf16(k, shape, scale=0.05):
        return (scale * jax.random.normal(k, shape, jnp.float32)).astype(jnp.bfloat16)

    def zeros(shape):
        return jnp.zeros(shape, jnp.float32)

    embeddings = jax.random.normal(ks[0], (B, S, D_MODEL), jnp.float32)
    attention_masks = jnp.array(
        [[1, 1, 1, 1, 1, 1, 0, 0],
         [1, 1, 1, 1, 1, 1, 1, 1]], dtype=jnp.int32)

    enc_params = (
        w_bf16(ks[1], (D_MODEL, 3 * D_MODEL)),     # W_qkv (bf16)
        zeros((1, 3 * D_MODEL)),                   # b_qkv
        w_bf16(ks[2], (D_MODEL, D_MODEL)),         # W_o   (bf16)
        zeros((1, D_MODEL)),                       # b_o
        jnp.ones((1, D_MODEL), jnp.float32),       # ln1 gamma
        zeros((1, D_MODEL)),                       # ln1 beta
        w_bf16(ks[3], (D_MODEL, D_HID)),           # W_ff1 (bf16)
        zeros((1, D_HID)),                         # b_ff1
        w_bf16(ks[4], (D_HID, D_MODEL)),           # W_ff2 (bf16)
        zeros((1, D_MODEL)),                       # b_ff2
        jnp.ones((1, D_MODEL), jnp.float32),       # ln2 gamma
        zeros((1, D_MODEL)),                       # ln2 beta
    )
    mlp_params = (
        w_bf16(ks[5], (D_MODEL, MLP_HID)),                           # W_mlp1 (bf16)
        zeros((1, MLP_HID)),                                         # b_mlp1
        0.05 * jax.random.normal(ks[6], (1, MLP_HID), jnp.float32),  # W_mlp2 as (1, hid) row (f32)
        zeros((1, 1)),                                               # b_mlp2
    )

    out = hierarchical_mater_forward(embeddings, attention_masks, enc_params, mlp_params)
    jax.block_until_ready(out)
    assert out.ndim == 2 and out.shape[1] == 1
    assert out.shape[0] == int(attention_masks.sum())
    assert bool(jnp.all(jnp.isfinite(out)))
    print("KERNEL_OK")
</pallas_src>

<mosaic_0001>
module attributes {stable_mosaic.version = 11 : i64} {
  func.func @fused_encoder_mlp_kernel(%arg0: i32, %arg1: memref<1x8x512xbf16, #tpu.memory_space<vmem>>, %arg2: memref<1x1x8xf32, #tpu.memory_space<vmem>>, %arg3: memref<512x1536xbf16, #tpu.memory_space<vmem>>, %arg4: memref<1x1536xf32, #tpu.memory_space<vmem>>, %arg5: memref<512x512xbf16, #tpu.memory_space<vmem>>, %arg6: memref<1x512xf32, #tpu.memory_space<vmem>>, %arg7: memref<1x512xf32, #tpu.memory_space<vmem>>, %arg8: memref<1x512xf32, #tpu.memory_space<vmem>>, %arg9: memref<512x256xbf16, #tpu.memory_space<vmem>>, %arg10: memref<1x256xf32, #tpu.memory_space<vmem>>, %arg11: memref<256x512xbf16, #tpu.memory_space<vmem>>, %arg12: memref<1x512xf32, #tpu.memory_space<vmem>>, %arg13: memref<1x512xf32, #tpu.memory_space<vmem>>, %arg14: memref<1x512xf32, #tpu.memory_space<vmem>>, %arg15: memref<512x128xbf16, #tpu.memory_space<vmem>>, %arg16: memref<1x128xf32, #tpu.memory_space<vmem>>, %arg17: memref<1x128xf32, #tpu.memory_space<vmem>>, %arg18: memref<1x1xf32, #tpu.memory_space<vmem>>, %arg19: memref<1x1x8xf32, #tpu.memory_space<vmem>>) attributes {dimension_semantics = [#tpu.dimension_semantics<parallel>], iteration_bounds = array<i64: 2>, scalar_prefetch = 0 : i64, scratch_operands = 0 : i64, tpu.core_type = #tpu.core_type<tc>, window_params = [{transform_indices = @transform_0, window_bounds = array<i64: 1, 8, 512>}, {transform_indices = @transform_1, window_bounds = array<i64: 1, 1, 8>}, {pipeline_mode = #tpu.pipeline_mode<synchronous>, transform_indices = @transform_2, window_bounds = array<i64: 512, 1536>}, {pipeline_mode = #tpu.pipeline_mode<synchronous>, transform_indices = @transform_3, window_bounds = array<i64: 1, 1536>}, {pipeline_mode = #tpu.pipeline_mode<synchronous>, transform_indices = @transform_4, window_bounds = array<i64: 512, 512>}, {pipeline_mode = #tpu.pipeline_mode<synchronous>, transform_indices = @transform_5, window_bounds = array<i64: 1, 512>}, {pipeline_mode = #tpu.pipeline_mode<synchronous>, transform_indices = @transform_6, window_bounds = array<i64: 1, 512>}, {pipeline_mode = #tpu.pipeline_mode<synchronous>, transform_indices = @transform_7, window_bounds = array<i64: 1, 512>}, {pipeline_mode = #tpu.pipeline_mode<synchronous>, transform_indices = @transform_8, window_bounds = array<i64: 512, 256>}, {pipeline_mode = #tpu.pipeline_mode<synchronous>, transform_indices = @transform_9, window_bounds = array<i64: 1, 256>}, {pipeline_mode = #tpu.pipeline_mode<synchronous>, transform_indices = @transform_10, window_bounds = array<i64: 256, 512>}, {pipeline_mode = #tpu.pipeline_mode<synchronous>, transform_indices = @transform_11, window_bounds = array<i64: 1, 512>}, {pipeline_mode = #tpu.pipeline_mode<synchronous>, transform_indices = @transform_12, window_bounds = array<i64: 1, 512>}, {pipeline_mode = #tpu.pipeline_mode<synchronous>, transform_indices = @transform_13, window_bounds = array<i64: 1, 512>}, {pipeline_mode = #tpu.pipeline_mode<synchronous>, transform_indices = @transform_14, window_bounds = array<i64: 512, 128>}, {pipeline_mode = #tpu.pipeline_mode<synchronous>, transform_indices = @transform_15, window_bounds = array<i64: 1, 128>}, {pipeline_mode = #tpu.pipeline_mode<synchronous>, transform_indices = @transform_16, window_bounds = array<i64: 1, 128>}, {pipeline_mode = #tpu.pipeline_mode<synchronous>, transform_indices = @transform_17, window_bounds = array<i64: 1, 1>}, {transform_indices = @transform_18, window_bounds = array<i64: 1, 1, 8>}]} {
    %c0 = arith.constant 0 : index
    %c0_0 = arith.constant 0 : index
    %c0_1 = arith.constant 0 : index
    %0 = vector.load %arg1[%c0, %c0_0, %c0_1] : memref<1x8x512xbf16, #tpu.memory_space<vmem>>, vector<1x8x512xbf16>
    %1 = vector.shape_cast %0 : vector<1x8x512xbf16> to vector<8x512xbf16>
    %2 = arith.extf %1 : vector<8x512xbf16> to vector<8x512xf32>
    %c0_2 = arith.constant 0 : index
    %c0_3 = arith.constant 0 : index
    %3 = vector.load %arg3[%c0_2, %c0_3] : memref<512x1536xbf16, #tpu.memory_space<vmem>>, vector<512x1536xbf16>
    %cst = arith.constant dense<0.000000e+00> : vector<8x1536xf32>
    %4 = tpu.matmul %1, %3, %cst {dimension_numbers = #tpu.dot_dimension_numbers<[1], [0], [0], [1], [0, 0, 1, 1], [], []>} : vector<8x512xbf16>, vector<512x1536xbf16>, vector<8x1536xf32> -> vector<8x1536xf32>
    %c0_4 = arith.constant 0 : index
    %c0_5 = arith.constant 0 : index
    %5 = vector.load %arg4[%c0_4, %c0_5] : memref<1x1536xf32, #tpu.memory_space<vmem>>, vector<1x1536xf32>
    %6 = vector.broadcast %5 : vector<1x1536xf32> to vector<8x1536xf32>
    %7 = arith.addf %4, %6 : vector<8x1536xf32>
    %8 = arith.truncf %7 : vector<8x1536xf32> to vector<8x1536xbf16>
    %9 = vector.shape_cast %8 : vector<8x1536xbf16> to vector<1x8x1536xbf16>
    %c0_6 = arith.constant 0 : index
    %c0_7 = arith.constant 0 : index
    %c0_8 = arith.constant 0 : index
    %10 = vector.load %arg2[%c0_6, %c0_7, %c0_8] : memref<1x1x8xf32, #tpu.memory_space<vmem>>, vector<1x1x8xf32>
    %11 = vector.extract_strided_slice %9 {offsets = [0, 0, 0], sizes = [1, 8, 128], strides = [1, 1, 1]} : vector<1x8x1536xbf16> to vector<1x8x128xbf16>
    %12 = vector.extract_strided_slice %9 {offsets = [0, 0, 512], sizes = [1, 8, 128], strides = [1, 1, 1]} : vector<1x8x1536xbf16> to vector<1x8x128xbf16>
    %13 = vector.extract_strided_slice %9 {offsets = [0, 0, 1024], sizes = [1, 8, 128], strides = [1, 1, 1]} : vector<1x8x1536xbf16> to vector<1x8x128xbf16>
    "tpu.trace_start"() <{level = 10 : i32, message = "bqd,bkd->bqk"}> : () -> ()
    %cst_9 = arith.constant dense<0.000000e+00> : vector<1x8x8xf32>
    %14 = tpu.matmul %11, %12, %cst_9 {dimension_numbers = #tpu.dot_dimension_numbers<[2], [2], [1], [1], [0, 0, 0, 1, 1, 1], [0], [0]>} : vector<1x8x128xbf16>, vector<1x8x128xbf16>, vector<1x8x8xf32> -> vector<1x8x8xf32>
    "tpu.trace_stop"() : () -> ()
    %cst_10 = arith.constant 0.0883883461 : f32
    %15 = vector.broadcast %cst_10 : f32 to vector<1x8x8xf32>
    %16 = arith.mulf %14, %15 : vector<1x8x8xf32>
    %17 = vector.broadcast %10 : vector<1x1x8xf32> to vector<1x8x8xf32>
    %18 = arith.addf %16, %17 : vector<1x8x8xf32>
    %cst_11 = arith.constant dense<0xFF800000> : vector<1x8xf32>
    %19 = vector.multi_reduction <maximumf>, %18, %cst_11 [2] : vector<1x8x8xf32> to vector<1x8xf32>
    %20 = vector.shape_cast %19 : vector<1x8xf32> to vector<1x8x1xf32>
    %21 = vector.broadcast %20 : vector<1x8x1xf32> to vector<1x8x8xf32>
    %22 = arith.subf %18, %21 : vector<1x8x8xf32>
    %23 = math.exp %22 : vector<1x8x8xf32>
    %cst_12 = arith.constant dense<0.000000e+00> : vector<1x8xf32>
    %24 = vector.multi_reduction <add>, %23, %cst_12 [2] : vector<1x8x8xf32> to vector<1x8xf32>
    %25 = vector.shape_cast %24 : vector<1x8xf32> to vector<1x8x1xf32>
    %26 = tpu.reciprocal %25 {approx = true} : vector<1x8x1xf32> -> vector<1x8x1xf32>
    %27 = vector.broadcast %26 : vector<1x8x1xf32> to vector<1x8x8xf32>
    %28 = arith.mulf %23, %27 : vector<1x8x8xf32>
    %29 = arith.truncf %28 : vector<1x8x8xf32> to vector<1x8x8xbf16>
    "tpu.trace_start"() <{level = 10 : i32, message = "bqk,bkd->bqd"}> : () -> ()
    %cst_13 = arith.constant dense<0.000000e+00> : vector<1x8x128xf32>
    %30 = tpu.matmul %29, %13, %cst_13 {dimension_numbers = #tpu.dot_dimension_numbers<[2], [1], [1], [2], [0, 0, 0, 1, 1, 2], [0], [0]>} : vector<1x8x8xbf16>, vector<1x8x128xbf16>, vector<1x8x128xf32> -> vector<1x8x128xf32>
    "tpu.trace_stop"() : () -> ()
    %31 = vector.extract_strided_slice %9 {offsets = [0, 0, 128], sizes = [1, 8, 128], strides = [1, 1, 1]} : vector<1x8x1536xbf16> to vector<1x8x128xbf16>
    %32 = vector.extract_strided_slice %9 {offsets = [0, 0, 640], sizes = [1, 8, 128], strides = [1, 1, 1]} : vector<1x8x1536xbf16> to vector<1x8x128xbf16>
    %33 = vector.extract_strided_slice %9 {offsets = [0, 0, 1152], sizes = [1, 8, 128], strides = [1, 1, 1]} : vector<1x8x1536xbf16> to vector<1x8x128xbf16>
    "tpu.trace_start"() <{level = 10 : i32, message = "bqd,bkd->bqk"}> : () -> ()
    %cst_14 = arith.constant dense<0.000000e+00> : vector<1x8x8xf32>
    %34 = tpu.matmul %31, %32, %cst_14 {dimension_numbers = #tpu.dot_dimension_numbers<[2], [2], [1], [1], [0, 0, 0, 1, 1, 1], [0], [0]>} : vector<1x8x128xbf16>, vector<1x8x128xbf16>, vector<1x8x8xf32> -> vector<1x8x8xf32>
    "tpu.trace_stop"() : () -> ()
    %cst_15 = arith.constant 0.0883883461 : f32
    %35 = vector.broadcast %cst_15 : f32 to vector<1x8x8xf32>
    %36 = arith.mulf %34, %35 : vector<1x8x8xf32>
    %37 = vector.broadcast %10 : vector<1x1x8xf32> to vector<1x8x8xf32>
    %38 = arith.addf %36, %37 : vector<1x8x8xf32>
    %cst_16 = arith.constant dense<0xFF800000> : vector<1x8xf32>
    %39 = vector.multi_reduction <maximumf>, %38, %cst_16 [2] : vector<1x8x8xf32> to vector<1x8xf32>
    %40 = vector.shape_cast %39 : vector<1x8xf32> to vector<1x8x1xf32>
    %41 = vector.broadcast %40 : vector<1x8x1xf32> to vector<1x8x8xf32>
    %42 = arith.subf %38, %41 : vector<1x8x8xf32>
    %43 = math.exp %42 : vector<1x8x8xf32>
    %cst_17 = arith.constant dense<0.000000e+00> : vector<1x8xf32>
    %44 = vector.multi_reduction <add>, %43, %cst_17 [2] : vector<1x8x8xf32> to vector<1x8xf32>
    %45 = vector.shape_cast %44 : vector<1x8xf32> to vector<1x8x1xf32>
    %46 = tpu.reciprocal %45 {approx = true} : vector<1x8x1xf32> -> vector<1x8x1xf32>
    %47 = vector.broadcast %46 : vector<1x8x1xf32> to vector<1x8x8xf32>
    %48 = arith.mulf %43, %47 : vector<1x8x8xf32>
    %49 = arith.truncf %48 : vector<1x8x8xf32> to vector<1x8x8xbf16>
    "tpu.trace_start"() <{level = 10 : i32, message = "bqk,bkd->bqd"}> : () -> ()
    %cst_18 = arith.constant dense<0.000000e+00> : vector<1x8x128xf32>
    %50 = tpu.matmul %49, %33, %cst_18 {dimension_numbers = #tpu.dot_dimension_numbers<[2], [1], [1], [2], [0, 0, 0, 1, 1, 2], [0], [0]>} : vector<1x8x8xbf16>, vector<1x8x128xbf16>, vector<1x8x128xf32> -> vector<1x8x128xf32>
    "tpu.trace_stop"() : () -> ()
    %51 = vector.extract_strided_slice %9 {offsets = [0, 0, 256], sizes = [1, 8, 128], strides = [1, 1, 1]} : vector<1x8x1536xbf16> to vector<1x8x128xbf16>
    %52 = vector.extract_strided_slice %9 {offsets = [0, 0, 768], sizes = [1, 8, 128], strides = [1, 1, 1]} : vector<1x8x1536xbf16> to vector<1x8x128xbf16>
    %53 = vector.extract_strided_slice %9 {offsets = [0, 0, 1280], sizes = [1, 8, 128], strides = [1, 1, 1]} : vector<1x8x1536xbf16> to vector<1x8x128xbf16>
    "tpu.trace_start"() <{level = 10 : i32, message = "bqd,bkd->bqk"}> : () -> ()
    %cst_19 = arith.constant dense<0.000000e+00> : vector<1x8x8xf32>
    %54 = tpu.matmul %51, %52, %cst_19 {dimension_numbers = #tpu.dot_dimension_numbers<[2], [2], [1], [1], [0, 0, 0, 1, 1, 1], [0], [0]>} : vector<1x8x128xbf16>, vector<1x8x128xbf16>, vector<1x8x8xf32> -> vector<1x8x8xf32>
    "tpu.trace_stop"() : () -> ()
    %cst_20 = arith.constant 0.0883883461 : f32
    %55 = vector.broadcast %cst_20 : f32 to vector<1x8x8xf32>
    %56 = arith.mulf %54, %55 : vector<1x8x8xf32>
    %57 = vector.broadcast %10 : vector<1x1x8xf32> to vector<1x8x8xf32>
    %58 = arith.addf %56, %57 : vector<1x8x8xf32>
    %cst_21 = arith.constant dense<0xFF800000> : vector<1x8xf32>
    %59 = vector.multi_reduction <maximumf>, %58, %cst_21 [2] : vector<1x8x8xf32> to vector<1x8xf32>
    %60 = vector.shape_cast %59 : vector<1x8xf32> to vector<1x8x1xf32>
    %61 = vector.broadcast %60 : vector<1x8x1xf32> to vector<1x8x8xf32>
    %62 = arith.subf %58, %61 : vector<1x8x8xf32>
    %63 = math.exp %62 : vector<1x8x8xf32>
    %cst_22 = arith.constant dense<0.000000e+00> : vector<1x8xf32>
    %64 = vector.multi_reduction <add>, %63, %cst_22 [2] : vector<1x8x8xf32> to vector<1x8xf32>
    %65 = vector.shape_cast %64 : vector<1x8xf32> to vector<1x8x1xf32>
    %66 = tpu.reciprocal %65 {approx = true} : vector<1x8x1xf32> -> vector<1x8x1xf32>
    %67 = vector.broadcast %66 : vector<1x8x1xf32> to vector<1x8x8xf32>
    %68 = arith.mulf %63, %67 : vector<1x8x8xf32>
    %69 = arith.truncf %68 : vector<1x8x8xf32> to vector<1x8x8xbf16>
    "tpu.trace_start"() <{level = 10 : i32, message = "bqk,bkd->bqd"}> : () -> ()
    %cst_23 = arith.constant dense<0.000000e+00> : vector<1x8x128xf32>
    %70 = tpu.matmul %69, %53, %cst_23 {dimension_numbers = #tpu.dot_dimension_numbers<[2], [1], [1], [2], [0, 0, 0, 1, 1, 2], [0], [0]>} : vector<1x8x8xbf16>, vector<1x8x128xbf16>, vector<1x8x128xf32> -> vector<1x8x128xf32>
    "tpu.trace_stop"() : () -> ()
    %71 = vector.extract_strided_slice %9 {offsets = [0, 0, 384], sizes = [1, 8, 128], strides = [1, 1, 1]} : vector<1x8x1536xbf16> to vector<1x8x128xbf16>
    %72 = vector.extract_strided_slice %9 {offsets = [0, 0, 896], sizes = [1, 8, 128], strides = [1, 1, 1]} : vector<1x8x1536xbf16> to vector<1x8x128xbf16>
    %73 = vector.extract_strided_slice %9 {offsets = [0, 0, 1408], sizes = [1, 8, 128], strides = [1, 1, 1]} : vector<1x8x1536xbf16> to vector<1x8x128xbf16>
    "tpu.trace_start"() <{level = 10 : i32, message = "bqd,bkd->bqk"}> : () -> ()
    %cst_24 = arith.constant dense<0.000000e+00> : vector<1x8x8xf32>
    %74 = tpu.matmul %71, %72, %cst_24 {dimension_numbers = #tpu.dot_dimension_numbers<[2], [2], [1], [1], [0, 0, 0, 1, 1, 1], [0], [0]>} : vector<1x8x128xbf16>, vector<1x8x128xbf16>, vector<1x8x8xf32> -> vector<1x8x8xf32>
    "tpu.trace_stop"() : () -> ()
    %cst_25 = arith.constant 0.0883883461 : f32
    %75 = vector.broadcast %cst_25 : f32 to vector<1x8x8xf32>
    %76 = arith.mulf %74, %75 : vector<1x8x8xf32>
    %77 = vector.broadcast %10 : vector<1x1x8xf32> to vector<1x8x8xf32>
    %78 = arith.addf %76, %77 : vector<1x8x8xf32>
    %cst_26 = arith.constant dense<0xFF800000> : vector<1x8xf32>
    %79 = vector.multi_reduction <maximumf>, %78, %cst_26 [2] : vector<1x8x8xf32> to vector<1x8xf32>
    %80 = vector.shape_cast %79 : vector<1x8xf32> to vector<1x8x1xf32>
    %81 = vector.broadcast %80 : vector<1x8x1xf32> to vector<1x8x8xf32>
    %82 = arith.subf %78, %81 : vector<1x8x8xf32>
    %83 = math.exp %82 : vector<1x8x8xf32>
    %cst_27 = arith.constant dense<0.000000e+00> : vector<1x8xf32>
    %84 = vector.multi_reduction <add>, %83, %cst_27 [2] : vector<1x8x8xf32> to vector<1x8xf32>
    %85 = vector.shape_cast %84 : vector<1x8xf32> to vector<1x8x1xf32>
    %86 = tpu.reciprocal %85 {approx = true} : vector<1x8x1xf32> -> vector<1x8x1xf32>
    %87 = vector.broadcast %86 : vector<1x8x1xf32> to vector<1x8x8xf32>
    %88 = arith.mulf %83, %87 : vector<1x8x8xf32>
    %89 = arith.truncf %88 : vector<1x8x8xf32> to vector<1x8x8xbf16>
    "tpu.trace_start"() <{level = 10 : i32, message = "bqk,bkd->bqd"}> : () -> ()
    %cst_28 = arith.constant dense<0.000000e+00> : vector<1x8x128xf32>
    %90 = tpu.matmul %89, %73, %cst_28 {dimension_numbers = #tpu.dot_dimension_numbers<[2], [1], [1], [2], [0, 0, 0, 1, 1, 2], [0], [0]>} : vector<1x8x8xbf16>, vector<1x8x128xbf16>, vector<1x8x128xf32> -> vector<1x8x128xf32>
    "tpu.trace_stop"() : () -> ()
    %91 = tpu.concatenate %30, %50, %70, %90 in 2 : vector<1x8x128xf32>, vector<1x8x128xf32>, vector<1x8x128xf32>, vector<1x8x128xf32> -> vector<1x8x512xf32>
    %92 = vector.shape_cast %91 : vector<1x8x512xf32> to vector<8x512xf32>
    %93 = arith.truncf %92 : vector<8x512xf32> to vector<8x512xbf16>
    %c0_29 = arith.constant 0 : index
    %c0_30 = arith.constant 0 : index
    %94 = vector.load %arg5[%c0_29, %c0_30] : memref<512x512xbf16, #tpu.memory_space<vmem>>, vector<512x512xbf16>
    %cst_31 = arith.constant dense<0.000000e+00> : vector<8x512xf32>
    %95 = tpu.matmul %93, %94, %cst_31 {dimension_numbers = #tpu.dot_dimension_numbers<[1], [0], [0], [1], [0, 0, 1, 1], [], []>} : vector<8x512xbf16>, vector<512x512xbf16>, vector<8x512xf32> -> vector<8x512xf32>
    %c0_32 = arith.constant 0 : index
    %c0_33 = arith.constant 0 : index
    %96 = vector.load %arg6[%c0_32, %c0_33] : memref<1x512xf32, #tpu.memory_space<vmem>>, vector<1x512xf32>
    %97 = vector.broadcast %96 : vector<1x512xf32> to vector<8x512xf32>
    %98 = arith.addf %95, %97 : vector<8x512xf32>
    %99 = arith.addf %2, %98 : vector<8x512xf32>
    %c0_34 = arith.constant 0 : index
    %c0_35 = arith.constant 0 : index
    %100 = vector.load %arg7[%c0_34, %c0_35] : memref<1x512xf32, #tpu.memory_space<vmem>>, vector<1x512xf32>
    %c0_36 = arith.constant 0 : index
    %c0_37 = arith.constant 0 : index
    %101 = vector.load %arg8[%c0_36, %c0_37] : memref<1x512xf32, #tpu.memory_space<vmem>>, vector<1x512xf32>
    %cst_38 = arith.constant dense<0.000000e+00> : vector<8xf32>
    %102 = vector.multi_reduction <add>, %99, %cst_38 [1] : vector<8x512xf32> to vector<8xf32>
    %103 = vector.shape_cast %102 : vector<8xf32> to vector<8x1xf32>
    %cst_39 = arith.constant 5.120000e+02 : f32
    %104 = vector.broadcast %cst_39 : f32 to vector<8x1xf32>
    %105 = arith.divf %103, %104 : vector<8x1xf32>
    %106 = vector.broadcast %105 : vector<8x1xf32> to vector<8x512xf32>
    %107 = arith.subf %99, %106 : vector<8x512xf32>
    %108 = arith.mulf %107, %107 : vector<8x512xf32>
    %cst_40 = arith.constant dense<0.000000e+00> : vector<8xf32>
    %109 = vector.multi_reduction <add>, %108, %cst_40 [1] : vector<8x512xf32> to vector<8xf32>
    %110 = vector.shape_cast %109 : vector<8xf32> to vector<8x1xf32>
    %cst_41 = arith.constant 5.120000e+02 : f32
    %111 = vector.broadcast %cst_41 : f32 to vector<8x1xf32>
    %112 = arith.divf %110, %111 : vector<8x1xf32>
    %113 = vector.broadcast %105 : vector<8x1xf32> to vector<8x512xf32>
    %114 = arith.subf %99, %113 : vector<8x512xf32>
    %cst_42 = arith.constant 9.99999974E-6 : f32
    %115 = vector.broadcast %cst_42 : f32 to vector<8x1xf32>
    %116 = arith.addf %112, %115 : vector<8x1xf32>
    %117 = math.rsqrt %116 : vector<8x1xf32>
    %118 = vector.broadcast %117 : vector<8x1xf32> to vector<8x512xf32>
    %119 = arith.mulf %114, %118 : vector<8x512xf32>
    %120 = vector.broadcast %100 : vector<1x512xf32> to vector<8x512xf32>
    %121 = arith.mulf %119, %120 : vector<8x512xf32>
    %122 = vector.broadcast %101 : vector<1x512xf32> to vector<8x512xf32>
    %123 = arith.addf %121, %122 : vector<8x512xf32>
    %124 = arith.truncf %123 : vector<8x512xf32> to vector<8x512xbf16>
    %c0_43 = arith.constant 0 : index
    %c0_44 = arith.constant 0 : index
    %125 = vector.load %arg9[%c0_43, %c0_44] : memref<512x256xbf16, #tpu.memory_space<vmem>>, vector<512x256xbf16>
    %cst_45 = arith.constant dense<0.000000e+00> : vector<8x256xf32>
    %126 = tpu.matmul %124, %125, %cst_45 {dimension_numbers = #tpu.dot_dimension_numbers<[1], [0], [0], [1], [0, 0, 1, 1], [], []>} : vector<8x512xbf16>, vector<512x256xbf16>, vector<8x256xf32> -> vector<8x256xf32>
    %c0_46 = arith.constant 0 : index
    %c0_47 = arith.constant 0 : index
    %127 = vector.load %arg10[%c0_46, %c0_47] : memref<1x256xf32, #tpu.memory_space<vmem>>, vector<1x256xf32>
    %128 = vector.broadcast %127 : vector<1x256xf32> to vector<8x256xf32>
    %129 = arith.addf %126, %128 : vector<8x256xf32>
    %cst_48 = arith.constant 0.000000e+00 : f32
    %130 = vector.broadcast %cst_48 : f32 to vector<8x256xf32>
    %131 = arith.maximumf %129, %130 : vector<8x256xf32>
    %132 = arith.truncf %131 : vector<8x256xf32> to vector<8x256xbf16>
    %c0_49 = arith.constant 0 : index
    %c0_50 = arith.constant 0 : index
    %133 = vector.load %arg11[%c0_49, %c0_50] : memref<256x512xbf16, #tpu.memory_space<vmem>>, vector<256x512xbf16>
    %cst_51 = arith.constant dense<0.000000e+00> : vector<8x512xf32>
    %134 = tpu.matmul %132, %133, %cst_51 {dimension_numbers = #tpu.dot_dimension_numbers<[1], [0], [0], [1], [0, 0, 1, 1], [], []>} : vector<8x256xbf16>, vector<256x512xbf16>, vector<8x512xf32> -> vector<8x512xf32>
    %c0_52 = arith.constant 0 : index
    %c0_53 = arith.constant 0 : index
    %135 = vector.load %arg12[%c0_52, %c0_53] : memref<1x512xf32, #tpu.memory_space<vmem>>, vector<1x512xf32>
    %136 = vector.broadcast %135 : vector<1x512xf32> to vector<8x512xf32>
    %137 = arith.addf %134, %136 : vector<8x512xf32>
    %138 = arith.addf %123, %137 : vector<8x512xf32>
    %c0_54 = arith.constant 0 : index
    %c0_55 = arith.constant 0 : index
    %139 = vector.load %arg13[%c0_54, %c0_55] : memref<1x512xf32, #tpu.memory_space<vmem>>, vector<1x512xf32>
    %c0_56 = arith.constant 0 : index
    %c0_57 = arith.constant 0 : index
    %140 = vector.load %arg14[%c0_56, %c0_57] : memref<1x512xf32, #tpu.memory_space<vmem>>, vector<1x512xf32>
    %cst_58 = arith.constant dense<0.000000e+00> : vector<8xf32>
    %141 = vector.multi_reduction <add>, %138, %cst_58 [1] : vector<8x512xf32> to vector<8xf32>
    %142 = vector.shape_cast %141 : vector<8xf32> to vector<8x1xf32>
    %cst_59 = arith.constant 5.120000e+02 : f32
    %143 = vector.broadcast %cst_59 : f32 to vector<8x1xf32>
    %144 = arith.divf %142, %143 : vector<8x1xf32>
    %145 = vector.broadcast %144 : vector<8x1xf32> to vector<8x512xf32>
    %146 = arith.subf %138, %145 : vector<8x512xf32>
    %147 = arith.mulf %146, %146 : vector<8x512xf32>
    %cst_60 = arith.constant dense<0.000000e+00> : vector<8xf32>
    %148 = vector.multi_reduction <add>, %147, %cst_60 [1] : vector<8x512xf32> to vector<8xf32>
    %149 = vector.shape_cast %148 : vector<8xf32> to vector<8x1xf32>
    %cst_61 = arith.constant 5.120000e+02 : f32
    %150 = vector.broadcast %cst_61 : f32 to vector<8x1xf32>
    %151 = arith.divf %149, %150 : vector<8x1xf32>
    %152 = vector.broadcast %144 : vector<8x1xf32> to vector<8x512xf32>
    %153 = arith.subf %138, %152 : vector<8x512xf32>
    %cst_62 = arith.constant 9.99999974E-6 : f32
    %154 = vector.broadcast %cst_62 : f32 to vector<8x1xf32>
    %155 = arith.addf %151, %154 : vector<8x1xf32>
    %156 = math.rsqrt %155 : vector<8x1xf32>
    %157 = vector.broadcast %156 : vector<8x1xf32> to vector<8x512xf32>
    %158 = arith.mulf %153, %157 : vector<8x512xf32>
    %159 = vector.broadcast %139 : vector<1x512xf32> to vector<8x512xf32>
    %160 = arith.mulf %158, %159 : vector<8x512xf32>
    %161 = vector.broadcast %140 : vector<1x512xf32> to vector<8x512xf32>
    %162 = arith.addf %160, %161 : vector<8x512xf32>
    %163 = arith.truncf %162 : vector<8x512xf32> to vector<8x512xbf16>
    %c0_63 = arith.constant 0 : index
    %c0_64 = arith.constant 0 : index
    %164 = vector.load %arg15[%c0_63, %c0_64] : memref<512x128xbf16, #tpu.memory_space<vmem>>, vector<512x128xbf16>
    %cst_65 = arith.constant dense<0.000000e+00> : vector<8x128xf32>
    %165 = tpu.matmul %163, %164, %cst_65 {dimension_numbers = #tpu.dot_dimension_numbers<[1], [0], [0], [1], [0, 0, 1, 1], [], []>} : vector<8x512xbf16>, vector<512x128xbf16>, vector<8x128xf32> -> vector<8x128xf32>
    %c0_66 = arith.constant 0 : index
    %c0_67 = arith.constant 0 : index
    %166 = vector.load %arg16[%c0_66, %c0_67] : memref<1x128xf32, #tpu.memory_space<vmem>>, vector<1x128xf32>
    %167 = vector.broadcast %166 : vector<1x128xf32> to vector<8x128xf32>
    %168 = arith.addf %165, %167 : vector<8x128xf32>
    %cst_68 = arith.constant 0.000000e+00 : f32
    %169 = vector.broadcast %cst_68 : f32 to vector<8x128xf32>
    %170 = arith.maximumf %168, %169 : vector<8x128xf32>
    %c0_69 = arith.constant 0 : index
    %c0_70 = arith.constant 0 : index
    %171 = vector.load %arg17[%c0_69, %c0_70] : memref<1x128xf32, #tpu.memory_space<vmem>>, vector<1x128xf32>
    %cst_71 = arith.constant dense<0.000000e+00> : vector<1x8xf32>
    %172 = tpu.matmul %171, %170, %cst_71 {dimension_numbers = #tpu.dot_dimension_numbers<[1], [1], [0], [0], [0, 0, 1, 0], [], []>} : vector<1x128xf32>, vector<8x128xf32>, vector<1x8xf32> -> vector<1x8xf32>
    %c0_72 = arith.constant 0 : index
    %c0_73 = arith.constant 0 : index
    %173 = vector.load %arg18[%c0_72, %c0_73] : memref<1x1xf32, #tpu.memory_space<vmem>>, vector<1x1xf32>
    %174 = vector.broadcast %173 : vector<1x1xf32> to vector<1x8xf32>
    %175 = arith.addf %172, %174 : vector<1x8xf32>
    %176 = vector.shape_cast %175 : vector<1x8xf32> to vector<1x1x8xf32>
    %c0_74 = arith.constant 0 : index
    %c0_75 = arith.constant 0 : index
    %c0_76 = arith.constant 0 : index
    %177 = vector.load %arg19[%c0_74, %c0_75, %c0_76] : memref<1x1x8xf32, #tpu.memory_space<vmem>>, vector<1x1x8xf32>
    tpu.vector_store %arg19[%c0_74, %c0_75, %c0_76], %176 {strides = array<i32>} : memref<1x1x8xf32, #tpu.memory_space<vmem>>, vector<1x1x8xf32>,
    return
  }
  func.func @transform_0(%arg0: i32) -> (i32, i32, i32) {
    %c0_i32 = arith.constant 0 : i32
    %c0_i32_0 = arith.constant 0 : i32
    %c0_i32_1 = arith.constant 0 : i32
    return %arg0, %c0_i32, %c0_i32_0 : i32, i32, i32
  }
  func.func @transform_1(%arg0: i32) -> (i32, i32, i32) {
    %c0_i32 = arith.constant 0 : i32
    %c0_i32_0 = arith.constant 0 : i32
    %c0_i32_1 = arith.constant 0 : i32
    return %arg0, %c0_i32, %c0_i32_0 : i32, i32, i32
  }
  func.func @transform_2(%arg0: i32) -> (i32, i32) {
    %c0_i32 = arith.constant 0 : i32
    %c0_i32_0 = arith.constant 0 : i32
    %c0_i32_1 = arith.constant 0 : i32
    return %c0_i32, %c0_i32_0 : i32, i32
  }
  func.func @transform_3(%arg0: i32) -> (i32, i32) {
    %c0_i32 = arith.constant 0 : i32
    %c0_i32_0 = arith.constant 0 : i32
    %c0_i32_1 = arith.constant 0 : i32
    return %c0_i32, %c0_i32_0 : i32, i32
  }
  func.func @transform_4(%arg0: i32) -> (i32, i32) {
    %c0_i32 = arith.constant 0 : i32
    %c0_i32_0 = arith.constant 0 : i32
    %c0_i32_1 = arith.constant 0 : i32
    return %c0_i32, %c0_i32_0 : i32, i32
  }
  func.func @transform_5(%arg0: i32) -> (i32, i32) {
    %c0_i32 = arith.constant 0 : i32
    %c0_i32_0 = arith.constant 0 : i32
    %c0_i32_1 = arith.constant 0 : i32
    return %c0_i32, %c0_i32_0 : i32, i32
  }
  func.func @transform_6(%arg0: i32) -> (i32, i32) {
    %c0_i32 = arith.constant 0 : i32
    %c0_i32_0 = arith.constant 0 : i32
    %c0_i32_1 = arith.constant 0 : i32
    return %c0_i32, %c0_i32_0 : i32, i32
  }
  func.func @transform_7(%arg0: i32) -> (i32, i32) {
    %c0_i32 = arith.constant 0 : i32
    %c0_i32_0 = arith.constant 0 : i32
    %c0_i32_1 = arith.constant 0 : i32
    return %c0_i32, %c0_i32_0 : i32, i32
  }
  func.func @transform_8(%arg0: i32) -> (i32, i32) {
    %c0_i32 = arith.constant 0 : i32
    %c0_i32_0 = arith.constant 0 : i32
    %c0_i32_1 = arith.constant 0 : i32
    return %c0_i32, %c0_i32_0 : i32, i32
  }
  func.func @transform_9(%arg0: i32) -> (i32, i32) {
    %c0_i32 = arith.constant 0 : i32
    %c0_i32_0 = arith.constant 0 : i32
    %c0_i32_1 = arith.constant 0 : i32
    return %c0_i32, %c0_i32_0 : i32, i32
  }
  func.func @transform_10(%arg0: i32) -> (i32, i32) {
    %c0_i32 = arith.constant 0 : i32
    %c0_i32_0 = arith.constant 0 : i32
    %c0_i32_1 = arith.constant 0 : i32
    return %c0_i32, %c0_i32_0 : i32, i32
  }
  func.func @transform_11(%arg0: i32) -> (i32, i32) {
    %c0_i32 = arith.constant 0 : i32
    %c0_i32_0 = arith.constant 0 : i32
    %c0_i32_1 = arith.constant 0 : i32
    return %c0_i32, %c0_i32_0 : i32, i32
  }
  func.func @transform_12(%arg0: i32) -> (i32, i32) {
    %c0_i32 = arith.constant 0 : i32
    %c0_i32_0 = arith.constant 0 : i32
    %c0_i32_1 = arith.constant 0 : i32
    return %c0_i32, %c0_i32_0 : i32, i32
  }
  func.func @transform_13(%arg0: i32) -> (i32, i32) {
    %c0_i32 = arith.constant 0 : i32
    %c0_i32_0 = arith.constant 0 : i32
    %c0_i32_1 = arith.constant 0 : i32
    return %c0_i32, %c0_i32_0 : i32, i32
  }
  func.func @transform_14(%arg0: i32) -> (i32, i32) {
    %c0_i32 = arith.constant 0 : i32
    %c0_i32_0 = arith.constant 0 : i32
    %c0_i32_1 = arith.constant 0 : i32
    return %c0_i32, %c0_i32_0 : i32, i32
  }
  func.func @transform_15(%arg0: i32) -> (i32, i32) {
    %c0_i32 = arith.constant 0 : i32
    %c0_i32_0 = arith.constant 0 : i32
    %c0_i32_1 = arith.constant 0 : i32
    return %c0_i32, %c0_i32_0 : i32, i32
  }
  func.func @transform_16(%arg0: i32) -> (i32, i32) {
    %c0_i32 = arith.constant 0 : i32
    %c0_i32_0 = arith.constant 0 : i32
    %c0_i32_1 = arith.constant 0 : i32
    return %c0_i32, %c0_i32_0 : i32, i32
  }
  func.func @transform_17(%arg0: i32) -> (i32, i32) {
    %c0_i32 = arith.constant 0 : i32
    %c0_i32_0 = arith.constant 0 : i32
    %c0_i32_1 = arith.constant 0 : i32
    return %c0_i32, %c0_i32_0 : i32, i32
  }
  func.func @transform_18(%arg0: i32) -> (i32, i32, i32) {
    %c0_i32 = arith.constant 0 : i32
    %c0_i32_0 = arith.constant 0 : i32
    %c0_i32_1 = arith.constant 0 : i32
    return %arg0, %c0_i32, %c0_i32_0 : i32, i32, i32
  }
}

</mosaic_0001>

<llo_original>
// kernel: tpu_custom_call.1
$region0: #{tpu_custom_call.1}
  #allocation0 [shape = 'u32[]', space=smem, size = 0x4, offset = 0x4, fixed_abs, tag = 'smem constant byte address 0x4 - core index']
  #allocation1 [shape = 'u32[144,128]{1,0:T(1,128)}', space=vmem, size = 0x12000, scoped, tag = 'internal scratch']
  #allocation2 [shape = 'f32[1,1]{1,0:T(1,128)S(1)}', space=vmem, size = 0x200, scoped, tag = 'scoped memory for tpu_custom_call.1']
  %s0 = inlined_call_operand.hbm [shape: bf16[2,8,512], index: 0, kind: input, shape index: {}]
  %s1 = inlined_call_operand.hbm [shape: f32[2,1,8], index: 1, kind: input, shape index: {}]
  %s2 = inlined_call_operand.hbm [shape: bf16[512,1536], index: 2, kind: input, shape index: {}]
  %s3 = inlined_call_operand.hbm [shape: f32[1,1536], index: 3, kind: input, shape index: {}]
  %s4 = inlined_call_operand.hbm [shape: bf16[512,512], index: 4, kind: input, shape index: {}]
  %s5 = inlined_call_operand.hbm [shape: f32[1,512], index: 5, kind: input, shape index: {}]
  %s6 = inlined_call_operand.hbm [shape: f32[1,512], index: 6, kind: input, shape index: {}]
  %s7 = inlined_call_operand.hbm [shape: f32[1,512], index: 7, kind: input, shape index: {}]
  %s8 = inlined_call_operand.hbm [shape: bf16[512,256], index: 8, kind: input, shape index: {}]
  %s9 = inlined_call_operand.hbm [shape: f32[1,256], index: 9, kind: input, shape index: {}]
  %s10 = inlined_call_operand.hbm [shape: bf16[256,512], index: 10, kind: input, shape index: {}]
  %s11 = inlined_call_operand.hbm [shape: f32[1,512], index: 11, kind: input, shape index: {}]
  %s12 = inlined_call_operand.hbm [shape: f32[1,512], index: 12, kind: input, shape index: {}]
  %s13 = inlined_call_operand.hbm [shape: f32[1,512], index: 13, kind: input, shape index: {}]
  %s14 = inlined_call_operand.hbm [shape: bf16[512,128], index: 14, kind: input, shape index: {}]
  %s15 = inlined_call_operand.hbm [shape: f32[1,128], index: 15, kind: input, shape index: {}]
  %s16 = inlined_call_operand.hbm [shape: f32[1,128], index: 16, kind: input, shape index: {}]
  %s17 = inlined_call_operand.<no memory space> [shape: f32[1,1], index: 17, kind: input, shape index: {}]
  %s18 = inlined_call_operand.hbm [shape: f32[2,1,8], index: 18, kind: output, shape index: {}]
  %s19 = sld [smem:[#allocation0]]
  $region173: #{tpu_custom_call.1} parent=0
    _
  %s21 = ssub.s32 1, %s19
  %s22 = scalar_select 0, %s21, %s19
  %v23 = vstv %s17
  %24 = vst [vmem:[#allocation2] sm:$0x1] %v23
  $region1: #{tpu_custom_call.1} parent=0
    #allocation3 [shape = 'u8[16384]{0}', space=vmem, size = 0x4000, scoped, tag = 'input window, operand 0']
    #allocation4 [shape = 's32[2]{0}', space=sflag, size = 0x8, scoped, tag = 'scoped memory for tpu_custom_call.1']
    #allocation5 [shape = 's32[2]{0}', space=sflag, size = 0x8, scoped, tag = 'scoped memory for tpu_custom_call.1']
    #allocation6 [shape = 'u8[1024]{0}', space=vmem, size = 0x400, scoped, tag = 'input window, operand 1']
    #allocation7 [shape = 's32[2]{0}', space=sflag, size = 0x8, scoped, tag = 'scoped memory for tpu_custom_call.1']
    #allocation8 [shape = 'u8[1572864]{0}', space=vmem, size = 0x180000, scoped, tag = 'input window, operand 2, single buffered']
    #allocation9 [shape = 'u8[6144]{0}', space=vmem, size = 0x1800, scoped, tag = 'input window, operand 3, single buffered']
    #allocation10 [shape = 's32[1]{0}', space=sflag, size = 0x4, scoped, tag = 'scoped memory for tpu_custom_call.1']
    #allocation11 [shape = 'u8[524288]{0}', space=vmem, size = 0x80000, scoped, tag = 'input window, operand 4, single buffered']
    #allocation12 [shape = 'u8[2048]{0}', space=vmem, size = 0x800, scoped, tag = 'input window, operand 5, single buffered']
    #allocation13 [shape = 's32[1]{0}', space=sflag, size = 0x4, scoped, tag = 'scoped memory for tpu_custom_call.1']
    #allocation14 [shape = 'u8[2048]{0}', space=vmem, size = 0x800, scoped, tag = 'input window, operand 6, single buffered']
    #allocation15 [shape = 'u8[2048]{0}', space=vmem, size = 0x800, scoped, tag = 'input window, operand 7, single buffered']
    #allocation16 [shape = 's32[1]{0}', space=sflag, size = 0x4, scoped, tag = 'scoped memory for tpu_custom_call.1']
    #allocation17 [shape = 'u8[262144]{0}', space=vmem, size = 0x40000, scoped, tag = 'input window, operand 8, single buffered']
    #allocation18 [shape = 'u8[1024]{0}', space=vmem, size = 0x400, scoped, tag = 'input window, operand 9, single buffered']
    #allocation19 [shape = 's32[1]{0}', space=sflag, size = 0x4, scoped, tag = 'scoped memory for tpu_custom_call.1']
    #allocation20 [shape = 'u8[262144]{0}', space=vmem, size = 0x40000, scoped, tag = 'input window, operand 10, single buffered']
    #allocation21 [shape = 'u8[2048]{0}', space=vmem, size = 0x800, scoped, tag = 'input window, operand 11, single buffered']
    #allocation22 [shape = 's32[1]{0}', space=sflag, size = 0x4, scoped, tag = 'scoped memory for tpu_custom_call.1']
    #allocation23 [shape = 'u8[2048]{0}', space=vmem, size = 0x800, scoped, tag = 'input window, operand 12, single buffered']
    #allocation24 [shape = 'u8[2048]{0}', space=vmem, size = 0x800, scoped, tag = 'input window, operand 13, single buffered']
    #allocation25 [shape = 's32[1]{0}', space=sflag, size = 0x4, scoped, tag = 'scoped memory for tpu_custom_call.1']
    #allocation26 [shape = 'u8[131072]{0}', space=vmem, size = 0x20000, scoped, tag = 'input window, operand 14, single buffered']
    #allocation27 [shape = 'u8[512]{0}', space=vmem, size = 0x400, scoped, tag = 'input window, operand 15, single buffered']
    #allocation28 [shape = 's32[1]{0}', space=sflag, size = 0x4, scoped, tag = 'scoped memory for tpu_custom_call.1']
    #allocation29 [shape = 'u8[512]{0}', space=vmem, size = 0x400, scoped, tag = 'input window, operand 16, single buffered']
    #allocation30 [shape = 'u8[1024]{0}', space=vmem, size = 0x400, scoped, tag = 'output window, operand 0']
    %25 = vsyncpa [#allocation4], 0
    %s26 = scalar_lea.sflag [#allocation4], 1
    %27 = vsyncpa %s26, 0
    %28 = vsyncpa [#allocation7], 0
    %s29 = scalar_lea.sflag [#allocation7], 1
    %30 = vsyncpa %s29, 0
    %31 = vsyncpa [#allocation10], 0
    %32 = vsyncpa [#allocation13], 0
    %33 = vsyncpa [#allocation16], 0
    %34 = vsyncpa [#allocation19], 0
    %35 = vsyncpa [#allocation22], 0
    %36 = vsyncpa [#allocation25], 0
    %37 = vsyncpa [#allocation28], 0
    %38 = vsyncpa [#allocation5], 0
    %s39 = scalar_lea.sflag [#allocation5], 1
    %40 = vsyncpa %s39, 0
    loop: start=0, step=1, limit=4
    $region2: #{tpu_custom_call.1} parent=1 // loop_pre_header
      _
    $region3: #{tpu_custom_call.1} parent=1 // loop_header
      %s42 = sphi 0, %s46
      %p43 = scmp.ge.s32.totalorder %s42, 4
      %s52 = sphi 0, %s54
      %s55 = sphi 0, %s52
      %s56 = sphi 0, %s55
      %s72 = sphi 0, %s56
      %s78 = sphi 0, %s80
      %s81 = sphi 0, %s78
      %s82 = sphi 0, %s81
      %s98 = sphi 0, %s82
      %s102 = sphi 0, %s102
      %s104 = sphi 0, %s102
      %s105 = sphi 0, %s104
      %s119 = sphi 0, %s105
      %s123 = sphi 0, %s123
      %s125 = sphi 0, %s123
      %s126 = sphi 0, %s125
      %s140 = sphi 0, %s126
      %s144 = sphi 0, %s144
      %s146 = sphi 0, %s144
      %s147 = sphi 0, %s146
      %s161 = sphi 0, %s147
      %s165 = sphi 0, %s165
      %s167 = sphi 0, %s165
      %s168 = sphi 0, %s167
      %s182 = sphi 0, %s168
      %s186 = sphi 0, %s186
      %s188 = sphi 0, %s186
      %s189 = sphi 0, %s188
      %s203 = sphi 0, %s189
      %s207 = sphi 0, %s207
      %s209 = sphi 0, %s207
      %s210 = sphi 0, %s209
      %s224 = sphi 0, %s210
      %s228 = sphi 0, %s228
      %s230 = sphi 0, %s228
      %s231 = sphi 0, %s230
      %s245 = sphi 0, %s231
      %s249 = sphi 0, %s249
      %s251 = sphi 0, %s249
      %s252 = sphi 0, %s251
      %s266 = sphi 0, %s252
      %s270 = sphi 0, %s270
      %s272 = sphi 0, %s270
      %s273 = sphi 0, %s272
      %s287 = sphi 0, %s273
      %s291 = sphi 0, %s291
      %s293 = sphi 0, %s291
      %s294 = sphi 0, %s293
      %s308 = sphi 0, %s294
      %s312 = sphi 0, %s312
      %s314 = sphi 0, %s312
      %s315 = sphi 0, %s314
      %s329 = sphi 0, %s315
      %s333 = sphi 0, %s333
      %s335 = sphi 0, %s333
      %s336 = sphi 0, %s335
      %s350 = sphi 0, %s336
      %s354 = sphi 0, %s354
      %s356 = sphi 0, %s354
      %s357 = sphi 0, %s356
      %s371 = sphi 0, %s357
      %s375 = sphi 0, %s375
      %s377 = sphi 0, %s375
      %s378 = sphi 0, %s377
      %s392 = sphi 0, %s378
      %s396 = sphi 0, %s396
      %s398 = sphi 0, %s396
      %s399 = sphi 0, %s398
      %s413 = sphi 0, %s399
      %s417 = sphi 0, %s417
      %s419 = sphi 0, %s417
      %s420 = sphi 0, %s419
      %s434 = sphi 0, %s420
      %s440 = sphi 0, %s442
      %s443 = sphi 0, %s440
      %s444 = sphi 0, %s443
      %s460 = sphi 0, %s444
    $region4: #{tpu_custom_call.1} parent=1 // loop_header_branch
      %45 = sbr.rel (%p43) target = $region8
    $region5: #{tpu_custom_call.1} parent=1 // loop_body
      %s47 = ssub.s32 %s42, 1
      %s48 = ssub.s32 %s42, 2
      %s49 = sadd.s32 %s42, 1
      %s50 = ssub.s32 %s42, %s49
      %p51 = scmp.eq.s32.totalorder %s50, 0
      %s53 = sadd.s32 %s52, 1
      %s54 = scalar_select %p51, %s52, %s53
      %p57 = pneg %p51
      %p58 = scmp.eq.s32.totalorder %s42, 1
      %p59 = por %p57, %p58
      %p60 = scmp.ne.s32.totalorder %s52, %s55
      %p61 = scmp.eq.s32.totalorder %s42, 0
      %p62 = por %p60, %p61
      %p63 = scmp.ne.s32.totalorder %s52, %s55
      %p64 = scmp.eq.s32.totalorder %s47, 1
      %p65 = por %p63, %p64
      %p66 = scmp.ne.s32.totalorder %s55, %s56
      %p67 = scmp.eq.s32.totalorder %s47, 0
      %p68 = por %p66, %p67
      %p69 = scmp.ne.s32.totalorder %s55, %s56
      %p70 = scmp.eq.s32.totalorder %s48, 1
      %p71 = por %p69, %p70
      %p73 = scmp.ne.s32.totalorder %s56, %s72
      %p74 = scmp.eq.s32.totalorder %s48, 0
      %p75 = por %p73, %p74
      %s76 = ssub.s32 %s42, %s49
      %p77 = scmp.eq.s32.totalorder %s76, 0
      %s79 = sadd.s32 %s78, 1
      %s80 = scalar_select %p77, %s78, %s79
      %p83 = pneg %p77
      %p84 = scmp.eq.s32.totalorder %s42, 1
      %p85 = por %p83, %p84
      %p86 = scmp.ne.s32.totalorder %s78, %s81
      %p87 = scmp.eq.s32.totalorder %s42, 0
      %p88 = por %p86, %p87
      %p89 = scmp.ne.s32.totalorder %s78, %s81
      %p90 = scmp.eq.s32.totalorder %s47, 1
      %p91 = por %p89, %p90
      %p92 = scmp.ne.s32.totalorder %s81, %s82
      %p93 = scmp.eq.s32.totalorder %s47, 0
      %p94 = por %p92, %p93
      %p95 = scmp.ne.s32.totalorder %s81, %s82
      %p96 = scmp.eq.s32.totalorder %s48, 1
      %p97 = por %p95, %p96
      %p99 = scmp.ne.s32.totalorder %s82, %s98
      %p100 = scmp.eq.s32.totalorder %s48, 0
      %p101 = por %p99, %p100
      %s103 = sadd.s32 %s102, 1
      %p106 = scmp.eq.s32.totalorder %s42, 1
      %p107 = scmp.ne.s32.totalorder %s102, %s104
      %p108 = scmp.eq.s32.totalorder %s42, 0
      %p109 = por %p107, %p108
      %p110 = scmp.ne.s32.totalorder %s102, %s104
      %p111 = scmp.eq.s32.totalorder %s47, 1
      %p112 = por %p110, %p111
      %p113 = scmp.ne.s32.totalorder %s104, %s105
      %p114 = scmp.eq.s32.totalorder %s47, 0
      %p115 = por %p113, %p114
      %p116 = scmp.ne.s32.totalorder %s104, %s105
      %p117 = scmp.eq.s32.totalorder %s48, 1
      %p118 = por %p116, %p117
      %p120 = scmp.ne.s32.totalorder %s105, %s119
      %p121 = scmp.eq.s32.totalorder %s48, 0
      %p122 = por %p120, %p121
      %s124 = sadd.s32 %s123, 1
      %p127 = scmp.eq.s32.totalorder %s42, 1
      %p128 = scmp.ne.s32.totalorder %s123, %s125
      %p129 = scmp.eq.s32.totalorder %s42, 0
      %p130 = por %p128, %p129
      %p131 = scmp.ne.s32.totalorder %s123, %s125
      %p132 = scmp.eq.s32.totalorder %s47, 1
      %p133 = por %p131, %p132
      %p134 = scmp.ne.s32.totalorder %s125, %s126
      %p135 = scmp.eq.s32.totalorder %s47, 0
      %p136 = por %p134, %p135
      %p137 = scmp.ne.s32.totalorder %s125, %s126
      %p138 = scmp.eq.s32.totalorder %s48, 1
      %p139 = por %p137, %p138
      %p141 = scmp.ne.s32.totalorder %s126, %s140
      %p142 = scmp.eq.s32.totalorder %s48, 0
      %p143 = por %p141, %p142
      %s145 = sadd.s32 %s144, 1
      %p148 = scmp.eq.s32.totalorder %s42, 1
      %p149 = scmp.ne.s32.totalorder %s144, %s146
      %p150 = scmp.eq.s32.totalorder %s42, 0
      %p151 = por %p149, %p150
      %p152 = scmp.ne.s32.totalorder %s144, %s146
      %p153 = scmp.eq.s32.totalorder %s47, 1
      %p154 = por %p152, %p153
      %p155 = scmp.ne.s32.totalorder %s146, %s147
      %p156 = scmp.eq.s32.totalorder %s47, 0
      %p157 = por %p155, %p156
      %p158 = scmp.ne.s32.totalorder %s146, %s147
      %p159 = scmp.eq.s32.totalorder %s48, 1
      %p160 = por %p158, %p159
      %p162 = scmp.ne.s32.totalorder %s147, %s161
      %p163 = scmp.eq.s32.totalorder %s48, 0
      %p164 = por %p162, %p163
      %s166 = sadd.s32 %s165, 1
      %p169 = scmp.eq.s32.totalorder %s42, 1
      %p170 = scmp.ne.s32.totalorder %s165, %s167
      %p171 = scmp.eq.s32.totalorder %s42, 0
      %p172 = por %p170, %p171
      %p173 = scmp.ne.s32.totalorder %s165, %s167
      %p174 = scmp.eq.s32.totalorder %s47, 1
      %p175 = por %p173, %p174
      %p176 = scmp.ne.s32.totalorder %s167, %s168
      %p177 = scmp.eq.s32.totalorder %s47, 0
      %p178 = por %p176, %p177
      %p179 = scmp.ne.s32.totalorder %s167, %s168
      %p180 = scmp.eq.s32.totalorder %s48, 1
      %p181 = por %p179, %p180
      %p183 = scmp.ne.s32.totalorder %s168, %s182
      %p184 = scmp.eq.s32.totalorder %s48, 0
      %p185 = por %p183, %p184
      %s187 = sadd.s32 %s186, 1
      %p190 = scmp.eq.s32.totalorder %s42, 1
      %p191 = scmp.ne.s32.totalorder %s186, %s188
      %p192 = scmp.eq.s32.totalorder %s42, 0
      %p193 = por %p191, %p192
      %p194 = scmp.ne.s32.totalorder %s186, %s188
      %p195 = scmp.eq.s32.totalorder %s47, 1
      %p196 = por %p194, %p195
      %p197 = scmp.ne.s32.totalorder %s188, %s189
      %p198 = scmp.eq.s32.totalorder %s47, 0
      %p199 = por %p197, %p198
      %p200 = scmp.ne.s32.totalorder %s188, %s189
      %p201 = scmp.eq.s32.totalorder %s48, 1
      %p202 = por %p200, %p201
      %p204 = scmp.ne.s32.totalorder %s189, %s203
      %p205 = scmp.eq.s32.totalorder %s48, 0
      %p206 = por %p204, %p205
      %s208 = sadd.s32 %s207, 1
      %p211 = scmp.eq.s32.totalorder %s42, 1
      %p212 = scmp.ne.s32.totalorder %s207, %s209
      %p213 = scmp.eq.s32.totalorder %s42, 0
      %p214 = por %p212, %p213
      %p215 = scmp.ne.s32.totalorder %s207, %s209
      %p216 = scmp.eq.s32.totalorder %s47, 1
      %p217 = por %p215, %p216
      %p218 = scmp.ne.s32.totalorder %s209, %s210
      %p219 = scmp.eq.s32.totalorder %s47, 0
      %p220 = por %p218, %p219
      %p221 = scmp.ne.s32.totalorder %s209, %s210
      %p222 = scmp.eq.s32.totalorder %s48, 1
      %p223 = por %p221, %p222
      %p225 = scmp.ne.s32.totalorder %s210, %s224
      %p226 = scmp.eq.s32.totalorder %s48, 0
      %p227 = por %p225, %p226
      %s229 = sadd.s32 %s228, 1
      %p232 = scmp.eq.s32.totalorder %s42, 1
      %p233 = scmp.ne.s32.totalorder %s228, %s230
      %p234 = scmp.eq.s32.totalorder %s42, 0
      %p235 = por %p233, %p234
      %p236 = scmp.ne.s32.totalorder %s228, %s230
      %p237 = scmp.eq.s32.totalorder %s47, 1
      %p238 = por %p236, %p237
      %p239 = scmp.ne.s32.totalorder %s230, %s231
      %p240 = scmp.eq.s32.totalorder %s47, 0
      %p241 = por %p239, %p240
      %p242 = scmp.ne.s32.totalorder %s230, %s231
      %p243 = scmp.eq.s32.totalorder %s48, 1
      %p244 = por %p242, %p243
      %p246 = scmp.ne.s32.totalorder %s231, %s245
      %p247 = scmp.eq.s32.totalorder %s48, 0
      %p248 = por %p246, %p247
      %s250 = sadd.s32 %s249, 1
      %p253 = scmp.eq.s32.totalorder %s42, 1
      %p254 = scmp.ne.s32.totalorder %s249, %s251
      %p255 = scmp.eq.s32.totalorder %s42, 0
      %p256 = por %p254, %p255
      %p257 = scmp.ne.s32.totalorder %s249, %s251
      %p258 = scmp.eq.s32.totalorder %s47, 1
      %p259 = por %p257, %p258
      %p260 = scmp.ne.s32.totalorder %s251, %s252
      %p261 = scmp.eq.s32.totalorder %s47, 0
      %p262 = por %p260, %p261
      %p263 = scmp.ne.s32.totalorder %s251, %s252
      %p264 = scmp.eq.s32.totalorder %s48, 1
      %p265 = por %p263, %p264
      %p267 = scmp.ne.s32.totalorder %s252, %s266
      %p268 = scmp.eq.s32.totalorder %s48, 0
      %p269 = por %p267, %p268
      %s271 = sadd.s32 %s270, 1
      %p274 = scmp.eq.s32.totalorder %s42, 1
      %p275 = scmp.ne.s32.totalorder %s270, %s272
      %p276 = scmp.eq.s32.totalorder %s42, 0
      %p277 = por %p275, %p276
      %p278 = scmp.ne.s32.totalorder %s270, %s272
      %p279 = scmp.eq.s32.totalorder %s47, 1
      %p280 = por %p278, %p279
      %p281 = scmp.ne.s32.totalorder %s272, %s273
      %p282 = scmp.eq.s32.totalorder %s47, 0
      %p283 = por %p281, %p282
      %p284 = scmp.ne.s32.totalorder %s272, %s273
      %p285 = scmp.eq.s32.totalorder %s48, 1
      %p286 = por %p284, %p285
      %p288 = scmp.ne.s32.totalorder %s273, %s287
      %p289 = scmp.eq.s32.totalorder %s48, 0
      %p290 = por %p288, %p289
      %s292 = sadd.s32 %s291, 1
      %p295 = scmp.eq.s32.totalorder %s42, 1
      %p296 = scmp.ne.s32.totalorder %s291, %s293
      %p297 = scmp.eq.s32.totalorder %s42, 0
      %p298 = por %p296, %p297
      %p299 = scmp.ne.s32.totalorder %s291, %s293
      %p300 = scmp.eq.s32.totalorder %s47, 1
      %p301 = por %p299, %p300
      %p302 = scmp.ne.s32.totalorder %s293, %s294
      %p303 = scmp.eq.s32.totalorder %s47, 0
      %p304 = por %p302, %p303
      %p305 = scmp.ne.s32.totalorder %s293, %s294
      %p306 = scmp.eq.s32.totalorder %s48, 1
      %p307 = por %p305, %p306
      %p309 = scmp.ne.s32.totalorder %s294, %s308
      %p310 = scmp.eq.s32.totalorder %s48, 0
      %p311 = por %p309, %p310
      %s313 = sadd.s32 %s312, 1
      %p316 = scmp.eq.s32.totalorder %s42, 1
      %p317 = scmp.ne.s32.totalorder %s312, %s314
      %p318 = scmp.eq.s32.totalorder %s42, 0
      %p319 = por %p317, %p318
      %p320 = scmp.ne.s32.totalorder %s312, %s314
      %p321 = scmp.eq.s32.totalorder %s47, 1
      %p322 = por %p320, %p321
      %p323 = scmp.ne.s32.totalorder %s314, %s315
      %p324 = scmp.eq.s32.totalorder %s47, 0
      %p325 = por %p323, %p324
      %p326 = scmp.ne.s32.totalorder %s314, %s315
      %p327 = scmp.eq.s32.totalorder %s48, 1
      %p328 = por %p326, %p327
      %p330 = scmp.ne.s32.totalorder %s315, %s329
      %p331 = scmp.eq.s32.totalorder %s48, 0
      %p332 = por %p330, %p331
      %s334 = sadd.s32 %s333, 1
      %p337 = scmp.eq.s32.totalorder %s42, 1
      %p338 = scmp.ne.s32.totalorder %s333, %s335
      %p339 = scmp.eq.s32.totalorder %s42, 0
      %p340 = por %p338, %p339
      %p341 = scmp.ne.s32.totalorder %s333, %s335
      %p342 = scmp.eq.s32.totalorder %s47, 1
      %p343 = por %p341, %p342
      %p344 = scmp.ne.s32.totalorder %s335, %s336
      %p345 = scmp.eq.s32.totalorder %s47, 0
      %p346 = por %p344, %p345
      %p347 = scmp.ne.s32.totalorder %s335, %s336
      %p348 = scmp.eq.s32.totalorder %s48, 1
      %p349 = por %p347, %p348
      %p351 = scmp.ne.s32.totalorder %s336, %s350
      %p352 = scmp.eq.s32.totalorder %s48, 0
      %p353 = por %p351, %p352
      %s355 = sadd.s32 %s354, 1
      %p358 = scmp.eq.s32.totalorder %s42, 1
      %p359 = scmp.ne.s32.totalorder %s354, %s356
      %p360 = scmp.eq.s32.totalorder %s42, 0
      %p361 = por %p359, %p360
      %p362 = scmp.ne.s32.totalorder %s354, %s356
      %p363 = scmp.eq.s32.totalorder %s47, 1
      %p364 = por %p362, %p363
      %p365 = scmp.ne.s32.totalorder %s356, %s357
      %p366 = scmp.eq.s32.totalorder %s47, 0
      %p367 = por %p365, %p366
      %p368 = scmp.ne.s32.totalorder %s356, %s357
      %p369 = scmp.eq.s32.totalorder %s48, 1
      %p370 = por %p368, %p369
      %p372 = scmp.ne.s32.totalorder %s357, %s371
      %p373 = scmp.eq.s32.totalorder %s48, 0
      %p374 = por %p372, %p373
      %s376 = sadd.s32 %s375, 1
      %p379 = scmp.eq.s32.totalorder %s42, 1
      %p380 = scmp.ne.s32.totalorder %s375, %s377
      %p381 = scmp.eq.s32.totalorder %s42, 0
      %p382 = por %p380, %p381
      %p383 = scmp.ne.s32.totalorder %s375, %s377
      %p384 = scmp.eq.s32.totalorder %s47, 1
      %p385 = por %p383, %p384
      %p386 = scmp.ne.s32.totalorder %s377, %s378
      %p387 = scmp.eq.s32.totalorder %s47, 0
      %p388 = por %p386, %p387
      %p389 = scmp.ne.s32.totalorder %s377, %s378
      %p390 = scmp.eq.s32.totalorder %s48, 1
      %p391 = por %p389, %p390
      %p393 = scmp.ne.s32.totalorder %s378, %s392
      %p394 = scmp.eq.s32.totalorder %s48, 0
      %p395 = por %p393, %p394
      %s397 = sadd.s32 %s396, 1
      %p400 = scmp.eq.s32.totalorder %s42, 1
      %p401 = scmp.ne.s32.totalorder %s396, %s398
      %p402 = scmp.eq.s32.totalorder %s42, 0
      %p403 = por %p401, %p402
      %p404 = scmp.ne.s32.totalorder %s396, %s398
      %p405 = scmp.eq.s32.totalorder %s47, 1
      %p406 = por %p404, %p405
      %p407 = scmp.ne.s32.totalorder %s398, %s399
      %p408 = scmp.eq.s32.totalorder %s47, 0
      %p409 = por %p407, %p408
      %p410 = scmp.ne.s32.totalorder %s398, %s399
      %p411 = scmp.eq.s32.totalorder %s48, 1
      %p412 = por %p410, %p411
      %p414 = scmp.ne.s32.totalorder %s399, %s413
      %p415 = scmp.eq.s32.totalorder %s48, 0
      %p416 = por %p414, %p415
      %s418 = sadd.s32 %s417, 1
      %p421 = scmp.eq.s32.totalorder %s42, 1
      %p422 = scmp.ne.s32.totalorder %s417, %s419
      %p423 = scmp.eq.s32.totalorder %s42, 0
      %p424 = por %p422, %p423
      %p425 = scmp.ne.s32.totalorder %s417, %s419
      %p426 = scmp.eq.s32.totalorder %s47, 1
      %p427 = por %p425, %p426
      %p428 = scmp.ne.s32.totalorder %s419, %s420
      %p429 = scmp.eq.s32.totalorder %s47, 0
      %p430 = por %p428, %p429
      %p431 = scmp.ne.s32.totalorder %s419, %s420
      %p432 = scmp.eq.s32.totalorder %s48, 1
      %p433 = por %p431, %p432
      %p435 = scmp.ne.s32.totalorder %s420, %s434
      %p436 = scmp.eq.s32.totalorder %s48, 0
      %p437 = por %p435, %p436
      %s438 = ssub.s32 %s42, %s49
      %p439 = scmp.eq.s32.totalorder %s438, 0
      %s441 = sadd.s32 %s440, 1
      %s442 = scalar_select %p439, %s440, %s441
      %p445 = pneg %p439
      %p446 = scmp.eq.s32.totalorder %s42, 1
      %p447 = por %p445, %p446
      %p448 = scmp.ne.s32.totalorder %s440, %s443
      %p449 = scmp.eq.s32.totalorder %s42, 0
      %p450 = por %p448, %p449
      %p451 = scmp.ne.s32.totalorder %s440, %s443
      %p452 = scmp.eq.s32.totalorder %s47, 1
      %p453 = por %p451, %p452
      %p454 = scmp.ne.s32.totalorder %s443, %s444
      %p455 = scmp.eq.s32.totalorder %s47, 0
      %p456 = por %p454, %p455
      %p457 = scmp.ne.s32.totalorder %s443, %s444
      %p458 = scmp.eq.s32.totalorder %s48, 1
      %p459 = por %p457, %p458
      %p461 = scmp.ne.s32.totalorder %s444, %s460
      %p462 = scmp.eq.s32.totalorder %s48, 0
      %p463 = por %p461, %p462
      %p464 = scmp.le.s32.totalorder 1, %s42
      %p465 = scmp.lt.s32.totalorder %s42, 3
      %p466 = pnand %p464, %p465
      %p467 = pneg %p466
      // Predicated region
      $region9: #{tpu_custom_call.1} parent=5 // pred_check
        _
      $region10: #{tpu_custom_call.1} parent=5 // pred_check_branch
        %469 = sbr.rel (%p466) target = $region12
      $region11: #{tpu_custom_call.1} parent=5 // pred_region
        %s470 = ssub.s32 %s42, 1
        // Predicated region
        $region13: #{tpu_custom_call.1} parent=11 // pred_check
          %p471 = pneg %p115
        $region14: #{tpu_custom_call.1} parent=11 // pred_check_branch
          %473 = sbr.rel (%p471) target = $region16
        $region15: #{tpu_custom_call.1} parent=11 // pred_region
          %s475 = ssub.s32 49152, 49152
          %476 = vsyncadd [#allocation7], %s475
          %s477 = sshll.u32 [#allocation8], 4
          %s478 = int_to_ptr.vmem [resolvable:$true] %s477
          %483 = dma.hbm_to_vmem [thread:$0]  %s2, 49152, %s478, [#allocation7], 768, 768, 48
        $region16: #{tpu_custom_call.1} parent=11 // pred_fallthru
          _
        // Predicated region
        $region17: #{tpu_custom_call.1} parent=11 // pred_check
          %p484 = pneg %p136
        $region18: #{tpu_custom_call.1} parent=11 // pred_check_branch
          %486 = sbr.rel (%p484) target = $region20
        $region19: #{tpu_custom_call.1} parent=11 // pred_region
          %s488 = ssub.s32 192, 192
          %489 = vsyncadd [#allocation10], %s488
          %s491 = sshll.u32 [#allocation9], 4
          %s492 = int_to_ptr.vmem [resolvable:$true] %s491
          %494 = dma.hbm_to_vmem [thread:$0]  %s3, 192, %s492, [#allocation10]
        $region20: #{tpu_custom_call.1} parent=11 // pred_fallthru
          _
        // Predicated region
        $region21: #{tpu_custom_call.1} parent=11 // pred_check
          %p495 = pneg %p157
        $region22: #{tpu_custom_call.1} parent=11 // pred_check_branch
          %497 = sbr.rel (%p495) target = $region24
        $region23: #{tpu_custom_call.1} parent=11 // pred_region
          %s499 = ssub.s32 16384, 16384
          %500 = vsyncadd [#allocation10], %s499
          %s501 = sshll.u32 [#allocation11], 4
          %s502 = int_to_ptr.vmem [resolvable:$true] %s501
          %507 = dma.hbm_to_vmem [thread:$0]  %s4, 16384, %s502, [#allocation10], 256, 256, 16
        $region24: #{tpu_custom_call.1} parent=11 // pred_fallthru
          _
        // Predicated region
        $region25: #{tpu_custom_call.1} parent=11 // pred_check
          %p508 = pneg %p178
        $region26: #{tpu_custom_call.1} parent=11 // pred_check_branch
          %510 = sbr.rel (%p508) target = $region28
        $region27: #{tpu_custom_call.1} parent=11 // pred_region
          %s512 = ssub.s32 64, 64
          %513 = vsyncadd [#allocation13], %s512
          %s515 = sshll.u32 [#allocation12], 4
          %s516 = int_to_ptr.vmem [resolvable:$true] %s515
          %518 = dma.hbm_to_vmem [thread:$0]  %s5, 64, %s516, [#allocation13]
        $region28: #{tpu_custom_call.1} parent=11 // pred_fallthru
          _
        // Predicated region
        $region29: #{tpu_custom_call.1} parent=11 // pred_check
          %p519 = pneg %p199
        $region30: #{tpu_custom_call.1} parent=11 // pred_check_branch
          %521 = sbr.rel (%p519) target = $region32
        $region31: #{tpu_custom_call.1} parent=11 // pred_region
          %s523 = ssub.s32 64, 64
          %524 = vsyncadd [#allocation13], %s523
          %s526 = sshll.u32 [#allocation14], 4
          %s527 = int_to_ptr.vmem [resolvable:$true] %s526
          %529 = dma.hbm_to_vmem [thread:$0]  %s6, 64, %s527, [#allocation13]
        $region32: #{tpu_custom_call.1} parent=11 // pred_fallthru
          _
        // Predicated region
        $region33: #{tpu_custom_call.1} parent=11 // pred_check
          %p530 = pneg %p220
        $region34: #{tpu_custom_call.1} parent=11 // pred_check_branch
          %532 = sbr.rel (%p530) target = $region36
        $region35: #{tpu_custom_call.1} parent=11 // pred_region
          %s534 = ssub.s32 64, 64
          %535 = vsyncadd [#allocation16], %s534
          %s537 = sshll.u32 [#allocation15], 4
          %s538 = int_to_ptr.vmem [resolvable:$true] %s537
          %540 = dma.hbm_to_vmem [thread:$0]  %s7, 64, %s538, [#allocation16]
        $region36: #{tpu_custom_call.1} parent=11 // pred_fallthru
          _
        // Predicated region
        $region37: #{tpu_custom_call.1} parent=11 // pred_check
          %p541 = pneg %p241
        $region38: #{tpu_custom_call.1} parent=11 // pred_check_branch
          %543 = sbr.rel (%p541) target = $region40
        $region39: #{tpu_custom_call.1} parent=11 // pred_region
          %s545 = ssub.s32 8192, 8192
          %546 = vsyncadd [#allocation16], %s545
          %s547 = sshll.u32 [#allocation17], 4
          %s548 = int_to_ptr.vmem [resolvable:$true] %s547
          %553 = dma.hbm_to_vmem [thread:$0]  %s8, 8192, %s548, [#allocation16], 128, 128, 8
        $region40: #{tpu_custom_call.1} parent=11 // pred_fallthru
          _
        // Predicated region
        $region41: #{tpu_custom_call.1} parent=11 // pred_check
          %p554 = pneg %p262
        $region42: #{tpu_custom_call.1} parent=11 // pred_check_branch
          %556 = sbr.rel (%p554) target = $region44
        $region43: #{tpu_custom_call.1} parent=11 // pred_region
          %s558 = ssub.s32 32, 32
          %559 = vsyncadd [#allocation19], %s558
          %s561 = sshll.u32 [#allocation18], 4
          %s562 = int_to_ptr.vmem [resolvable:$true] %s561
          %564 = dma.hbm_to_vmem [thread:$0]  %s9, 32, %s562, [#allocation19]
        $region44: #{tpu_custom_call.1} parent=11 // pred_fallthru
          _
        // Predicated region
        $region45: #{tpu_custom_call.1} parent=11 // pred_check
          %p565 = pneg %p283
        $region46: #{tpu_custom_call.1} parent=11 // pred_check_branch
          %567 = sbr.rel (%p565) target = $region48
        $region47: #{tpu_custom_call.1} parent=11 // pred_region
          %s569 = ssub.s32 8192, 8192
          %570 = vsyncadd [#allocation19], %s569
          %s571 = sshll.u32 [#allocation20], 4
          %s572 = int_to_ptr.vmem [resolvable:$true] %s571
          %577 = dma.hbm_to_vmem [thread:$0]  %s10, 8192, %s572, [#allocation19], 256, 256, 16
        $region48: #{tpu_custom_call.1} parent=11 // pred_fallthru
          _
        // Predicated region
        $region49: #{tpu_custom_call.1} parent=11 // pred_check
          %p578 = pneg %p304
        $region50: #{tpu_custom_call.1} parent=11 // pred_check_branch
          %580 = sbr.rel (%p578) target = $region52
        $region51: #{tpu_custom_call.1} parent=11 // pred_region
          %s582 = ssub.s32 64, 64
          %583 = vsyncadd [#allocation22], %s582
          %s585 = sshll.u32 [#allocation21], 4
          %s586 = int_to_ptr.vmem [resolvable:$true] %s585
          %588 = dma.hbm_to_vmem [thread:$0]  %s11, 64, %s586, [#allocation22]
        $region52: #{tpu_custom_call.1} parent=11 // pred_fallthru
          _
        // Predicated region
        $region53: #{tpu_custom_call.1} parent=11 // pred_check
          %p589 = pneg %p325
        $region54: #{tpu_custom_call.1} parent=11 // pred_check_branch
          %591 = sbr.rel (%p589) target = $region56
        $region55: #{tpu_custom_call.1} parent=11 // pred_region
          %s593 = ssub.s32 64, 64
          %594 = vsyncadd [#allocation22], %s593
          %s596 = sshll.u32 [#allocation23], 4
          %s597 = int_to_ptr.vmem [resolvable:$true] %s596
          %599 = dma.hbm_to_vmem [thread:$0]  %s12, 64, %s597, [#allocation22]
        $region56: #{tpu_custom_call.1} parent=11 // pred_fallthru
          _
        // Predicated region
        $region57: #{tpu_custom_call.1} parent=11 // pred_check
          %p600 = pneg %p346
        $region58: #{tpu_custom_call.1} parent=11 // pred_check_branch
          %602 = sbr.rel (%p600) target = $region60
        $region59: #{tpu_custom_call.1} parent=11 // pred_region
          %s604 = ssub.s32 64, 64
          %605 = vsyncadd [#allocation25], %s604
          %s607 = sshll.u32 [#allocation24], 4
          %s608 = int_to_ptr.vmem [resolvable:$true] %s607
          %610 = dma.hbm_to_vmem [thread:$0]  %s13, 64, %s608, [#allocation25]
        $region60: #{tpu_custom_call.1} parent=11 // pred_fallthru
          _
        // Predicated region
        $region61: #{tpu_custom_call.1} parent=11 // pred_check
          %p611 = pneg %p367
        $region62: #{tpu_custom_call.1} parent=11 // pred_check_branch
          %613 = sbr.rel (%p611) target = $region64
        $region63: #{tpu_custom_call.1} parent=11 // pred_region
          %s615 = ssub.s32 4096, 4096
          %616 = vsyncadd [#allocation25], %s615
          %s617 = sshll.u32 [#allocation26], 4
          %s618 = int_to_ptr.vmem [resolvable:$true] %s617
          %623 = dma.hbm_to_vmem [thread:$0]  %s14, 4096, %s618, [#allocation25], 64, 64, 4
        $region64: #{tpu_custom_call.1} parent=11 // pred_fallthru
          _
        // Predicated region
        $region65: #{tpu_custom_call.1} parent=11 // pred_check
          %p624 = pneg %p388
        $region66: #{tpu_custom_call.1} parent=11 // pred_check_branch
          %626 = sbr.rel (%p624) target = $region68
        $region67: #{tpu_custom_call.1} parent=11 // pred_region
          %s628 = ssub.s32 16, 16
          %629 = vsyncadd [#allocation28], %s628
          %s631 = sshll.u32 [#allocation27], 4
          %s632 = int_to_ptr.vmem [resolvable:$true] %s631
          %634 = dma.hbm_to_vmem [thread:$0]  %s15, 16, %s632, [#allocation28]
        $region68: #{tpu_custom_call.1} parent=11 // pred_fallthru
          _
        // Predicated region
        $region69: #{tpu_custom_call.1} parent=11 // pred_check
          %p635 = pneg %p409
        $region70: #{tpu_custom_call.1} parent=11 // pred_check_branch
          %637 = sbr.rel (%p635) target = $region72
        $region71: #{tpu_custom_call.1} parent=11 // pred_region
          %s639 = ssub.s32 16, 16
          %640 = vsyncadd [#allocation28], %s639
          %s642 = sshll.u32 [#allocation29], 4
          %s643 = int_to_ptr.vmem [resolvable:$true] %s642
          %645 = dma.hbm_to_vmem [thread:$0]  %s16, 16, %s643, [#allocation28]
        $region72: #{tpu_custom_call.1} parent=11 // pred_fallthru
          _
        // Predicated region
        $region73: #{tpu_custom_call.1} parent=11 // pred_check
          %p646 = pneg %p430
        $region74: #{tpu_custom_call.1} parent=11 // pred_check_branch
          %648 = sbr.rel (%p646) target = $region76
        $region75: #{tpu_custom_call.1} parent=11 // pred_region
          _
        $region76: #{tpu_custom_call.1} parent=11 // pred_fallthru
          _
      $region12: #{tpu_custom_call.1} parent=5 // pred_fallthru
        _
      %p649 = scmp.lt.s32.totalorder %s42, 2
      // Predicated region
      $region77: #{tpu_custom_call.1} parent=5 // pred_check
        %p650 = pneg %p649
      $region78: #{tpu_custom_call.1} parent=5 // pred_check_branch
        %652 = sbr.rel (%p650) target = $region80
      $region79: #{tpu_custom_call.1} parent=5 // pred_region
        // Predicated region
        $region81: #{tpu_custom_call.1} parent=79 // pred_check
          %p653 = pneg %p62
        $region82: #{tpu_custom_call.1} parent=79 // pred_check_branch
          %655 = sbr.rel (%p653) target = $region84
        $region83: #{tpu_custom_call.1} parent=79 // pred_region
          %s656 = sand.u32 %s52, 1
          %s657 = scalar_lea.sflag [#allocation4], %s656
          %s658 = sand.u32 %s52, 1
          %s659 = smul.addr %s658, 16
          %s660 = scalar_lea.vmem [#allocation3], %s659
          %s662 = ssub.s32 256, 256
          %663 = vsyncadd %s657, %s662
          %s664 = smul.addr %s42, 4
          %s665 = smul.addr %s664, 64
          %s666 = scalar_lea.hbm %s0, %s665
          %s668 = sshll.u32 %s660, 4
          %s669 = int_to_ptr.vmem [resolvable:$true] %s668
          %671 = dma.hbm_to_vmem [thread:$0]  %s666, 256, %s669, %s657
        $region84: #{tpu_custom_call.1} parent=79 // pred_fallthru
          _
        // Predicated region
        $region85: #{tpu_custom_call.1} parent=79 // pred_check
          %p672 = pneg %p88
        $region86: #{tpu_custom_call.1} parent=79 // pred_check_branch
          %674 = sbr.rel (%p672) target = $region88
        $region87: #{tpu_custom_call.1} parent=79 // pred_region
          %s675 = sand.u32 %s42, 1
          %s676 = scalar_lea.sflag [#allocation7], %s675
          %s677 = sand.u32 %s78, 1
          %s678 = scalar_lea.vmem [#allocation6], %s677
          %s680 = ssub.s32 16, 16
          %681 = vsyncadd %s676, %s680
          %s682 = smul.addr %s42, 16
          %s683 = scalar_lea.hbm %s1, %s682
          %s685 = sshll.u32 %s678, 4
          %s686 = int_to_ptr.vmem [resolvable:$true] %s685
          %688 = dma.hbm_to_vmem [thread:$0]  %s683, 16, %s686, %s676
        $region88: #{tpu_custom_call.1} parent=79 // pred_fallthru
          _
      $region80: #{tpu_custom_call.1} parent=5 // pred_fallthru
        _
      %p689 = scmp.le.s32.totalorder 1, %s42
      %p690 = scmp.lt.s32.totalorder %s42, 3
      %p691 = pnand %p689, %p690
      %p692 = pneg %p691
      // Predicated region
      $region89: #{tpu_custom_call.1} parent=5 // pred_check
        _
      $region90: #{tpu_custom_call.1} parent=5 // pred_check_branch
        %694 = sbr.rel (%p691) target = $region92
      $region91: #{tpu_custom_call.1} parent=5 // pred_region
        %s695 = ssub.s32 %s42, 1
        %s696 = sand.u32 %s55, 1
        %s697 = scalar_lea.sflag [#allocation4], %s696
        %s698 = sand.u32 %s55, 1
        %s699 = smul.addr %s698, 16
        %s700 = scalar_lea.vmem [#allocation3], %s699
        // Predicated region
        $region93: #{tpu_custom_call.1} parent=91 // pred_check
          %p701 = pneg %p68
        $region94: #{tpu_custom_call.1} parent=91 // pred_check_branch
          %703 = sbr.rel (%p701) target = $region96
        $region95: #{tpu_custom_call.1} parent=91 // pred_region
          %704 = dma.done %s697, 256
        $region96: #{tpu_custom_call.1} parent=91 // pred_fallthru
          _
        %s705 = sand.u32 %s47, 1
        %s706 = scalar_lea.sflag [#allocation7], %s705
        %s707 = sand.u32 %s81, 1
        %s708 = scalar_lea.vmem [#allocation6], %s707
        // Predicated region
        $region97: #{tpu_custom_call.1} parent=91 // pred_check
          %p709 = pneg %p94
        $region98: #{tpu_custom_call.1} parent=91 // pred_check_branch
          %711 = sbr.rel (%p709) target = $region100
        $region99: #{tpu_custom_call.1} parent=91 // pred_region
          %712 = dma.done %s706, 16
        $region100: #{tpu_custom_call.1} parent=91 // pred_fallthru
          _
        // Predicated region
        $region101: #{tpu_custom_call.1} parent=91 // pred_check
          %p713 = pneg %p115
        $region102: #{tpu_custom_call.1} parent=91 // pred_check_branch
          %715 = sbr.rel (%p713) target = $region104
        $region103: #{tpu_custom_call.1} parent=91 // pred_region
          %716 = dma.done [#allocation7], 49152
        $region104: #{tpu_custom_call.1} parent=91 // pred_fallthru
          _
        // Predicated region
        $region105: #{tpu_custom_call.1} parent=91 // pred_check
          %p717 = pneg %p136
        $region106: #{tpu_custom_call.1} parent=91 // pred_check_branch
          %719 = sbr.rel (%p717) target = $region108
        $region107: #{tpu_custom_call.1} parent=91 // pred_region
          %720 = dma.done [#allocation10], 192
        $region108: #{tpu_custom_call.1} parent=91 // pred_fallthru
          _
        // Predicated region
        $region109: #{tpu_custom_call.1} parent=91 // pred_check
          %p721 = pneg %p157
        $region110: #{tpu_custom_call.1} parent=91 // pred_check_branch
          %723 = sbr.rel (%p721) target = $region112
        $region111: #{tpu_custom_call.1} parent=91 // pred_region
          %724 = dma.done [#allocation10], 16384
        $region112: #{tpu_custom_call.1} parent=91 // pred_fallthru
          _
        // Predicated region
        $region113: #{tpu_custom_call.1} parent=91 // pred_check
          %p725 = pneg %p178
        $region114: #{tpu_custom_call.1} parent=91 // pred_check_branch
          %727 = sbr.rel (%p725) target = $region116
        $region115: #{tpu_custom_call.1} parent=91 // pred_region
          %728 = dma.done [#allocation13], 64
        $region116: #{tpu_custom_call.1} parent=91 // pred_fallthru
          _
        // Predicated region
        $region117: #{tpu_custom_call.1} parent=91 // pred_check
          %p729 = pneg %p199
        $region118: #{tpu_custom_call.1} parent=91 // pred_check_branch
          %731 = sbr.rel (%p729) target = $region120
        $region119: #{tpu_custom_call.1} parent=91 // pred_region
          %732 = dma.done [#allocation13], 64
        $region120: #{tpu_custom_call.1} parent=91 // pred_fallthru
          _
        // Predicated region
        $region121: #{tpu_custom_call.1} parent=91 // pred_check
          %p733 = pneg %p220
        $region122: #{tpu_custom_call.1} parent=91 // pred_check_branch
          %735 = sbr.rel (%p733) target = $region124
        $region123: #{tpu_custom_call.1} parent=91 // pred_region
          %736 = dma.done [#allocation16], 64
        $region124: #{tpu_custom_call.1} parent=91 // pred_fallthru
          _
        // Predicated region
        $region125: #{tpu_custom_call.1} parent=91 // pred_check
          %p737 = pneg %p241
        $region126: #{tpu_custom_call.1} parent=91 // pred_check_branch
          %739 = sbr.rel (%p737) target = $region128
        $region127: #{tpu_custom_call.1} parent=91 // pred_region
          %740 = dma.done [#allocation16], 8192
        $region128: #{tpu_custom_call.1} parent=91 // pred_fallthru
          _
        // Predicated region
        $region129: #{tpu_custom_call.1} parent=91 // pred_check
          %p741 = pneg %p262
        $region130: #{tpu_custom_call.1} parent=91 // pred_check_branch
          %743 = sbr.rel (%p741) target = $region132
        $region131: #{tpu_custom_call.1} parent=91 // pred_region
          %744 = dma.done [#allocation19], 32
        $region132: #{tpu_custom_call.1} parent=91 // pred_fallthru
          _
        // Predicated region
        $region133: #{tpu_custom_call.1} parent=91 // pred_check
          %p745 = pneg %p283
        $region134: #{tpu_custom_call.1} parent=91 // pred_check_branch
          %747 = sbr.rel (%p745) target = $region136
        $region135: #{tpu_custom_call.1} parent=91 // pred_region
          %748 = dma.done [#allocation19], 8192
        $region136: #{tpu_custom_call.1} parent=91 // pred_fallthru
          _
        // Predicated region
        $region137: #{tpu_custom_call.1} parent=91 // pred_check
          %p749 = pneg %p304
        $region138: #{tpu_custom_call.1} parent=91 // pred_check_branch
          %751 = sbr.rel (%p749) target = $region140
        $region139: #{tpu_custom_call.1} parent=91 // pred_region
          %752 = dma.done [#allocation22], 64
        $region140: #{tpu_custom_call.1} parent=91 // pred_fallthru
          _
        // Predicated region
        $region141: #{tpu_custom_call.1} parent=91 // pred_check
          %p753 = pneg %p325
        $region142: #{tpu_custom_call.1} parent=91 // pred_check_branch
          %755 = sbr.rel (%p753) target = $region144
        $region143: #{tpu_custom_call.1} parent=91 // pred_region
          %756 = dma.done [#allocation22], 64
        $region144: #{tpu_custom_call.1} parent=91 // pred_fallthru
          _
        // Predicated region
        $region145: #{tpu_custom_call.1} parent=91 // pred_check
          %p757 = pneg %p346
        $region146: #{tpu_custom_call.1} parent=91 // pred_check_branch
          %759 = sbr.rel (%p757) target = $region148
        $region147: #{tpu_custom_call.1} parent=91 // pred_region
          %760 = dma.done [#allocation25], 64
        $region148: #{tpu_custom_call.1} parent=91 // pred_fallthru
          _
        // Predicated region
        $region149: #{tpu_custom_call.1} parent=91 // pred_check
          %p761 = pneg %p367
        $region150: #{tpu_custom_call.1} parent=91 // pred_check_branch
          %763 = sbr.rel (%p761) target = $region152
        $region151: #{tpu_custom_call.1} parent=91 // pred_region
          %764 = dma.done [#allocation25], 4096
        $region152: #{tpu_custom_call.1} parent=91 // pred_fallthru
          _
        // Predicated region
        $region153: #{tpu_custom_call.1} parent=91 // pred_check
          %p765 = pneg %p388
        $region154: #{tpu_custom_call.1} parent=91 // pred_check_branch
          %767 = sbr.rel (%p765) target = $region156
        $region155: #{tpu_custom_call.1} parent=91 // pred_region
          %768 = dma.done [#allocation28], 16
        $region156: #{tpu_custom_call.1} parent=91 // pred_fallthru
          _
        // Predicated region
        $region157: #{tpu_custom_call.1} parent=91 // pred_check
          %p769 = pneg %p409
        $region158: #{tpu_custom_call.1} parent=91 // pred_check_branch
          %771 = sbr.rel (%p769) target = $region160
        $region159: #{tpu_custom_call.1} parent=91 // pred_region
          %772 = dma.done [#allocation28], 16
        $region160: #{tpu_custom_call.1} parent=91 // pred_fallthru
          _
        %s773 = sand.u32 %s55, 1
        %s774 = scalar_lea.sflag [#allocation4], %s773
        %s775 = sand.u32 %s55, 1
        %s776 = smul.addr %s775, 16
        %s777 = scalar_lea.vmem [#allocation3], %s776
        %p778 = pneg %p68
        %p779 = pneg %p65
        %s780 = sand.u32 %s47, 1
        %s781 = scalar_lea.sflag [#allocation7], %s780
        %s782 = sand.u32 %s81, 1
        %s783 = scalar_lea.vmem [#allocation6], %s782
        %p784 = pneg %p94
        %p785 = pneg %p91
        %p786 = pneg %p115
        %p787 = pneg %p112
        %p788 = pneg %p136
        %p789 = pneg %p133
        %p790 = pneg %p157
        %p791 = pneg %p154
        %p792 = pneg %p178
        %p793 = pneg %p175
        %p794 = pneg %p199
        %p795 = pneg %p196
        %p796 = pneg %p220
        %p797 = pneg %p217
        %p798 = pneg %p241
        %p799 = pneg %p238
        %p800 = pneg %p262
        %p801 = pneg %p259
        %p802 = pneg %p283
        %p803 = pneg %p280
        %p804 = pneg %p304
        %p805 = pneg %p301
        %p806 = pneg %p325
        %p807 = pneg %p322
        %p808 = pneg %p346
        %p809 = pneg %p343
        %p810 = pneg %p367
        %p811 = pneg %p364
        %p812 = pneg %p388
        %p813 = pneg %p385
        %p814 = pneg %p409
        %p815 = pneg %p406
        %p816 = pneg %p430
        %p817 = pneg %p427
        %p818 = pneg %p456
        %p819 = pneg %p453
        %s820 = sand.u32 %s443, 1
        %s821 = scalar_lea.sflag [#allocation5], %s820
        %s822 = sand.u32 %s443, 1
        %s823 = scalar_lea.vmem [#allocation30], %s822
        %v825 = vld [vmem:[%s700] sm:$0xff]
        %v826 = vld [vmem:[%s700 + $0x8] sm:$0xff]
        %v827 = vunpack.c.l.bf16 %v825
        %v828 = vunpack.c.h.bf16 %v825
        %v829 = vunpack.c.l.bf16 %v826
        %v830 = vunpack.c.h.bf16 %v826
        %v831 = vld [vmem:[#allocation8] sm:$0xff]
        %v832 = vld [vmem:[#allocation8 + $0x8] sm:$0xff]
        %v833 = vld [vmem:[#allocation8 + $0x10] sm:$0xff]
        %v834 = vld [vmem:[#allocation8 + $0x18] sm:$0xff]
        %v835 = vld [vmem:[#allocation8 + $0x20] sm:$0xff]
        %v836 = vld [vmem:[#allocation8 + $0x28] sm:$0xff]
        %v837 = vld [vmem:[#allocation8 + $0x30] sm:$0xff]
        %v838 = vld [vmem:[#allocation8 + $0x38] sm:$0xff]
        %v839 = vld [vmem:[#allocation8 + $0x40] sm:$0xff]
        %v840 = vld [vmem:[#allocation8 + $0x48] sm:$0xff]
        %v841 = vld [vmem:[#allocation8 + $0x50] sm:$0xff]
        %v842 = vld [vmem:[#allocation8 + $0x58] sm:$0xff]
        %v843 = vld [vmem:[#allocation8 + $0x60] sm:$0xff]
        %v844 = vld [vmem:[#allocation8 + $0x68] sm:$0xff]
        %v845 = vld [vmem:[#allocation8 + $0x70] sm:$0xff]
        %v846 = vld [vmem:[#allocation8 + $0x78] sm:$0xff]
        %v847 = vld [vmem:[#allocation8 + $0x80] sm:$0xff]
        %v848 = vld [vmem:[#allocation8 + $0x88] sm:$0xff]
        %v849 = vld [vmem:[#allocation8 + $0x90] sm:$0xff]
        %v850 = vld [vmem:[#allocation8 + $0x98] sm:$0xff]
        %v851 = vld [vmem:[#allocation8 + $0xa0] sm:$0xff]
        %v852 = vld [vmem:[#allocation8 + $0xa8] sm:$0xff]
        %v853 = vld [vmem:[#allocation8 + $0xb0] sm:$0xff]
        %v854 = vld [vmem:[#allocation8 + $0xb8] sm:$0xff]
        %v855 = vld [vmem:[#allocation8 + $0xc0] sm:$0xff]
        %v856 = vld [vmem:[#allocation8 + $0xc8] sm:$0xff]
        %v857 = vld [vmem:[#allocation8 + $0xd0] sm:$0xff]
        %v858 = vld [vmem:[#allocation8 + $0xd8] sm:$0xff]
        %v859 = vld [vmem:[#allocation8 + $0xe0] sm:$0xff]
        %v860 = vld [vmem:[#allocation8 + $0xe8] sm:$0xff]
        %v861 = vld [vmem:[#allocation8 + $0xf0] sm:$0xff]
        %v862 = vld [vmem:[#allocation8 + $0xf8] sm:$0xff]
        %v863 = vld [vmem:[#allocation8 + $0x100] sm:$0xff]
        %v864 = vld [vmem:[#allocation8 + $0x108] sm:$0xff]
        %v865 = vld [vmem:[#allocation8 + $0x110] sm:$0xff]
        %v866 = vld [vmem:[#allocation8 + $0x118] sm:$0xff]
        %v867 = vld [vmem:[#allocation8 + $0x120] sm:$0xff]
        %v868 = vld [vmem:[#allocation8 + $0x128] sm:$0xff]
        %v869 = vld [vmem:[#allocation8 + $0x130] sm:$0xff]
        %v870 = vld [vmem:[#allocation8 + $0x138] sm:$0xff]
        %v871 = vld [vmem:[#allocation8 + $0x140] sm:$0xff]
        %v872 = vld [vmem:[#allocation8 + $0x148] sm:$0xff]
        %v873 = vld [vmem:[#allocation8 + $0x150] sm:$0xff]
        %v874 = vld [vmem:[#allocation8 + $0x158] sm:$0xff]
        %v875 = vld [vmem:[#allocation8 + $0x160] sm:$0xff]
        %v876 = vld [vmem:[#allocation8 + $0x168] sm:$0xff]
        %v877 = vld [vmem:[#allocation8 + $0x170] sm:$0xff]
        %v878 = vld [vmem:[#allocation8 + $0x178] sm:$0xff]
        %v879 = vld [vmem:[#allocation8 + $0x180] sm:$0xff]
        %v880 = vld [vmem:[#allocation8 + $0x188] sm:$0xff]
        %v881 = vld [vmem:[#allocation8 + $0x190] sm:$0xff]
        %v882 = vld [vmem:[#allocation8 + $0x198] sm:$0xff]
        %v883 = vld [vmem:[#allocation8 + $0x1a0] sm:$0xff]
        %v884 = vld [vmem:[#allocation8 + $0x1a8] sm:$0xff]
        %v885 = vld [vmem:[#allocation8 + $0x1b0] sm:$0xff]
        %v886 = vld [vmem:[#allocation8 + $0x1b8] sm:$0xff]
        %v887 = vld [vmem:[#allocation8 + $0x1c0] sm:$0xff]
        %v888 = vld [vmem:[#allocation8 + $0x1c8] sm:$0xff]
        %v889 = vld [vmem:[#allocation8 + $0x1d0] sm:$0xff]
        %v890 = vld [vmem:[#allocation8 + $0x1d8] sm:$0xff]
        %v891 = vld [vmem:[#allocation8 + $0x1e0] sm:$0xff]
        %v892 = vld [vmem:[#allocation8 + $0x1e8] sm:$0xff]
        %v893 = vld [vmem:[#allocation8 + $0x1f0] sm:$0xff]
        %v894 = vld [vmem:[#allocation8 + $0x1f8] sm:$0xff]
        %v895 = vld [vmem:[#allocation8 + $0x200] sm:$0xff]
        %v896 = vld [vmem:[#allocation8 + $0x208] sm:$0xff]
        %v897 = vld [vmem:[#allocation8 + $0x210] sm:$0xff]
        %v898 = vld [vmem:[#allocation8 + $0x218] sm:$0xff]
        %v899 = vld [vmem:[#allocation8 + $0x220] sm:$0xff]
        %v900 = vld [vmem:[#allocation8 + $0x228] sm:$0xff]
        %v901 = vld [vmem:[#allocation8 + $0x230] sm:$0xff]
        %v902 = vld [vmem:[#allocation8 + $0x238] sm:$0xff]
        %v903 = vld [vmem:[#allocation8 + $0x240] sm:$0xff]
        %v904 = vld [vmem:[#allocation8 + $0x248] sm:$0xff]
        %v905 = vld [vmem:[#allocation8 + $0x250] sm:$0xff]
        %v906 = vld [vmem:[#allocation8 + $0x258] sm:$0xff]
        %v907 = vld [vmem:[#allocation8 + $0x260] sm:$0xff]
        %v908 = vld [vmem:[#allocation8 + $0x268] sm:$0xff]
        %v909 = vld [vmem:[#allocation8 + $0x270] sm:$0xff]
        %v910 = vld [vmem:[#allocation8 + $0x278] sm:$0xff]
        %v911 = vld [vmem:[#allocation8 + $0x280] sm:$0xff]
        %v912 = vld [vmem:[#allocation8 + $0x288] sm:$0xff]
        %v913 = vld [vmem:[#allocation8 + $0x290] sm:$0xff]
        %v914 = vld [vmem:[#allocation8 + $0x298] sm:$0xff]
        %v915 = vld [vmem:[#allocation8 + $0x2a0] sm:$0xff]
        %v916 = vld [vmem:[#allocation8 + $0x2a8] sm:$0xff]
        %v917 = vld [vmem:[#allocation8 + $0x2b0] sm:$0xff]
        %v918 = vld [vmem:[#allocation8 + $0x2b8] sm:$0xff]
        %v919 = vld [vmem:[#allocation8 + $0x2c0] sm:$0xff]
        %v920 = vld [vmem:[#allocation8 + $0x2c8] sm:$0xff]
        %v921 = vld [vmem:[#allocation8 + $0x2d0] sm:$0xff]
        %v922 = vld [vmem:[#allocation8 + $0x2d8] sm:$0xff]
        %v923 = vld [vmem:[#allocation8 + $0x2e0] sm:$0xff]
        %v924 = vld [vmem:[#allocation8 + $0x2e8] sm:$0xff]
        %v925 = vld [vmem:[#allocation8 + $0x2f0] sm:$0xff]
        %v926 = vld [vmem:[#allocation8 + $0x2f8] sm:$0xff]
        %v927 = vld [vmem:[#allocation8 + $0x300] sm:$0xff]
        %v928 = vld [vmem:[#allocation8 + $0x308] sm:$0xff]
        %v929 = vld [vmem:[#allocation8 + $0x310] sm:$0xff]
        %v930 = vld [vmem:[#allocation8 + $0x318] sm:$0xff]
        %v931 = vld [vmem:[#allocation8 + $0x320] sm:$0xff]
        %v932 = vld [vmem:[#allocation8 + $0x328] sm:$0xff]
        %v933 = vld [vmem:[#allocation8 + $0x330] sm:$0xff]
        %v934 = vld [vmem:[#allocation8 + $0x338] sm:$0xff]
        %v935 = vld [vmem:[#allocation8 + $0x340] sm:$0xff]
        %v936 = vld [vmem:[#allocation8 + $0x348] sm:$0xff]
        %v937 = vld [vmem:[#allocation8 + $0x350] sm:$0xff]
        %v938 = vld [vmem:[#allocation8 + $0x358] sm:$0xff]
        %v939 = vld [vmem:[#allocation8 + $0x360] sm:$0xff]
        %v940 = vld [vmem:[#allocation8 + $0x368] sm:$0xff]
        %v941 = vld [vmem:[#allocation8 + $0x370] sm:$0xff]
        %v942 = vld [vmem:[#allocation8 + $0x378] sm:$0xff]
        %v943 = vld [vmem:[#allocation8 + $0x380] sm:$0xff]
        %v944 = vld [vmem:[#allocation8 + $0x388] sm:$0xff]
        %v945 = vld [vmem:[#allocation8 + $0x390] sm:$0xff]
        %v946 = vld [vmem:[#allocation8 + $0x398] sm:$0xff]
        %v947 = vld [vmem:[#allocation8 + $0x3a0] sm:$0xff]
        %v948 = vld [vmem:[#allocation8 + $0x3a8] sm:$0xff]
        %v949 = vld [vmem:[#allocation8 + $0x3b0] sm:$0xff]
        %v950 = vld [vmem:[#allocation8 + $0x3b8] sm:$0xff]
        %v951 = vld [vmem:[#allocation8 + $0x3c0] sm:$0xff]
        %v952 = vld [vmem:[#allocation8 + $0x3c8] sm:$0xff]
        %v953 = vld [vmem:[#allocation8 + $0x3d0] sm:$0xff]
        %v954 = vld [vmem:[#allocation8 + $0x3d8] sm:$0xff]
        %v955 = vld [vmem:[#allocation8 + $0x3e0] sm:$0xff]
        %v956 = vld [vmem:[#allocation8 + $0x3e8] sm:$0xff]
        %v957 = vld [vmem:[#allocation8 + $0x3f0] sm:$0xff]
        %v958 = vld [vmem:[#allocation8 + $0x3f8] sm:$0xff]
        %v959 = vld [vmem:[#allocation8 + $0x400] sm:$0xff]
        %v960 = vld [vmem:[#allocation8 + $0x408] sm:$0xff]
        %v961 = vld [vmem:[#allocation8 + $0x410] sm:$0xff]
        %v962 = vld [vmem:[#allocation8 + $0x418] sm:$0xff]
        %v963 = vld [vmem:[#allocation8 + $0x420] sm:$0xff]
        %v964 = vld [vmem:[#allocation8 + $0x428] sm:$0xff]
        %v965 = vld [vmem:[#allocation8 + $0x430] sm:$0xff]
        %v966 = vld [vmem:[#allocation8 + $0x438] sm:$0xff]
        %v967 = vld [vmem:[#allocation8 + $0x440] sm:$0xff]
        %v968 = vld [vmem:[#allocation8 + $0x448] sm:$0xff]
        %v969 = vld [vmem:[#allocation8 + $0x450] sm:$0xff]
        %v970 = vld [vmem:[#allocation8 + $0x458] sm:$0xff]
        %v971 = vld [vmem:[#allocation8 + $0x460] sm:$0xff]
        %v972 = vld [vmem:[#allocation8 + $0x468] sm:$0xff]
        %v973 = vld [vmem:[#allocation8 + $0x470] sm:$0xff]
        %v974 = vld [vmem:[#allocation8 + $0x478] sm:$0xff]
        %v975 = vld [vmem:[#allocation8 + $0x480] sm:$0xff]
        %v976 = vld [vmem:[#allocation8 + $0x488] sm:$0xff]
        %v977 = vld [vmem:[#allocation8 + $0x490] sm:$0xff]
        %v978 = vld [vmem:[#allocation8 + $0x498] sm:$0xff]
        %v979 = vld [vmem:[#allocation8 + $0x4a0] sm:$0xff]
        %v980 = vld [vmem:[#allocation8 + $0x4a8] sm:$0xff]
        %v981 = vld [vmem:[#allocation8 + $0x4b0] sm:$0xff]
        %v982 = vld [vmem:[#allocation8 + $0x4b8] sm:$0xff]
        %v983 = vld [vmem:[#allocation8 + $0x4c0] sm:$0xff]
        %v984 = vld [vmem:[#allocation8 + $0x4c8] sm:$0xff]
        %v985 = vld [vmem:[#allocation8 + $0x4d0] sm:$0xff]
        %v986 = vld [vmem:[#allocation8 + $0x4d8] sm:$0xff]
        %v987 = vld [vmem:[#allocation8 + $0x4e0] sm:$0xff]
        %v988 = vld [vmem:[#allocation8 + $0x4e8] sm:$0xff]
        %v989 = vld [vmem:[#allocation8 + $0x4f0] sm:$0xff]
        %v990 = vld [vmem:[#allocation8 + $0x4f8] sm:$0xff]
        %v991 = vld [vmem:[#allocation8 + $0x500] sm:$0xff]
        %v992 = vld [vmem:[#allocation8 + $0x508] sm:$0xff]
        %v993 = vld [vmem:[#allocation8 + $0x510] sm:$0xff]
        %v994 = vld [vmem:[#allocation8 + $0x518] sm:$0xff]
        %v995 = vld [vmem:[#allocation8 + $0x520] sm:$0xff]
        %v996 = vld [vmem:[#allocation8 + $0x528] sm:$0xff]
        %v997 = vld [vmem:[#allocation8 + $0x530] sm:$0xff]
        %v998 = vld [vmem:[#allocation8 + $0x538] sm:$0xff]
        %v999 = vld [vmem:[#allocation8 + $0x540] sm:$0xff]
        %v1000 = vld [vmem:[#allocation8 + $0x548] sm:$0xff]
        %v1001 = vld [vmem:[#allocation8 + $0x550] sm:$0xff]
        %v1002 = vld [vmem:[#allocation8 + $0x558] sm:$0xff]
        %v1003 = vld [vmem:[#allocation8 + $0x560] sm:$0xff]
        %v1004 = vld [vmem:[#allocation8 + $0x568] sm:$0xff]
        %v1005 = vld [vmem:[#allocation8 + $0x570] sm:$0xff]
        %v1006 = vld [vmem:[#allocation8 + $0x578] sm:$0xff]
        %v1007 = vld [vmem:[#allocation8 + $0x580] sm:$0xff]
        %v1008 = vld [vmem:[#allocation8 + $0x588] sm:$0xff]
        %v1009 = vld [vmem:[#allocation8 + $0x590] sm:$0xff]
        %v1010 = vld [vmem:[#allocation8 + $0x598] sm:$0xff]
        %v1011 = vld [vmem:[#allocation8 + $0x5a0] sm:$0xff]
        %v1012 = vld [vmem:[#allocation8 + $0x5a8] sm:$0xff]
        %v1013 = vld [vmem:[#allocation8 + $0x5b0] sm:$0xff]
        %v1014 = vld [vmem:[#allocation8 + $0x5b8] sm:$0xff]
        %v1015 = vld [vmem:[#allocation8 + $0x5c0] sm:$0xff]
        %v1016 = vld [vmem:[#allocation8 + $0x5c8] sm:$0xff]
        %v1017 = vld [vmem:[#allocation8 + $0x5d0] sm:$0xff]
        %v1018 = vld [vmem:[#allocation8 + $0x5d8] sm:$0xff]
        %v1019 = vld [vmem:[#allocation8 + $0x5e0] sm:$0xff]
        %v1020 = vld [vmem:[#allocation8 + $0x5e8] sm:$0xff]
        %v1021 = vld [vmem:[#allocation8 + $0x5f0] sm:$0xff]
        %v1022 = vld [vmem:[#allocation8 + $0x5f8] sm:$0xff]
        %v1023 = vld [vmem:[#allocation8 + $0x600] sm:$0xff]
        %v1024 = vld [vmem:[#allocation8 + $0x608] sm:$0xff]
        %v1025 = vld [vmem:[#allocation8 + $0x610] sm:$0xff]
        %v1026 = vld [vmem:[#allocation8 + $0x618] sm:$0xff]
        %v1027 = vld [vmem:[#allocation8 + $0x620] sm:$0xff]
        %v1028 = vld [vmem:[#allocation8 + $0x628] sm:$0xff]
        %v1029 = vld [vmem:[#allocation8 + $0x630] sm:$0xff]
        %v1030 = vld [vmem:[#allocation8 + $0x638] sm:$0xff]
        %v1031 = vld [vmem:[#allocation8 + $0x640] sm:$0xff]
        %v1032 = vld [vmem:[#allocation8 + $0x648] sm:$0xff]
        %v1033 = vld [vmem:[#allocation8 + $0x650] sm:$0xff]
        %v1034 = vld [vmem:[#allocation8 + $0x658] sm:$0xff]
        %v1035 = vld [vmem:[#allocation8 + $0x660] sm:$0xff]
        %v1036 = vld [vmem:[#allocation8 + $0x668] sm:$0xff]
        %v1037 = vld [vmem:[#allocation8 + $0x670] sm:$0xff]
        %v1038 = vld [vmem:[#allocation8 + $0x678] sm:$0xff]
        %v1039 = vld [vmem:[#allocation8 + $0x680] sm:$0xff]
        %v1040 = vld [vmem:[#allocation8 + $0x688] sm:$0xff]
        %v1041 = vld [vmem:[#allocation8 + $0x690] sm:$0xff]
        %v1042 = vld [vmem:[#allocation8 + $0x698] sm:$0xff]
        %v1043 = vld [vmem:[#allocation8 + $0x6a0] sm:$0xff]
        %v1044 = vld [vmem:[#allocation8 + $0x6a8] sm:$0xff]
        %v1045 = vld [vmem:[#allocation8 + $0x6b0] sm:$0xff]
        %v1046 = vld [vmem:[#allocation8 + $0x6b8] sm:$0xff]
        %v1047 = vld [vmem:[#allocation8 + $0x6c0] sm:$0xff]
        %v1048 = vld [vmem:[#allocation8 + $0x6c8] sm:$0xff]
        %v1049 = vld [vmem:[#allocation8 + $0x6d0] sm:$0xff]
        %v1050 = vld [vmem:[#allocation8 + $0x6d8] sm:$0xff]
        %v1051 = vld [vmem:[#allocation8 + $0x6e0] sm:$0xff]
        %v1052 = vld [vmem:[#allocation8 + $0x6e8] sm:$0xff]
        %v1053 = vld [vmem:[#allocation8 + $0x6f0] sm:$0xff]
        %v1054 = vld [vmem:[#allocation8 + $0x6f8] sm:$0xff]
        %v1055 = vld [vmem:[#allocation8 + $0x700] sm:$0xff]
        %v1056 = vld [vmem:[#allocation8 + $0x708] sm:$0xff]
        %v1057 = vld [vmem:[#allocation8 + $0x710] sm:$0xff]
        %v1058 = vld [vmem:[#allocation8 + $0x718] sm:$0xff]
        %v1059 = vld [vmem:[#allocation8 + $0x720] sm:$0xff]
        %v1060 = vld [vmem:[#allocation8 + $0x728] sm:$0xff]
        %v1061 = vld [vmem:[#allocation8 + $0x730] sm:$0xff]
        %v1062 = vld [vmem:[#allocation8 + $0x738] sm:$0xff]
        %v1063 = vld [vmem:[#allocation8 + $0x740] sm:$0xff]
        %v1064 = vld [vmem:[#allocation8 + $0x748] sm:$0xff]
        %v1065 = vld [vmem:[#allocation8 + $0x750] sm:$0xff]
        %v1066 = vld [vmem:[#allocation8 + $0x758] sm:$0xff]
        %v1067 = vld [vmem:[#allocation8 + $0x760] sm:$0xff]
        %v1068 = vld [vmem:[#allocation8 + $0x768] sm:$0xff]
        %v1069 = vld [vmem:[#allocation8 + $0x770] sm:$0xff]
        %v1070 = vld [vmem:[#allocation8 + $0x778] sm:$0xff]
        %v1071 = vld [vmem:[#allocation8 + $0x780] sm:$0xff]
        %v1072 = vld [vmem:[#allocation8 + $0x788] sm:$0xff]
        %v1073 = vld [vmem:[#allocation8 + $0x790] sm:$0xff]
        %v1074 = vld [vmem:[#allocation8 + $0x798] sm:$0xff]
        %v1075 = vld [vmem:[#allocation8 + $0x7a0] sm:$0xff]
        %v1076 = vld [vmem:[#allocation8 + $0x7a8] sm:$0xff]
        %v1077 = vld [vmem:[#allocation8 + $0x7b0] sm:$0xff]
        %v1078 = vld [vmem:[#allocation8 + $0x7b8] sm:$0xff]
        %v1079 = vld [vmem:[#allocation8 + $0x7c0] sm:$0xff]
        %v1080 = vld [vmem:[#allocation8 + $0x7c8] sm:$0xff]
        %v1081 = vld [vmem:[#allocation8 + $0x7d0] sm:$0xff]
        %v1082 = vld [vmem:[#allocation8 + $0x7d8] sm:$0xff]
        %v1083 = vld [vmem:[#allocation8 + $0x7e0] sm:$0xff]
        %v1084 = vld [vmem:[#allocation8 + $0x7e8] sm:$0xff]
        %v1085 = vld [vmem:[#allocation8 + $0x7f0] sm:$0xff]
        %v1086 = vld [vmem:[#allocation8 + $0x7f8] sm:$0xff]
        %v1087 = vld [vmem:[#allocation8 + $0x800] sm:$0xff]
        %v1088 = vld [vmem:[#allocation8 + $0x808] sm:$0xff]
        %v1089 = vld [vmem:[#allocation8 + $0x810] sm:$0xff]
        %v1090 = vld [vmem:[#allocation8 + $0x818] sm:$0xff]
        %v1091 = vld [vmem:[#allocation8 + $0x820] sm:$0xff]
        %v1092 = vld [vmem:[#allocation8 + $0x828] sm:$0xff]
        %v1093 = vld [vmem:[#allocation8 + $0x830] sm:$0xff]
        %v1094 = vld [vmem:[#allocation8 + $0x838] sm:$0xff]
        %v1095 = vld [vmem:[#allocation8 + $0x840] sm:$0xff]
        %v1096 = vld [vmem:[#allocation8 + $0x848] sm:$0xff]
        %v1097 = vld [vmem:[#allocation8 + $0x850] sm:$0xff]
        %v1098 = vld [vmem:[#allocation8 + $0x858] sm:$0xff]
        %v1099 = vld [vmem:[#allocation8 + $0x860] sm:$0xff]
        %v1100 = vld [vmem:[#allocation8 + $0x868] sm:$0xff]
        %v1101 = vld [vmem:[#allocation8 + $0x870] sm:$0xff]
        %v1102 = vld [vmem:[#allocation8 + $0x878] sm:$0xff]
        %v1103 = vld [vmem:[#allocation8 + $0x880] sm:$0xff]
        %v1104 = vld [vmem:[#allocation8 + $0x888] sm:$0xff]
        %v1105 = vld [vmem:[#allocation8 + $0x890] sm:$0xff]
        %v1106 = vld [vmem:[#allocation8 + $0x898] sm:$0xff]
        %v1107 = vld [vmem:[#allocation8 + $0x8a0] sm:$0xff]
        %v1108 = vld [vmem:[#allocation8 + $0x8a8] sm:$0xff]
        %v1109 = vld [vmem:[#allocation8 + $0x8b0] sm:$0xff]
        %v1110 = vld [vmem:[#allocation8 + $0x8b8] sm:$0xff]
        %v1111 = vld [vmem:[#allocation8 + $0x8c0] sm:$0xff]
        %v1112 = vld [vmem:[#allocation8 + $0x8c8] sm:$0xff]
        %v1113 = vld [vmem:[#allocation8 + $0x8d0] sm:$0xff]
        %v1114 = vld [vmem:[#allocation8 + $0x8d8] sm:$0xff]
        %v1115 = vld [vmem:[#allocation8 + $0x8e0] sm:$0xff]
        %v1116 = vld [vmem:[#allocation8 + $0x8e8] sm:$0xff]
        %v1117 = vld [vmem:[#allocation8 + $0x8f0] sm:$0xff]
        %v1118 = vld [vmem:[#allocation8 + $0x8f8] sm:$0xff]
        %v1119 = vld [vmem:[#allocation8 + $0x900] sm:$0xff]
        %v1120 = vld [vmem:[#allocation8 + $0x908] sm:$0xff]
        %v1121 = vld [vmem:[#allocation8 + $0x910] sm:$0xff]
        %v1122 = vld [vmem:[#allocation8 + $0x918] sm:$0xff]
        %v1123 = vld [vmem:[#allocation8 + $0x920] sm:$0xff]
        %v1124 = vld [vmem:[#allocation8 + $0x928] sm:$0xff]
        %v1125 = vld [vmem:[#allocation8 + $0x930] sm:$0xff]
        %v1126 = vld [vmem:[#allocation8 + $0x938] sm:$0xff]
        %v1127 = vld [vmem:[#allocation8 + $0x940] sm:$0xff]
        %v1128 = vld [vmem:[#allocation8 + $0x948] sm:$0xff]
        %v1129 = vld [vmem:[#allocation8 + $0x950] sm:$0xff]
        %v1130 = vld [vmem:[#allocation8 + $0x958] sm:$0xff]
        %v1131 = vld [vmem:[#allocation8 + $0x960] sm:$0xff]
        %v1132 = vld [vmem:[#allocation8 + $0x968] sm:$0xff]
        %v1133 = vld [vmem:[#allocation8 + $0x970] sm:$0xff]
        %v1134 = vld [vmem:[#allocation8 + $0x978] sm:$0xff]
        %v1135 = vld [vmem:[#allocation8 + $0x980] sm:$0xff]
        %v1136 = vld [vmem:[#allocation8 + $0x988] sm:$0xff]
        %v1137 = vld [vmem:[#allocation8 + $0x990] sm:$0xff]
        %v1138 = vld [vmem:[#allocation8 + $0x998] sm:$0xff]
        %v1139 = vld [vmem:[#allocation8 + $0x9a0] sm:$0xff]
        %v1140 = vld [vmem:[#allocation8 + $0x9a8] sm:$0xff]
        %v1141 = vld [vmem:[#allocation8 + $0x9b0] sm:$0xff]
        %v1142 = vld [vmem:[#allocation8 + $0x9b8] sm:$0xff]
        %v1143 = vld [vmem:[#allocation8 + $0x9c0] sm:$0xff]
        %v1144 = vld [vmem:[#allocation8 + $0x9c8] sm:$0xff]
        %v1145 = vld [vmem:[#allocation8 + $0x9d0] sm:$0xff]
        %v1146 = vld [vmem:[#allocation8 + $0x9d8] sm:$0xff]
        %v1147 = vld [vmem:[#allocation8 + $0x9e0] sm:$0xff]
        %v1148 = vld [vmem:[#allocation8 + $0x9e8] sm:$0xff]
        %v1149 = vld [vmem:[#allocation8 + $0x9f0] sm:$0xff]
        %v1150 = vld [vmem:[#allocation8 + $0x9f8] sm:$0xff]
        %v1151 = vld [vmem:[#allocation8 + $0xa00] sm:$0xff]
        %v1152 = vld [vmem:[#allocation8 + $0xa08] sm:$0xff]
        %v1153 = vld [vmem:[#allocation8 + $0xa10] sm:$0xff]
        %v1154 = vld [vmem:[#allocation8 + $0xa18] sm:$0xff]
        %v1155 = vld [vmem:[#allocation8 + $0xa20] sm:$0xff]
        %v1156 = vld [vmem:[#allocation8 + $0xa28] sm:$0xff]
        %v1157 = vld [vmem:[#allocation8 + $0xa30] sm:$0xff]
        %v1158 = vld [vmem:[#allocation8 + $0xa38] sm:$0xff]
        %v1159 = vld [vmem:[#allocation8 + $0xa40] sm:$0xff]
        %v1160 = vld [vmem:[#allocation8 + $0xa48] sm:$0xff]
        %v1161 = vld [vmem:[#allocation8 + $0xa50] sm:$0xff]
        %v1162 = vld [vmem:[#allocation8 + $0xa58] sm:$0xff]
        %v1163 = vld [vmem:[#allocation8 + $0xa60] sm:$0xff]
        %v1164 = vld [vmem:[#allocation8 + $0xa68] sm:$0xff]
        %v1165 = vld [vmem:[#allocation8 + $0xa70] sm:$0xff]
        %v1166 = vld [vmem:[#allocation8 + $0xa78] sm:$0xff]
        %v1167 = vld [vmem:[#allocation8 + $0xa80] sm:$0xff]
        %v1168 = vld [vmem:[#allocation8 + $0xa88] sm:$0xff]
        %v1169 = vld [vmem:[#allocation8 + $0xa90] sm:$0xff]
        %v1170 = vld [vmem:[#allocation8 + $0xa98] sm:$0xff]
        %v1171 = vld [vmem:[#allocation8 + $0xaa0] sm:$0xff]
        %v1172 = vld [vmem:[#allocation8 + $0xaa8] sm:$0xff]
        %v1173 = vld [vmem:[#allocation8 + $0xab0] sm:$0xff]
        %v1174 = vld [vmem:[#allocation8 + $0xab8] sm:$0xff]
        %v1175 = vld [vmem:[#allocation8 + $0xac0] sm:$0xff]
        %v1176 = vld [vmem:[#allocation8 + $0xac8] sm:$0xff]
        %v1177 = vld [vmem:[#allocation8 + $0xad0] sm:$0xff]
        %v1178 = vld [vmem:[#allocation8 + $0xad8] sm:$0xff]
        %v1179 = vld [vmem:[#allocation8 + $0xae0] sm:$0xff]
        %v1180 = vld [vmem:[#allocation8 + $0xae8] sm:$0xff]
        %v1181 = vld [vmem:[#allocation8 + $0xaf0] sm:$0xff]
        %v1182 = vld [vmem:[#allocation8 + $0xaf8] sm:$0xff]
        %v1183 = vld [vmem:[#allocation8 + $0xb00] sm:$0xff]
        %v1184 = vld [vmem:[#allocation8 + $0xb08] sm:$0xff]
        %v1185 = vld [vmem:[#allocation8 + $0xb10] sm:$0xff]
        %v1186 = vld [vmem:[#allocation8 + $0xb18] sm:$0xff]
        %v1187 = vld [vmem:[#allocation8 + $0xb20] sm:$0xff]
        %v1188 = vld [vmem:[#allocation8 + $0xb28] sm:$0xff]
        %v1189 = vld [vmem:[#allocation8 + $0xb30] sm:$0xff]
        %v1190 = vld [vmem:[#allocation8 + $0xb38] sm:$0xff]
        %v1191 = vld [vmem:[#allocation8 + $0xb40] sm:$0xff]
        %v1192 = vld [vmem:[#allocation8 + $0xb48] sm:$0xff]
        %v1193 = vld [vmem:[#allocation8 + $0xb50] sm:$0xff]
        %v1194 = vld [vmem:[#allocation8 + $0xb58] sm:$0xff]
        %v1195 = vld [vmem:[#allocation8 + $0xb60] sm:$0xff]
        %v1196 = vld [vmem:[#allocation8 + $0xb68] sm:$0xff]
        %v1197 = vld [vmem:[#allocation8 + $0xb70] sm:$0xff]
        %v1198 = vld [vmem:[#allocation8 + $0xb78] sm:$0xff]
        %v1199 = vld [vmem:[#allocation8 + $0xb80] sm:$0xff]
        %v1200 = vld [vmem:[#allocation8 + $0xb88] sm:$0xff]
        %v1201 = vld [vmem:[#allocation8 + $0xb90] sm:$0xff]
        %v1202 = vld [vmem:[#allocation8 + $0xb98] sm:$0xff]
        %v1203 = vld [vmem:[#allocation8 + $0xba0] sm:$0xff]
        %v1204 = vld [vmem:[#allocation8 + $0xba8] sm:$0xff]
        %v1205 = vld [vmem:[#allocation8 + $0xbb0] sm:$0xff]
        %v1206 = vld [vmem:[#allocation8 + $0xbb8] sm:$0xff]
        %v1207 = vld [vmem:[#allocation8 + $0xbc0] sm:$0xff]
        %v1208 = vld [vmem:[#allocation8 + $0xbc8] sm:$0xff]
        %v1209 = vld [vmem:[#allocation8 + $0xbd0] sm:$0xff]
        %v1210 = vld [vmem:[#allocation8 + $0xbd8] sm:$0xff]
        %v1211 = vld [vmem:[#allocation8 + $0xbe0] sm:$0xff]
        %v1212 = vld [vmem:[#allocation8 + $0xbe8] sm:$0xff]
        %v1213 = vld [vmem:[#allocation8 + $0xbf0] sm:$0xff]
        %v1214 = vld [vmem:[#allocation8 + $0xbf8] sm:$0xff]
        %v1215 = vld [vmem:[#allocation9] sm:$0xff]
        %v1216 = vld [vmem:[#allocation9 + $0x8] sm:$0xf]
        %v1219 = vlaneseq
        %v1220 = vshrl.u32 %v1219, 7
        %v1221 = vsub.s32 0, %v1220
        %v1222 = vrot.slane %v1215, %v1221
        %v1223 = vlaneseq
        %v1224 = vshrl.u32 %v1223, 7
        %v1225 = vsub.s32 1, %v1224
        %v1226 = vrot.slane %v1215, %v1225
        %v1227 = vlaneseq
        %v1228 = vshrl.u32 %v1227, 7
        %v1229 = vsub.s32 2, %v1228
        %v1230 = vrot.slane %v1215, %v1229
        %v1231 = vlaneseq
        %v1232 = vshrl.u32 %v1231, 7
        %v1233 = vsub.s32 3, %v1232
        %v1234 = vrot.slane %v1215, %v1233
        %v1235 = vlaneseq
        %v1236 = vshrl.u32 %v1235, 7
        %v1237 = vsub.s32 4, %v1236
        %v1238 = vrot.slane %v1215, %v1237
        %v1239 = vlaneseq
        %v1240 = vshrl.u32 %v1239, 7
        %v1241 = vsub.s32 5, %v1240
        %v1242 = vrot.slane %v1215, %v1241
        %v1243 = vlaneseq
        %v1244 = vshrl.u32 %v1243, 7
        %v1245 = vsub.s32 6, %v1244
        %v1246 = vrot.slane %v1215, %v1245
        %v1247 = vlaneseq
        %v1248 = vshrl.u32 %v1247, 7
        %v1249 = vsub.s32 7, %v1248
        %v1250 = vrot.slane %v1215, %v1249
        %v1251 = vlaneseq
        %v1252 = vshrl.u32 %v1251, 7
        %v1253 = vsub.s32 0, %v1252
        %v1254 = vrot.slane %v1216, %v1253
        %v1255 = vlaneseq
        %v1256 = vshrl.u32 %v1255, 7
        %v1257 = vsub.s32 1, %v1256
        %v1258 = vrot.slane %v1216, %v1257
        %v1259 = vlaneseq
        %v1260 = vshrl.u32 %v1259, 7
        %v1261 = vsub.s32 2, %v1260
        %v1262 = vrot.slane %v1216, %v1261
        %v1263 = vlaneseq
        %v1264 = vshrl.u32 %v1263, 7
        %v1265 = vsub.s32 3, %v1264
        %v1266 = vrot.slane %v1216, %v1265
        %v1281 = vunpack.c.l.b16 %v825
        %v1282 = vunpack.c.h.b16 %v825
        %v1283 = vunpack.c.l.b16 %v826
        %v1284 = vunpack.c.h.b16 %v826
        %v1285 = vpack.c.b16 %v1281, %v1281
        %v1286 = vpack.c.b16 %v1282, %v1282
        %v1287 = vpack.c.b16 %v1283, %v1283
        %v1288 = vpack.c.b16 %v1284, %v1284
        %v1677 = vunpack.c.l.b16 %v831
        %v1678 = vunpack.c.h.b16 %v831
        %v1679 = vunpack.c.l.b16 %v832
        %v1680 = vunpack.c.h.b16 %v832
        %v1681 = vunpack.c.l.b16 %v833
        %v1682 = vunpack.c.h.b16 %v833
        %v1683 = vunpack.c.l.b16 %v834
        %v1684 = vunpack.c.h.b16 %v834
        %v1685 = vunpack.c.l.b16 %v835
        %v1686 = vunpack.c.h.b16 %v835
        %v1687 = vunpack.c.l.b16 %v836
        %v1688 = vunpack.c.h.b16 %v836
        %v1689 = vunpack.c.l.b16 %v837
        %v1690 = vunpack.c.h.b16 %v837
        %v1691 = vunpack.c.l.b16 %v838
        %v1692 = vunpack.c.h.b16 %v838
        %v1693 = vunpack.c.l.b16 %v839
        %v1694 = vunpack.c.h.b16 %v839
        %v1695 = vunpack.c.l.b16 %v840
        %v1696 = vunpack.c.h.b16 %v840
        %v1697 = vunpack.c.l.b16 %v841
        %v1698 = vunpack.c.h.b16 %v841
        %v1699 = vunpack.c.l.b16 %v842
        %v1700 = vunpack.c.h.b16 %v842
        %v1701 = vunpack.c.l.b16 %v843
        %v1702 = vunpack.c.h.b16 %v843
        %v1703 = vunpack.c.l.b16 %v844
        %v1704 = vunpack.c.h.b16 %v844
        %v1705 = vunpack.c.l.b16 %v845
        %v1706 = vunpack.c.h.b16 %v845
        %v1707 = vunpack.c.l.b16 %v846
        %v1708 = vunpack.c.h.b16 %v846
        %v1709 = vunpack.c.l.b16 %v847
        %v1710 = vunpack.c.h.b16 %v847
        %v1711 = vunpack.c.l.b16 %v848
        %v1712 = vunpack.c.h.b16 %v848
        %v1713 = vunpack.c.l.b16 %v849
        %v1714 = vunpack.c.h.b16 %v849
        %v1715 = vunpack.c.l.b16 %v850
        %v1716 = vunpack.c.h.b16 %v850
        %v1717 = vunpack.c.l.b16 %v851
        %v1718 = vunpack.c.h.b16 %v851
        %v1719 = vunpack.c.l.b16 %v852
        %v1720 = vunpack.c.h.b16 %v852
        %v1721 = vunpack.c.l.b16 %v853
        %v1722 = vunpack.c.h.b16 %v853
        %v1723 = vunpack.c.l.b16 %v854
        %v1724 = vunpack.c.h.b16 %v854
        %v1725 = vunpack.c.l.b16 %v855
        %v1726 = vunpack.c.h.b16 %v855
        %v1727 = vunpack.c.l.b16 %v856
        %v1728 = vunpack.c.h.b16 %v856
        %v1729 = vunpack.c.l.b16 %v857
        %v1730 = vunpack.c.h.b16 %v857
        %v1731 = vunpack.c.l.b16 %v858
        %v1732 = vunpack.c.h.b16 %v858
        %v1733 = vunpack.c.l.b16 %v859
        %v1734 = vunpack.c.h.b16 %v859
        %v1735 = vunpack.c.l.b16 %v860
        %v1736 = vunpack.c.h.b16 %v860
        %v1737 = vunpack.c.l.b16 %v861
        %v1738 = vunpack.c.h.b16 %v861
        %v1739 = vunpack.c.l.b16 %v862
        %v1740 = vunpack.c.h.b16 %v862
        %v1741 = vunpack.c.l.b16 %v863
        %v1742 = vunpack.c.h.b16 %v863
        %v1743 = vunpack.c.l.b16 %v864
        %v1744 = vunpack.c.h.b16 %v864
        %v1745 = vunpack.c.l.b16 %v865
        %v1746 = vunpack.c.h.b16 %v865
        %v1747 = vunpack.c.l.b16 %v866
        %v1748 = vunpack.c.h.b16 %v866
        %v1749 = vunpack.c.l.b16 %v867
        %v1750 = vunpack.c.h.b16 %v867
        %v1751 = vunpack.c.l.b16 %v868
        %v1752 = vunpack.c.h.b16 %v868
        %v1753 = vunpack.c.l.b16 %v869
        %v1754 = vunpack.c.h.b16 %v869
        %v1755 = vunpack.c.l.b16 %v870
        %v1756 = vunpack.c.h.b16 %v870
        %v1757 = vunpack.c.l.b16 %v871
        %v1758 = vunpack.c.h.b16 %v871
        %v1759 = vunpack.c.l.b16 %v872
        %v1760 = vunpack.c.h.b16 %v872
        %v1761 = vunpack.c.l.b16 %v873
        %v1762 = vunpack.c.h.b16 %v873
        %v1763 = vunpack.c.l.b16 %v874
        %v1764 = vunpack.c.h.b16 %v874
        %v1765 = vunpack.c.l.b16 %v875
        %v1766 = vunpack.c.h.b16 %v875
        %v1767 = vunpack.c.l.b16 %v876
        %v1768 = vunpack.c.h.b16 %v876
        %v1769 = vunpack.c.l.b16 %v877
        %v1770 = vunpack.c.h.b16 %v877
        %v1771 = vunpack.c.l.b16 %v878
        %v1772 = vunpack.c.h.b16 %v878
        %v1773 = vunpack.c.l.b16 %v879
        %v1774 = vunpack.c.h.b16 %v879
        %v1775 = vunpack.c.l.b16 %v880
        %v1776 = vunpack.c.h.b16 %v880
        %v1777 = vunpack.c.l.b16 %v881
        %v1778 = vunpack.c.h.b16 %v881
        %v1779 = vunpack.c.l.b16 %v882
        %v1780 = vunpack.c.h.b16 %v882
        %v1781 = vunpack.c.l.b16 %v883
        %v1782 = vunpack.c.h.b16 %v883
        %v1783 = vunpack.c.l.b16 %v884
        %v1784 = vunpack.c.h.b16 %v884
        %v1785 = vunpack.c.l.b16 %v885
        %v1786 = vunpack.c.h.b16 %v885
        %v1787 = vunpack.c.l.b16 %v886
        %v1788 = vunpack.c.h.b16 %v886
        %v1789 = vunpack.c.l.b16 %v887
        %v1790 = vunpack.c.h.b16 %v887
        %v1791 = vunpack.c.l.b16 %v888
        %v1792 = vunpack.c.h.b16 %v888
        %v1793 = vunpack.c.l.b16 %v889
        %v1794 = vunpack.c.h.b16 %v889
        %v1795 = vunpack.c.l.b16 %v890
        %v1796 = vunpack.c.h.b16 %v890
        %v1797 = vunpack.c.l.b16 %v891
        %v1798 = vunpack.c.h.b16 %v891
        %v1799 = vunpack.c.l.b16 %v892
        %v1800 = vunpack.c.h.b16 %v892
        %v1801 = vunpack.c.l.b16 %v893
        %v1802 = vunpack.c.h.b16 %v893
        %v1803 = vunpack.c.l.b16 %v894
        %v1804 = vunpack.c.h.b16 %v894
        %v1805 = vunpack.c.l.b16 %v895
        %v1806 = vunpack.c.h.b16 %v895
        %v1807 = vunpack.c.l.b16 %v896
        %v1808 = vunpack.c.h.b16 %v896
        %v1809 = vunpack.c.l.b16 %v897
        %v1810 = vunpack.c.h.b16 %v897
        %v1811 = vunpack.c.l.b16 %v898
        %v1812 = vunpack.c.h.b16 %v898
        %v1813 = vunpack.c.l.b16 %v899
        %v1814 = vunpack.c.h.b16 %v899
        %v1815 = vunpack.c.l.b16 %v900
        %v1816 = vunpack.c.h.b16 %v900
        %v1817 = vunpack.c.l.b16 %v901
        %v1818 = vunpack.c.h.b16 %v901
        %v1819 = vunpack.c.l.b16 %v902
        %v1820 = vunpack.c.h.b16 %v902
        %v1821 = vunpack.c.l.b16 %v903
        %v1822 = vunpack.c.h.b16 %v903
        %v1823 = vunpack.c.l.b16 %v904
        %v1824 = vunpack.c.h.b16 %v904
        %v1825 = vunpack.c.l.b16 %v905
        %v1826 = vunpack.c.h.b16 %v905
        %v1827 = vunpack.c.l.b16 %v906
        %v1828 = vunpack.c.h.b16 %v906
        %v1829 = vunpack.c.l.b16 %v907
        %v1830 = vunpack.c.h.b16 %v907
        %v1831 = vunpack.c.l.b16 %v908
        %v1832 = vunpack.c.h.b16 %v908
        %v1833 = vunpack.c.l.b16 %v909
        %v1834 = vunpack.c.h.b16 %v909
        %v1835 = vunpack.c.l.b16 %v910
        %v1836 = vunpack.c.h.b16 %v910
        %v1837 = vunpack.c.l.b16 %v911
        %v1838 = vunpack.c.h.b16 %v911
        %v1839 = vunpack.c.l.b16 %v912
        %v1840 = vunpack.c.h.b16 %v912
        %v1841 = vunpack.c.l.b16 %v913
        %v1842 = vunpack.c.h.b16 %v913
        %v1843 = vunpack.c.l.b16 %v914
        %v1844 = vunpack.c.h.b16 %v914
        %v1845 = vunpack.c.l.b16 %v915
        %v1846 = vunpack.c.h.b16 %v915
        %v1847 = vunpack.c.l.b16 %v916
        %v1848 = vunpack.c.h.b16 %v916
        %v1849 = vunpack.c.l.b16 %v917
        %v1850 = vunpack.c.h.b16 %v917
        %v1851 = vunpack.c.l.b16 %v918
        %v1852 = vunpack.c.h.b16 %v918
        %v1853 = vunpack.c.l.b16 %v919
        %v1854 = vunpack.c.h.b16 %v919
        %v1855 = vunpack.c.l.b16 %v920
        %v1856 = vunpack.c.h.b16 %v920
        %v1857 = vunpack.c.l.b16 %v921
        %v1858 = vunpack.c.h.b16 %v921
        %v1859 = vunpack.c.l.b16 %v922
        %v1860 = vunpack.c.h.b16 %v922
        %v1861 = vunpack.c.l.b16 %v923
        %v1862 = vunpack.c.h.b16 %v923
        %v1863 = vunpack.c.l.b16 %v924
        %v1864 = vunpack.c.h.b16 %v924
        %v1865 = vunpack.c.l.b16 %v925
        %v1866 = vunpack.c.h.b16 %v925
        %v1867 = vunpack.c.l.b16 %v926
        %v1868 = vunpack.c.h.b16 %v926
        %v1869 = vunpack.c.l.b16 %v927
        %v1870 = vunpack.c.h.b16 %v927
        %v1871 = vunpack.c.l.b16 %v928
        %v1872 = vunpack.c.h.b16 %v928
        %v1873 = vunpack.c.l.b16 %v929
        %v1874 = vunpack.c.h.b16 %v929
        %v1875 = vunpack.c.l.b16 %v930
        %v1876 = vunpack.c.h.b16 %v930
        %v1877 = vunpack.c.l.b16 %v931
        %v1878 = vunpack.c.h.b16 %v931
        %v1879 = vunpack.c.l.b16 %v932
        %v1880 = vunpack.c.h.b16 %v932
        %v1881 = vunpack.c.l.b16 %v933
        %v1882 = vunpack.c.h.b16 %v933
        %v1883 = vunpack.c.l.b16 %v934
        %v1884 = vunpack.c.h.b16 %v934
        %v1885 = vunpack.c.l.b16 %v935
        %v1886 = vunpack.c.h.b16 %v935
        %v1887 = vunpack.c.l.b16 %v936
        %v1888 = vunpack.c.h.b16 %v936
        %v1889 = vunpack.c.l.b16 %v937
        %v1890 = vunpack.c.h.b16 %v937
        %v1891 = vunpack.c.l.b16 %v938
        %v1892 = vunpack.c.h.b16 %v938
        %v1893 = vunpack.c.l.b16 %v939
        %v1894 = vunpack.c.h.b16 %v939
        %v1895 = vunpack.c.l.b16 %v940
        %v1896 = vunpack.c.h.b16 %v940
        %v1897 = vunpack.c.l.b16 %v941
        %v1898 = vunpack.c.h.b16 %v941
        %v1899 = vunpack.c.l.b16 %v942
        %v1900 = vunpack.c.h.b16 %v942
        %v1901 = vunpack.c.l.b16 %v943
        %v1902 = vunpack.c.h.b16 %v943
        %v1903 = vunpack.c.l.b16 %v944
        %v1904 = vunpack.c.h.b16 %v944
        %v1905 = vunpack.c.l.b16 %v945
        %v1906 = vunpack.c.h.b16 %v945
        %v1907 = vunpack.c.l.b16 %v946
        %v1908 = vunpack.c.h.b16 %v946
        %v1909 = vunpack.c.l.b16 %v947
        %v1910 = vunpack.c.h.b16 %v947
        %v1911 = vunpack.c.l.b16 %v948
        %v1912 = vunpack.c.h.b16 %v948
        %v1913 = vunpack.c.l.b16 %v949
        %v1914 = vunpack.c.h.b16 %v949
        %v1915 = vunpack.c.l.b16 %v950
        %v1916 = vunpack.c.h.b16 %v950
        %v1917 = vunpack.c.l.b16 %v951
        %v1918 = vunpack.c.h.b16 %v951
        %v1919 = vunpack.c.l.b16 %v952
        %v1920 = vunpack.c.h.b16 %v952
        %v1921 = vunpack.c.l.b16 %v953
        %v1922 = vunpack.c.h.b16 %v953
        %v1923 = vunpack.c.l.b16 %v954
        %v1924 = vunpack.c.h.b16 %v954
        %v1925 = vunpack.c.l.b16 %v955
        %v1926 = vunpack.c.h.b16 %v955
        %v1927 = vunpack.c.l.b16 %v956
        %v1928 = vunpack.c.h.b16 %v956
        %v1929 = vunpack.c.l.b16 %v957
        %v1930 = vunpack.c.h.b16 %v957
        %v1931 = vunpack.c.l.b16 %v958
        %v1932 = vunpack.c.h.b16 %v958
        %v1933 = vunpack.c.l.b16 %v959
        %v1934 = vunpack.c.h.b16 %v959
        %v1935 = vunpack.c.l.b16 %v960
        %v1936 = vunpack.c.h.b16 %v960
        %v1937 = vunpack.c.l.b16 %v961
        %v1938 = vunpack.c.h.b16 %v961
        %v1939 = vunpack.c.l.b16 %v962
        %v1940 = vunpack.c.h.b16 %v962
        %v1941 = vunpack.c.l.b16 %v963
        %v1942 = vunpack.c.h.b16 %v963
        %v1943 = vunpack.c.l.b16 %v964
        %v1944 = vunpack.c.h.b16 %v964
        %v1945 = vunpack.c.l.b16 %v965
        %v1946 = vunpack.c.h.b16 %v965
        %v1947 = vunpack.c.l.b16 %v966
        %v1948 = vunpack.c.h.b16 %v966
        %v1949 = vunpack.c.l.b16 %v967
        %v1950 = vunpack.c.h.b16 %v967
        %v1951 = vunpack.c.l.b16 %v968
        %v1952 = vunpack.c.h.b16 %v968
        %v1953 = vunpack.c.l.b16 %v969
        %v1954 = vunpack.c.h.b16 %v969
        %v1955 = vunpack.c.l.b16 %v970
        %v1956 = vunpack.c.h.b16 %v970
        %v1957 = vunpack.c.l.b16 %v971
        %v1958 = vunpack.c.h.b16 %v971
        %v1959 = vunpack.c.l.b16 %v972
        %v1960 = vunpack.c.h.b16 %v972
        %v1961 = vunpack.c.l.b16 %v973
        %v1962 = vunpack.c.h.b16 %v973
        %v1963 = vunpack.c.l.b16 %v974
        %v1964 = vunpack.c.h.b16 %v974
        %v1965 = vunpack.c.l.b16 %v975
        %v1966 = vunpack.c.h.b16 %v975
        %v1967 = vunpack.c.l.b16 %v976
        %v1968 = vunpack.c.h.b16 %v976
        %v1969 = vunpack.c.l.b16 %v977
        %v1970 = vunpack.c.h.b16 %v977
        %v1971 = vunpack.c.l.b16 %v978
        %v1972 = vunpack.c.h.b16 %v978
        %v1973 = vunpack.c.l.b16 %v979
        %v1974 = vunpack.c.h.b16 %v979
        %v1975 = vunpack.c.l.b16 %v980
        %v1976 = vunpack.c.h.b16 %v980
        %v1977 = vunpack.c.l.b16 %v981
        %v1978 = vunpack.c.h.b16 %v981
        %v1979 = vunpack.c.l.b16 %v982
        %v1980 = vunpack.c.h.b16 %v982
        %v1981 = vunpack.c.l.b16 %v983
        %v1982 = vunpack.c.h.b16 %v983
        %v1983 = vunpack.c.l.b16 %v984
        %v1984 = vunpack.c.h.b16 %v984
        %v1985 = vunpack.c.l.b16 %v985
        %v1986 = vunpack.c.h.b16 %v985
        %v1987 = vunpack.c.l.b16 %v986
        %v1988 = vunpack.c.h.b16 %v986
        %v1989 = vunpack.c.l.b16 %v987
        %v1990 = vunpack.c.h.b16 %v987
        %v1991 = vunpack.c.l.b16 %v988
        %v1992 = vunpack.c.h.b16 %v988
        %v1993 = vunpack.c.l.b16 %v989
        %v1994 = vunpack.c.h.b16 %v989
        %v1995 = vunpack.c.l.b16 %v990
        %v1996 = vunpack.c.h.b16 %v990
        %v1997 = vunpack.c.l.b16 %v991
        %v1998 = vunpack.c.h.b16 %v991
        %v1999 = vunpack.c.l.b16 %v992
        %v2000 = vunpack.c.h.b16 %v992
        %v2001 = vunpack.c.l.b16 %v993
        %v2002 = vunpack.c.h.b16 %v993
        %v2003 = vunpack.c.l.b16 %v994
        %v2004 = vunpack.c.h.b16 %v994
        %v2005 = vunpack.c.l.b16 %v995
        %v2006 = vunpack.c.h.b16 %v995
        %v2007 = vunpack.c.l.b16 %v996
        %v2008 = vunpack.c.h.b16 %v996
        %v2009 = vunpack.c.l.b16 %v997
        %v2010 = vunpack.c.h.b16 %v997
        %v2011 = vunpack.c.l.b16 %v998
        %v2012 = vunpack.c.h.b16 %v998
        %v2013 = vunpack.c.l.b16 %v999
        %v2014 = vunpack.c.h.b16 %v999
        %v2015 = vunpack.c.l.b16 %v1000
        %v2016 = vunpack.c.h.b16 %v1000
        %v2017 = vunpack.c.l.b16 %v1001
        %v2018 = vunpack.c.h.b16 %v1001
        %v2019 = vunpack.c.l.b16 %v1002
        %v2020 = vunpack.c.h.b16 %v1002
        %v2021 = vunpack.c.l.b16 %v1003
        %v2022 = vunpack.c.h.b16 %v1003
        %v2023 = vunpack.c.l.b16 %v1004
        %v2024 = vunpack.c.h.b16 %v1004
        %v2025 = vunpack.c.l.b16 %v1005
        %v2026 = vunpack.c.h.b16 %v1005
        %v2027 = vunpack.c.l.b16 %v1006
        %v2028 = vunpack.c.h.b16 %v1006
        %v2029 = vunpack.c.l.b16 %v1007
        %v2030 = vunpack.c.h.b16 %v1007
        %v2031 = vunpack.c.l.b16 %v1008
        %v2032 = vunpack.c.h.b16 %v1008
        %v2033 = vunpack.c.l.b16 %v1009
        %v2034 = vunpack.c.h.b16 %v1009
        %v2035 = vunpack.c.l.b16 %v1010
        %v2036 = vunpack.c.h.b16 %v1010
        %v2037 = vunpack.c.l.b16 %v1011
        %v2038 = vunpack.c.h.b16 %v1011
        %v2039 = vunpack.c.l.b16 %v1012
        %v2040 = vunpack.c.h.b16 %v1012
        %v2041 = vunpack.c.l.b16 %v1013
        %v2042 = vunpack.c.h.b16 %v1013
        %v2043 = vunpack.c.l.b16 %v1014
        %v2044 = vunpack.c.h.b16 %v1014
        %v2045 = vunpack.c.l.b16 %v1015
        %v2046 = vunpack.c.h.b16 %v1015
        %v2047 = vunpack.c.l.b16 %v1016
        %v2048 = vunpack.c.h.b16 %v1016
        %v2049 = vunpack.c.l.b16 %v1017
        %v2050 = vunpack.c.h.b16 %v1017
        %v2051 = vunpack.c.l.b16 %v1018
        %v2052 = vunpack.c.h.b16 %v1018
        %v2053 = vunpack.c.l.b16 %v1019
        %v2054 = vunpack.c.h.b16 %v1019
        %v2055 = vunpack.c.l.b16 %v1020
        %v2056 = vunpack.c.h.b16 %v1020
        %v2057 = vunpack.c.l.b16 %v1021
        %v2058 = vunpack.c.h.b16 %v1021
        %v2059 = vunpack.c.l.b16 %v1022
        %v2060 = vunpack.c.h.b16 %v1022
        %v2061 = vunpack.c.l.b16 %v1023
        %v2062 = vunpack.c.h.b16 %v1023
        %v2063 = vunpack.c.l.b16 %v1024
        %v2064 = vunpack.c.h.b16 %v1024
        %v2065 = vunpack.c.l.b16 %v1025
        %v2066 = vunpack.c.h.b16 %v1025
        %v2067 = vunpack.c.l.b16 %v1026
        %v2068 = vunpack.c.h.b16 %v1026
        %v2069 = vunpack.c.l.b16 %v1027
        %v2070 = vunpack.c.h.b16 %v1027
        %v2071 = vunpack.c.l.b16 %v1028
        %v2072 = vunpack.c.h.b16 %v1028
        %v2073 = vunpack.c.l.b16 %v1029
        %v2074 = vunpack.c.h.b16 %v1029
        %v2075 = vunpack.c.l.b16 %v1030
        %v2076 = vunpack.c.h.b16 %v1030
        %v2077 = vunpack.c.l.b16 %v1031
        %v2078 = vunpack.c.h.b16 %v1031
        %v2079 = vunpack.c.l.b16 %v1032
        %v2080 = vunpack.c.h.b16 %v1032
        %v2081 = vunpack.c.l.b16 %v1033
        %v2082 = vunpack.c.h.b16 %v1033
        %v2083 = vunpack.c.l.b16 %v1034
        %v2084 = vunpack.c.h.b16 %v1034
        %v2085 = vunpack.c.l.b16 %v1035
        %v2086 = vunpack.c.h.b16 %v1035
        %v2087 = vunpack.c.l.b16 %v1036
        %v2088 = vunpack.c.h.b16 %v1036
        %v2089 = vunpack.c.l.b16 %v1037
        %v2090 = vunpack.c.h.b16 %v1037
        %v2091 = vunpack.c.l.b16 %v1038
        %v2092 = vunpack.c.h.b16 %v1038
        %v2093 = vunpack.c.l.b16 %v1039
        %v2094 = vunpack.c.h.b16 %v1039
        %v2095 = vunpack.c.l.b16 %v1040
        %v2096 = vunpack.c.h.b16 %v1040
        %v2097 = vunpack.c.l.b16 %v1041
        %v2098 = vunpack.c.h.b16 %v1041
        %v2099 = vunpack.c.l.b16 %v1042
        %v2100 = vunpack.c.h.b16 %v1042
        %v2101 = vunpack.c.l.b16 %v1043
        %v2102 = vunpack.c.h.b16 %v1043
        %v2103 = vunpack.c.l.b16 %v1044
        %v2104 = vunpack.c.h.b16 %v1044
        %v2105 = vunpack.c.l.b16 %v1045
        %v2106 = vunpack.c.h.b16 %v1045
        %v2107 = vunpack.c.l.b16 %v1046
        %v2108 = vunpack.c.h.b16 %v1046
        %v2109 = vunpack.c.l.b16 %v1047
        %v2110 = vunpack.c.h.b16 %v1047
        %v2111 = vunpack.c.l.b16 %v1048
        %v2112 = vunpack.c.h.b16 %v1048
        %v2113 = vunpack.c.l.b16 %v1049
        %v2114 = vunpack.c.h.b16 %v1049
        %v2115 = vunpack.c.l.b16 %v1050
        %v2116 = vunpack.c.h.b16 %v1050
        %v2117 = vunpack.c.l.b16 %v1051
        %v2118 = vunpack.c.h.b16 %v1051
        %v2119 = vunpack.c.l.b16 %v1052
        %v2120 = vunpack.c.h.b16 %v1052
        %v2121 = vunpack.c.l.b16 %v1053
        %v2122 = vunpack.c.h.b16 %v1053
        %v2123 = vunpack.c.l.b16 %v1054
        %v2124 = vunpack.c.h.b16 %v1054
        %v2125 = vunpack.c.l.b16 %v1055
        %v2126 = vunpack.c.h.b16 %v1055
        %v2127 = vunpack.c.l.b16 %v1056
        %v2128 = vunpack.c.h.b16 %v1056
        %v2129 = vunpack.c.l.b16 %v1057
        %v2130 = vunpack.c.h.b16 %v1057
        %v2131 = vunpack.c.l.b16 %v1058
        %v2132 = vunpack.c.h.b16 %v1058
        %v2133 = vunpack.c.l.b16 %v1059
        %v2134 = vunpack.c.h.b16 %v1059
        %v2135 = vunpack.c.l.b16 %v1060
        %v2136 = vunpack.c.h.b16 %v1060
        %v2137 = vunpack.c.l.b16 %v1061
        %v2138 = vunpack.c.h.b16 %v1061
        %v2139 = vunpack.c.l.b16 %v1062
        %v2140 = vunpack.c.h.b16 %v1062
        %v2141 = vunpack.c.l.b16 %v1063
        %v2142 = vunpack.c.h.b16 %v1063
        %v2143 = vunpack.c.l.b16 %v1064
        %v2144 = vunpack.c.h.b16 %v1064
        %v2145 = vunpack.c.l.b16 %v1065
        %v2146 = vunpack.c.h.b16 %v1065
        %v2147 = vunpack.c.l.b16 %v1066
        %v2148 = vunpack.c.h.b16 %v1066
        %v2149 = vunpack.c.l.b16 %v1067
        %v2150 = vunpack.c.h.b16 %v1067
        %v2151 = vunpack.c.l.b16 %v1068
        %v2152 = vunpack.c.h.b16 %v1068
        %v2153 = vunpack.c.l.b16 %v1069
        %v2154 = vunpack.c.h.b16 %v1069
        %v2155 = vunpack.c.l.b16 %v1070
        %v2156 = vunpack.c.h.b16 %v1070
        %v2157 = vunpack.c.l.b16 %v1071
        %v2158 = vunpack.c.h.b16 %v1071
        %v2159 = vunpack.c.l.b16 %v1072
        %v2160 = vunpack.c.h.b16 %v1072
        %v2161 = vunpack.c.l.b16 %v1073
        %v2162 = vunpack.c.h.b16 %v1073
        %v2163 = vunpack.c.l.b16 %v1074
        %v2164 = vunpack.c.h.b16 %v1074
        %v2165 = vunpack.c.l.b16 %v1075
        %v2166 = vunpack.c.h.b16 %v1075
        %v2167 = vunpack.c.l.b16 %v1076
        %v2168 = vunpack.c.h.b16 %v1076
        %v2169 = vunpack.c.l.b16 %v1077
        %v2170 = vunpack.c.h.b16 %v1077
        %v2171 = vunpack.c.l.b16 %v1078
        %v2172 = vunpack.c.h.b16 %v1078
        %v2173 = vunpack.c.l.b16 %v1079
        %v2174 = vunpack.c.h.b16 %v1079
        %v2175 = vunpack.c.l.b16 %v1080
        %v2176 = vunpack.c.h.b16 %v1080
        %v2177 = vunpack.c.l.b16 %v1081
        %v2178 = vunpack.c.h.b16 %v1081
        %v2179 = vunpack.c.l.b16 %v1082
        %v2180 = vunpack.c.h.b16 %v1082
        %v2181 = vunpack.c.l.b16 %v1083
        %v2182 = vunpack.c.h.b16 %v1083
        %v2183 = vunpack.c.l.b16 %v1084
        %v2184 = vunpack.c.h.b16 %v1084
        %v2185 = vunpack.c.l.b16 %v1085
        %v2186 = vunpack.c.h.b16 %v1085
        %v2187 = vunpack.c.l.b16 %v1086
        %v2188 = vunpack.c.h.b16 %v1086
        %v2189 = vunpack.c.l.b16 %v1087
        %v2190 = vunpack.c.h.b16 %v1087
        %v2191 = vunpack.c.l.b16 %v1088
        %v2192 = vunpack.c.h.b16 %v1088
        %v2193 = vunpack.c.l.b16 %v1089
        %v2194 = vunpack.c.h.b16 %v1089
        %v2195 = vunpack.c.l.b16 %v1090
        %v2196 = vunpack.c.h.b16 %v1090
        %v2197 = vunpack.c.l.b16 %v1091
        %v2198 = vunpack.c.h.b16 %v1091
        %v2199 = vunpack.c.l.b16 %v1092
        %v2200 = vunpack.c.h.b16 %v1092
        %v2201 = vunpack.c.l.b16 %v1093
        %v2202 = vunpack.c.h.b16 %v1093
        %v2203 = vunpack.c.l.b16 %v1094
        %v2204 = vunpack.c.h.b16 %v1094
        %v2205 = vunpack.c.l.b16 %v1095
        %v2206 = vunpack.c.h.b16 %v1095
        %v2207 = vunpack.c.l.b16 %v1096
        %v2208 = vunpack.c.h.b16 %v1096
        %v2209 = vunpack.c.l.b16 %v1097
        %v2210 = vunpack.c.h.b16 %v1097
        %v2211 = vunpack.c.l.b16 %v1098
        %v2212 = vunpack.c.h.b16 %v1098
        %v2213 = vunpack.c.l.b16 %v1099
        %v2214 = vunpack.c.h.b16 %v1099
        %v2215 = vunpack.c.l.b16 %v1100
        %v2216 = vunpack.c.h.b16 %v1100
        %v2217 = vunpack.c.l.b16 %v1101
        %v2218 = vunpack.c.h.b16 %v1101
        %v2219 = vunpack.c.l.b16 %v1102
        %v2220 = vunpack.c.h.b16 %v1102
        %v2221 = vunpack.c.l.b16 %v1103
        %v2222 = vunpack.c.h.b16 %v1103
        %v2223 = vunpack.c.l.b16 %v1104
        %v2224 = vunpack.c.h.b16 %v1104
        %v2225 = vunpack.c.l.b16 %v1105
        %v2226 = vunpack.c.h.b16 %v1105
        %v2227 = vunpack.c.l.b16 %v1106
        %v2228 = vunpack.c.h.b16 %v1106
        %v2229 = vunpack.c.l.b16 %v1107
        %v2230 = vunpack.c.h.b16 %v1107
        %v2231 = vunpack.c.l.b16 %v1108
        %v2232 = vunpack.c.h.b16 %v1108
        %v2233 = vunpack.c.l.b16 %v1109
        %v2234 = vunpack.c.h.b16 %v1109
        %v2235 = vunpack.c.l.b16 %v1110
        %v2236 = vunpack.c.h.b16 %v1110
        %v2237 = vunpack.c.l.b16 %v1111
        %v2238 = vunpack.c.h.b16 %v1111
        %v2239 = vunpack.c.l.b16 %v1112
        %v2240 = vunpack.c.h.b16 %v1112
        %v2241 = vunpack.c.l.b16 %v1113
        %v2242 = vunpack.c.h.b16 %v1113
        %v2243 = vunpack.c.l.b16 %v1114
        %v2244 = vunpack.c.h.b16 %v1114
        %v2245 = vunpack.c.l.b16 %v1115
        %v2246 = vunpack.c.h.b16 %v1115
        %v2247 = vunpack.c.l.b16 %v1116
        %v2248 = vunpack.c.h.b16 %v1116
        %v2249 = vunpack.c.l.b16 %v1117
        %v2250 = vunpack.c.h.b16 %v1117
        %v2251 = vunpack.c.l.b16 %v1118
        %v2252 = vunpack.c.h.b16 %v1118
        %v2253 = vunpack.c.l.b16 %v1119
        %v2254 = vunpack.c.h.b16 %v1119
        %v2255 = vunpack.c.l.b16 %v1120
        %v2256 = vunpack.c.h.b16 %v1120
        %v2257 = vunpack.c.l.b16 %v1121
        %v2258 = vunpack.c.h.b16 %v1121
        %v2259 = vunpack.c.l.b16 %v1122
        %v2260 = vunpack.c.h.b16 %v1122
        %v2261 = vunpack.c.l.b16 %v1123
        %v2262 = vunpack.c.h.b16 %v1123
        %v2263 = vunpack.c.l.b16 %v1124
        %v2264 = vunpack.c.h.b16 %v1124
        %v2265 = vunpack.c.l.b16 %v1125
        %v2266 = vunpack.c.h.b16 %v1125
        %v2267 = vunpack.c.l.b16 %v1126
        %v2268 = vunpack.c.h.b16 %v1126
        %v2269 = vunpack.c.l.b16 %v1127
        %v2270 = vunpack.c.h.b16 %v1127
        %v2271 = vunpack.c.l.b16 %v1128
        %v2272 = vunpack.c.h.b16 %v1128
        %v2273 = vunpack.c.l.b16 %v1129
        %v2274 = vunpack.c.h.b16 %v1129
        %v2275 = vunpack.c.l.b16 %v1130
        %v2276 = vunpack.c.h.b16 %v1130
        %v2277 = vunpack.c.l.b16 %v1131
        %v2278 = vunpack.c.h.b16 %v1131
        %v2279 = vunpack.c.l.b16 %v1132
        %v2280 = vunpack.c.h.b16 %v1132
        %v2281 = vunpack.c.l.b16 %v1133
        %v2282 = vunpack.c.h.b16 %v1133
        %v2283 = vunpack.c.l.b16 %v1134
        %v2284 = vunpack.c.h.b16 %v1134
        %v2285 = vunpack.c.l.b16 %v1135
        %v2286 = vunpack.c.h.b16 %v1135
        %v2287 = vunpack.c.l.b16 %v1136
        %v2288 = vunpack.c.h.b16 %v1136
        %v2289 = vunpack.c.l.b16 %v1137
        %v2290 = vunpack.c.h.b16 %v1137
        %v2291 = vunpack.c.l.b16 %v1138
        %v2292 = vunpack.c.h.b16 %v1138
        %v2293 = vunpack.c.l.b16 %v1139
        %v2294 = vunpack.c.h.b16 %v1139
        %v2295 = vunpack.c.l.b16 %v1140
        %v2296 = vunpack.c.h.b16 %v1140
        %v2297 = vunpack.c.l.b16 %v1141
        %v2298 = vunpack.c.h.b16 %v1141
        %v2299 = vunpack.c.l.b16 %v1142
        %v2300 = vunpack.c.h.b16 %v1142
        %v2301 = vunpack.c.l.b16 %v1143
        %v2302 = vunpack.c.h.b16 %v1143
        %v2303 = vunpack.c.l.b16 %v1144
        %v2304 = vunpack.c.h.b16 %v1144
        %v2305 = vunpack.c.l.b16 %v1145
        %v2306 = vunpack.c.h.b16 %v1145
        %v2307 = vunpack.c.l.b16 %v1146
        %v2308 = vunpack.c.h.b16 %v1146
        %v2309 = vunpack.c.l.b16 %v1147
        %v2310 = vunpack.c.h.b16 %v1147
        %v2311 = vunpack.c.l.b16 %v1148
        %v2312 = vunpack.c.h.b16 %v1148
        %v2313 = vunpack.c.l.b16 %v1149
        %v2314 = vunpack.c.h.b16 %v1149
        %v2315 = vunpack.c.l.b16 %v1150
        %v2316 = vunpack.c.h.b16 %v1150
        %v2317 = vunpack.c.l.b16 %v1151
        %v2318 = vunpack.c.h.b16 %v1151
        %v2319 = vunpack.c.l.b16 %v1152
        %v2320 = vunpack.c.h.b16 %v1152
        %v2321 = vunpack.c.l.b16 %v1153
        %v2322 = vunpack.c.h.b16 %v1153
        %v2323 = vunpack.c.l.b16 %v1154
        %v2324 = vunpack.c.h.b16 %v1154
        %v2325 = vunpack.c.l.b16 %v1155
        %v2326 = vunpack.c.h.b16 %v1155
        %v2327 = vunpack.c.l.b16 %v1156
        %v2328 = vunpack.c.h.b16 %v1156
        %v2329 = vunpack.c.l.b16 %v1157
        %v2330 = vunpack.c.h.b16 %v1157
        %v2331 = vunpack.c.l.b16 %v1158
        %v2332 = vunpack.c.h.b16 %v1158
        %v2333 = vunpack.c.l.b16 %v1159
        %v2334 = vunpack.c.h.b16 %v1159
        %v2335 = vunpack.c.l.b16 %v1160
        %v2336 = vunpack.c.h.b16 %v1160
        %v2337 = vunpack.c.l.b16 %v1161
        %v2338 = vunpack.c.h.b16 %v1161
        %v2339 = vunpack.c.l.b16 %v1162
        %v2340 = vunpack.c.h.b16 %v1162
        %v2341 = vunpack.c.l.b16 %v1163
        %v2342 = vunpack.c.h.b16 %v1163
        %v2343 = vunpack.c.l.b16 %v1164
        %v2344 = vunpack.c.h.b16 %v1164
        %v2345 = vunpack.c.l.b16 %v1165
        %v2346 = vunpack.c.h.b16 %v1165
        %v2347 = vunpack.c.l.b16 %v1166
        %v2348 = vunpack.c.h.b16 %v1166
        %v2349 = vunpack.c.l.b16 %v1167
        %v2350 = vunpack.c.h.b16 %v1167
        %v2351 = vunpack.c.l.b16 %v1168
        %v2352 = vunpack.c.h.b16 %v1168
        %v2353 = vunpack.c.l.b16 %v1169
        %v2354 = vunpack.c.h.b16 %v1169
        %v2355 = vunpack.c.l.b16 %v1170
        %v2356 = vunpack.c.h.b16 %v1170
        %v2357 = vunpack.c.l.b16 %v1171
        %v2358 = vunpack.c.h.b16 %v1171
        %v2359 = vunpack.c.l.b16 %v1172
        %v2360 = vunpack.c.h.b16 %v1172
        %v2361 = vunpack.c.l.b16 %v1173
        %v2362 = vunpack.c.h.b16 %v1173
        %v2363 = vunpack.c.l.b16 %v1174
        %v2364 = vunpack.c.h.b16 %v1174
        %v2365 = vunpack.c.l.b16 %v1175
        %v2366 = vunpack.c.h.b16 %v1175
        %v2367 = vunpack.c.l.b16 %v1176
        %v2368 = vunpack.c.h.b16 %v1176
        %v2369 = vunpack.c.l.b16 %v1177
        %v2370 = vunpack.c.h.b16 %v1177
        %v2371 = vunpack.c.l.b16 %v1178
        %v2372 = vunpack.c.h.b16 %v1178
        %v2373 = vunpack.c.l.b16 %v1179
        %v2374 = vunpack.c.h.b16 %v1179
        %v2375 = vunpack.c.l.b16 %v1180
        %v2376 = vunpack.c.h.b16 %v1180
        %v2377 = vunpack.c.l.b16 %v1181
        %v2378 = vunpack.c.h.b16 %v1181
        %v2379 = vunpack.c.l.b16 %v1182
        %v2380 = vunpack.c.h.b16 %v1182
        %v2381 = vunpack.c.l.b16 %v1183
        %v2382 = vunpack.c.h.b16 %v1183
        %v2383 = vunpack.c.l.b16 %v1184
        %v2384 = vunpack.c.h.b16 %v1184
        %v2385 = vunpack.c.l.b16 %v1185
        %v2386 = vunpack.c.h.b16 %v1185
        %v2387 = vunpack.c.l.b16 %v1186
        %v2388 = vunpack.c.h.b16 %v1186
        %v2389 = vunpack.c.l.b16 %v1187
        %v2390 = vunpack.c.h.b16 %v1187
        %v2391 = vunpack.c.l.b16 %v1188
        %v2392 = vunpack.c.h.b16 %v1188
        %v2393 = vunpack.c.l.b16 %v1189
        %v2394 = vunpack.c.h.b16 %v1189
        %v2395 = vunpack.c.l.b16 %v1190
        %v2396 = vunpack.c.h.b16 %v1190
        %v2397 = vunpack.c.l.b16 %v1191
        %v2398 = vunpack.c.h.b16 %v1191
        %v2399 = vunpack.c.l.b16 %v1192
        %v2400 = vunpack.c.h.b16 %v1192
        %v2401 = vunpack.c.l.b16 %v1193
        %v2402 = vunpack.c.h.b16 %v1193
        %v2403 = vunpack.c.l.b16 %v1194
        %v2404 = vunpack.c.h.b16 %v1194
        %v2405 = vunpack.c.l.b16 %v1195
        %v2406 = vunpack.c.h.b16 %v1195
        %v2407 = vunpack.c.l.b16 %v1196
        %v2408 = vunpack.c.h.b16 %v1196
        %v2409 = vunpack.c.l.b16 %v1197
        %v2410 = vunpack.c.h.b16 %v1197
        %v2411 = vunpack.c.l.b16 %v1198
        %v2412 = vunpack.c.h.b16 %v1198
        %v2413 = vunpack.c.l.b16 %v1199
        %v2414 = vunpack.c.h.b16 %v1199
        %v2415 = vunpack.c.l.b16 %v1200
        %v2416 = vunpack.c.h.b16 %v1200
        %v2417 = vunpack.c.l.b16 %v1201
        %v2418 = vunpack.c.h.b16 %v1201
        %v2419 = vunpack.c.l.b16 %v1202
        %v2420 = vunpack.c.h.b16 %v1202
        %v2421 = vunpack.c.l.b16 %v1203
        %v2422 = vunpack.c.h.b16 %v1203
        %v2423 = vunpack.c.l.b16 %v1204
        %v2424 = vunpack.c.h.b16 %v1204
        %v2425 = vunpack.c.l.b16 %v1205
        %v2426 = vunpack.c.h.b16 %v1205
        %v2427 = vunpack.c.l.b16 %v1206
        %v2428 = vunpack.c.h.b16 %v1206
        %v2429 = vunpack.c.l.b16 %v1207
        %v2430 = vunpack.c.h.b16 %v1207
        %v2431 = vunpack.c.l.b16 %v1208
        %v2432 = vunpack.c.h.b16 %v1208
        %v2433 = vunpack.c.l.b16 %v1209
        %v2434 = vunpack.c.h.b16 %v1209
        %v2435 = vunpack.c.l.b16 %v1210
        %v2436 = vunpack.c.h.b16 %v1210
        %v2437 = vunpack.c.l.b16 %v1211
        %v2438 = vunpack.c.h.b16 %v1211
        %v2439 = vunpack.c.l.b16 %v1212
        %v2440 = vunpack.c.h.b16 %v1212
        %v2441 = vunpack.c.l.b16 %v1213
        %v2442 = vunpack.c.h.b16 %v1213
        %v2443 = vunpack.c.l.b16 %v1214
        %v2444 = vunpack.c.h.b16 %v1214
        %v2445 = vpack.c.b16 %v1689, %v1677
        %v2446 = vpack.c.b16 %v1690, %v1678
        %v2447 = vpack.c.b16 %v1691, %v1679
        %v2448 = vpack.c.b16 %v1692, %v1680
        %v2449 = vpack.c.b16 %v1693, %v1681
        %v2450 = vpack.c.b16 %v1694, %v1682
        %v2451 = vpack.c.b16 %v1695, %v1683
        %v2452 = vpack.c.b16 %v1696, %v1684
        %v2453 = vpack.c.b16 %v1697, %v1685
        %v2454 = vpack.c.b16 %v1698, %v1686
        %v2455 = vpack.c.b16 %v1699, %v1687
        %v2456 = vpack.c.b16 %v1700, %v1688
        %v2457 = vpack.c.b16 %v1713, %v1701
        %v2458 = vpack.c.b16 %v1714, %v1702
        %v2459 = vpack.c.b16 %v1715, %v1703
        %v2460 = vpack.c.b16 %v1716, %v1704
        %v2461 = vpack.c.b16 %v1717, %v1705
        %v2462 = vpack.c.b16 %v1718, %v1706
        %v2463 = vpack.c.b16 %v1719, %v1707
        %v2464 = vpack.c.b16 %v1720, %v1708
        %v2465 = vpack.c.b16 %v1721, %v1709
        %v2466 = vpack.c.b16 %v1722, %v1710
        %v2467 = vpack.c.b16 %v1723, %v1711
        %v2468 = vpack.c.b16 %v1724, %v1712
        %v2469 = vpack.c.b16 %v1737, %v1725
        %v2470 = vpack.c.b16 %v1738, %v1726
        %v2471 = vpack.c.b16 %v1739, %v1727
        %v2472 = vpack.c.b16 %v1740, %v1728
        %v2473 = vpack.c.b16 %v1741, %v1729
        %v2474 = vpack.c.b16 %v1742, %v1730
        %v2475 = vpack.c.b16 %v1743, %v1731
        %v2476 = vpack.c.b16 %v1744, %v1732
        %v2477 = vpack.c.b16 %v1745, %v1733
        %v2478 = vpack.c.b16 %v1746, %v1734
        %v2479 = vpack.c.b16 %v1747, %v1735
        %v2480 = vpack.c.b16 %v1748, %v1736
        %v2481 = vpack.c.b16 %v1761, %v1749
        %v2482 = vpack.c.b16 %v1762, %v1750
        %v2483 = vpack.c.b16 %v1763, %v1751
        %v2484 = vpack.c.b16 %v1764, %v1752
        %v2485 = vpack.c.b16 %v1765, %v1753
        %v2486 = vpack.c.b16 %v1766, %v1754
        %v2487 = vpack.c.b16 %v1767, %v1755
        %v2488 = vpack.c.b16 %v1768, %v1756
        %v2489 = vpack.c.b16 %v1769, %v1757
        %v2490 = vpack.c.b16 %v1770, %v1758
        %v2491 = vpack.c.b16 %v1771, %v1759
        %v2492 = vpack.c.b16 %v1772, %v1760
        %v2493 = vpack.c.b16 %v1785, %v1773
        %v2494 = vpack.c.b16 %v1786, %v1774
        %v2495 = vpack.c.b16 %v1787, %v1775
        %v2496 = vpack.c.b16 %v1788, %v1776
        %v2497 = vpack.c.b16 %v1789, %v1777
        %v2498 = vpack.c.b16 %v1790, %v1778
        %v2499 = vpack.c.b16 %v1791, %v1779
        %v2500 = vpack.c.b16 %v1792, %v1780
        %v2501 = vpack.c.b16 %v1793, %v1781
        %v2502 = vpack.c.b16 %v1794, %v1782
        %v2503 = vpack.c.b16 %v1795, %v1783
        %v2504 = vpack.c.b16 %v1796, %v1784
        %v2505 = vpack.c.b16 %v1809, %v1797
        %v2506 = vpack.c.b16 %v1810, %v1798
        %v2507 = vpack.c.b16 %v1811, %v1799
        %v2508 = vpack.c.b16 %v1812, %v1800
        %v2509 = vpack.c.b16 %v1813, %v1801
        %v2510 = vpack.c.b16 %v1814, %v1802
        %v2511 = vpack.c.b16 %v1815, %v1803
        %v2512 = vpack.c.b16 %v1816, %v1804
        %v2513 = vpack.c.b16 %v1817, %v1805
        %v2514 = vpack.c.b16 %v1818, %v1806
        %v2515 = vpack.c.b16 %v1819, %v1807
        %v2516 = vpack.c.b16 %v1820, %v1808
        %v2517 = vpack.c.b16 %v1833, %v1821
        %v2518 = vpack.c.b16 %v1834, %v1822
        %v2519 = vpack.c.b16 %v1835, %v1823
        %v2520 = vpack.c.b16 %v1836, %v1824
        %v2521 = vpack.c.b16 %v1837, %v1825
        %v2522 = vpack.c.b16 %v1838, %v1826
        %v2523 = vpack.c.b16 %v1839, %v1827
        %v2524 = vpack.c.b16 %v1840, %v1828
        %v2525 = vpack.c.b16 %v1841, %v1829
        %v2526 = vpack.c.b16 %v1842, %v1830
        %v2527 = vpack.c.b16 %v1843, %v1831
        %v2528 = vpack.c.b16 %v1844, %v1832
        %v2529 = vpack.c.b16 %v1857, %v1845
        %v2530 = vpack.c.b16 %v1858, %v1846
        %v2531 = vpack.c.b16 %v1859, %v1847
        %v2532 = vpack.c.b16 %v1860, %v1848
        %v2533 = vpack.c.b16 %v1861, %v1849
        %v2534 = vpack.c.b16 %v1862, %v1850
        %v2535 = vpack.c.b16 %v1863, %v1851
        %v2536 = vpack.c.b16 %v1864, %v1852
        %v2537 = vpack.c.b16 %v1865, %v1853
        %v2538 = vpack.c.b16 %v1866, %v1854
        %v2539 = vpack.c.b16 %v1867, %v1855
        %v2540 = vpack.c.b16 %v1868, %v1856
        %v2541 = vpack.c.b16 %v1881, %v1869
        %v2542 = vpack.c.b16 %v1882, %v1870
        %v2543 = vpack.c.b16 %v1883, %v1871
        %v2544 = vpack.c.b16 %v1884, %v1872
        %v2545 = vpack.c.b16 %v1885, %v1873
        %v2546 = vpack.c.b16 %v1886, %v1874
        %v2547 = vpack.c.b16 %v1887, %v1875
        %v2548 = vpack.c.b16 %v1888, %v1876
        %v2549 = vpack.c.b16 %v1889, %v1877
        %v2550 = vpack.c.b16 %v1890, %v1878
        %v2551 = vpack.c.b16 %v1891, %v1879
        %v2552 = vpack.c.b16 %v1892, %v1880
        %v2553 = vpack.c.b16 %v1905, %v1893
        %v2554 = vpack.c.b16 %v1906, %v1894
        %v2555 = vpack.c.b16 %v1907, %v1895
        %v2556 = vpack.c.b16 %v1908, %v1896
        %v2557 = vpack.c.b16 %v1909, %v1897
        %v2558 = vpack.c.b16 %v1910, %v1898
        %v2559 = vpack.c.b16 %v1911, %v1899
        %v2560 = vpack.c.b16 %v1912, %v1900
        %v2561 = vpack.c.b16 %v1913, %v1901
        %v2562 = vpack.c.b16 %v1914, %v1902
        %v2563 = vpack.c.b16 %v1915, %v1903
        %v2564 = vpack.c.b16 %v1916, %v1904
        %v2565 = vpack.c.b16 %v1929, %v1917
        %v2566 = vpack.c.b16 %v1930, %v1918
        %v2567 = vpack.c.b16 %v1931, %v1919
        %v2568 = vpack.c.b16 %v1932, %v1920
        %v2569 = vpack.c.b16 %v1933, %v1921
        %v2570 = vpack.c.b16 %v1934, %v1922
        %v2571 = vpack.c.b16 %v1935, %v1923
        %v2572 = vpack.c.b16 %v1936, %v1924
        %v2573 = vpack.c.b16 %v1937, %v1925
        %v2574 = vpack.c.b16 %v1938, %v1926
        %v2575 = vpack.c.b16 %v1939, %v1927
        %v2576 = vpack.c.b16 %v1940, %v1928
        %v2577 = vpack.c.b16 %v1953, %v1941
        %v2578 = vpack.c.b16 %v1954, %v1942
        %v2579 = vpack.c.b16 %v1955, %v1943
        %v2580 = vpack.c.b16 %v1956, %v1944
        %v2581 = vpack.c.b16 %v1957, %v1945
        %v2582 = vpack.c.b16 %v1958, %v1946
        %v2583 = vpack.c.b16 %v1959, %v1947
        %v2584 = vpack.c.b16 %v1960, %v1948
        %v2585 = vpack.c.b16 %v1961, %v1949
        %v2586 = vpack.c.b16 %v1962, %v1950
        %v2587 = vpack.c.b16 %v1963, %v1951
        %v2588 = vpack.c.b16 %v1964, %v1952
        %v2589 = vpack.c.b16 %v1977, %v1965
        %v2590 = vpack.c.b16 %v1978, %v1966
        %v2591 = vpack.c.b16 %v1979, %v1967
        %v2592 = vpack.c.b16 %v1980, %v1968
        %v2593 = vpack.c.b16 %v1981, %v1969
        %v2594 = vpack.c.b16 %v1982, %v1970
        %v2595 = vpack.c.b16 %v1983, %v1971
        %v2596 = vpack.c.b16 %v1984, %v1972
        %v2597 = vpack.c.b16 %v1985, %v1973
        %v2598 = vpack.c.b16 %v1986, %v1974
        %v2599 = vpack.c.b16 %v1987, %v1975
        %v2600 = vpack.c.b16 %v1988, %v1976
        %v2601 = vpack.c.b16 %v2001, %v1989
        %v2602 = vpack.c.b16 %v2002, %v1990
        %v2603 = vpack.c.b16 %v2003, %v1991
        %v2604 = vpack.c.b16 %v2004, %v1992
        %v2605 = vpack.c.b16 %v2005, %v1993
        %v2606 = vpack.c.b16 %v2006, %v1994
        %v2607 = vpack.c.b16 %v2007, %v1995
        %v2608 = vpack.c.b16 %v2008, %v1996
        %v2609 = vpack.c.b16 %v2009, %v1997
        %v2610 = vpack.c.b16 %v2010, %v1998
        %v2611 = vpack.c.b16 %v2011, %v1999
        %v2612 = vpack.c.b16 %v2012, %v2000
        %v2613 = vpack.c.b16 %v2025, %v2013
        %v2614 = vpack.c.b16 %v2026, %v2014
        %v2615 = vpack.c.b16 %v2027, %v2015
        %v2616 = vpack.c.b16 %v2028, %v2016
        %v2617 = vpack.c.b16 %v2029, %v2017
        %v2618 = vpack.c.b16 %v2030, %v2018
        %v2619 = vpack.c.b16 %v2031, %v2019
        %v2620 = vpack.c.b16 %v2032, %v2020
        %v2621 = vpack.c.b16 %v2033, %v2021
        %v2622 = vpack.c.b16 %v2034, %v2022
        %v2623 = vpack.c.b16 %v2035, %v2023
        %v2624 = vpack.c.b16 %v2036, %v2024
        %v2625 = vpack.c.b16 %v2049, %v2037
        %v2626 = vpack.c.b16 %v2050, %v2038
        %v2627 = vpack.c.b16 %v2051, %v2039
        %v2628 = vpack.c.b16 %v2052, %v2040
        %v2629 = vpack.c.b16 %v2053, %v2041
        %v2630 = vpack.c.b16 %v2054, %v2042
        %v2631 = vpack.c.b16 %v2055, %v2043
        %v2632 = vpack.c.b16 %v2056, %v2044
        %v2633 = vpack.c.b16 %v2057, %v2045
        %v2634 = vpack.c.b16 %v2058, %v2046
        %v2635 = vpack.c.b16 %v2059, %v2047
        %v2636 = vpack.c.b16 %v2060, %v2048
        %v2637 = vpack.c.b16 %v2073, %v2061
        %v2638 = vpack.c.b16 %v2074, %v2062
        %v2639 = vpack.c.b16 %v2075, %v2063
        %v2640 = vpack.c.b16 %v2076, %v2064
        %v2641 = vpack.c.b16 %v2077, %v2065
        %v2642 = vpack.c.b16 %v2078, %v2066
        %v2643 = vpack.c.b16 %v2079, %v2067
        %v2644 = vpack.c.b16 %v2080, %v2068
        %v2645 = vpack.c.b16 %v2081, %v2069
        %v2646 = vpack.c.b16 %v2082, %v2070
        %v2647 = vpack.c.b16 %v2083, %v2071
        %v2648 = vpack.c.b16 %v2084, %v2072
        %v2649 = vpack.c.b16 %v2097, %v2085
        %v2650 = vpack.c.b16 %v2098, %v2086
        %v2651 = vpack.c.b16 %v2099, %v2087
        %v2652 = vpack.c.b16 %v2100, %v2088
        %v2653 = vpack.c.b16 %v2101, %v2089
        %v2654 = vpack.c.b16 %v2102, %v2090
        %v2655 = vpack.c.b16 %v2103, %v2091
        %v2656 = vpack.c.b16 %v2104, %v2092
        %v2657 = vpack.c.b16 %v2105, %v2093
        %v2658 = vpack.c.b16 %v2106, %v2094
        %v2659 = vpack.c.b16 %v2107, %v2095
        %v2660 = vpack.c.b16 %v2108, %v2096
        %v2661 = vpack.c.b16 %v2121, %v2109
        %v2662 = vpack.c.b16 %v2122, %v2110
        %v2663 = vpack.c.b16 %v2123, %v2111
        %v2664 = vpack.c.b16 %v2124, %v2112
        %v2665 = vpack.c.b16 %v2125, %v2113
        %v2666 = vpack.c.b16 %v2126, %v2114
        %v2667 = vpack.c.b16 %v2127, %v2115
        %v2668 = vpack.c.b16 %v2128, %v2116
        %v2669 = vpack.c.b16 %v2129, %v2117
        %v2670 = vpack.c.b16 %v2130, %v2118
        %v2671 = vpack.c.b16 %v2131, %v2119
        %v2672 = vpack.c.b16 %v2132, %v2120
        %v2673 = vpack.c.b16 %v2145, %v2133
        %v2674 = vpack.c.b16 %v2146, %v2134
        %v2675 = vpack.c.b16 %v2147, %v2135
        %v2676 = vpack.c.b16 %v2148, %v2136
        %v2677 = vpack.c.b16 %v2149, %v2137
        %v2678 = vpack.c.b16 %v2150, %v2138
        %v2679 = vpack.c.b16 %v2151, %v2139
        %v2680 = vpack.c.b16 %v2152, %v2140
        %v2681 = vpack.c.b16 %v2153, %v2141
        %v2682 = vpack.c.b16 %v2154, %v2142
        %v2683 = vpack.c.b16 %v2155, %v2143
        %v2684 = vpack.c.b16 %v2156, %v2144
        %v2685 = vpack.c.b16 %v2169, %v2157
        %v2686 = vpack.c.b16 %v2170, %v2158
        %v2687 = vpack.c.b16 %v2171, %v2159
        %v2688 = vpack.c.b16 %v2172, %v2160
        %v2689 = vpack.c.b16 %v2173, %v2161
        %v2690 = vpack.c.b16 %v2174, %v2162
        %v2691 = vpack.c.b16 %v2175, %v2163
        %v2692 = vpack.c.b16 %v2176, %v2164
        %v2693 = vpack.c.b16 %v2177, %v2165
        %v2694 = vpack.c.b16 %v2178, %v2166
        %v2695 = vpack.c.b16 %v2179, %v2167
        %v2696 = vpack.c.b16 %v2180, %v2168
        %v2697 = vpack.c.b16 %v2193, %v2181
        %v2698 = vpack.c.b16 %v2194, %v2182
        %v2699 = vpack.c.b16 %v2195, %v2183
        %v2700 = vpack.c.b16 %v2196, %v2184
        %v2701 = vpack.c.b16 %v2197, %v2185
        %v2702 = vpack.c.b16 %v2198, %v2186
        %v2703 = vpack.c.b16 %v2199, %v2187
        %v2704 = vpack.c.b16 %v2200, %v2188
        %v2705 = vpack.c.b16 %v2201, %v2189
        %v2706 = vpack.c.b16 %v2202, %v2190
        %v2707 = vpack.c.b16 %v2203, %v2191
        %v2708 = vpack.c.b16 %v2204, %v2192
        %v2709 = vpack.c.b16 %v2217, %v2205
        %v2710 = vpack.c.b16 %v2218, %v2206
        %v2711 = vpack.c.b16 %v2219, %v2207
        %v2712 = vpack.c.b16 %v2220, %v2208
        %v2713 = vpack.c.b16 %v2221, %v2209
        %v2714 = vpack.c.b16 %v2222, %v2210
        %v2715 = vpack.c.b16 %v2223, %v2211
        %v2716 = vpack.c.b16 %v2224, %v2212
        %v2717 = vpack.c.b16 %v2225, %v2213
        %v2718 = vpack.c.b16 %v2226, %v2214
        %v2719 = vpack.c.b16 %v2227, %v2215
        %v2720 = vpack.c.b16 %v2228, %v2216
        %v2721 = vpack.c.b16 %v2241, %v2229
        %v2722 = vpack.c.b16 %v2242, %v2230
        %v2723 = vpack.c.b16 %v2243, %v2231
        %v2724 = vpack.c.b16 %v2244, %v2232
        %v2725 = vpack.c.b16 %v2245, %v2233
        %v2726 = vpack.c.b16 %v2246, %v2234
        %v2727 = vpack.c.b16 %v2247, %v2235
        %v2728 = vpack.c.b16 %v2248, %v2236
        %v2729 = vpack.c.b16 %v2249, %v2237
        %v2730 = vpack.c.b16 %v2250, %v2238
        %v2731 = vpack.c.b16 %v2251, %v2239
        %v2732 = vpack.c.b16 %v2252, %v2240
        %v2733 = vpack.c.b16 %v2265, %v2253
        %v2734 = vpack.c.b16 %v2266, %v2254
        %v2735 = vpack.c.b16 %v2267, %v2255
        %v2736 = vpack.c.b16 %v2268, %v2256
        %v2737 = vpack.c.b16 %v2269, %v2257
        %v2738 = vpack.c.b16 %v2270, %v2258
        %v2739 = vpack.c.b16 %v2271, %v2259
        %v2740 = vpack.c.b16 %v2272, %v2260
        %v2741 = vpack.c.b16 %v2273, %v2261
        %v2742 = vpack.c.b16 %v2274, %v2262
        %v2743 = vpack.c.b16 %v2275, %v2263
        %v2744 = vpack.c.b16 %v2276, %v2264
        %v2745 = vpack.c.b16 %v2289, %v2277
        %v2746 = vpack.c.b16 %v2290, %v2278
        %v2747 = vpack.c.b16 %v2291, %v2279
        %v2748 = vpack.c.b16 %v2292, %v2280
        %v2749 = vpack.c.b16 %v2293, %v2281
        %v2750 = vpack.c.b16 %v2294, %v2282
        %v2751 = vpack.c.b16 %v2295, %v2283
        %v2752 = vpack.c.b16 %v2296, %v2284
        %v2753 = vpack.c.b16 %v2297, %v2285
        %v2754 = vpack.c.b16 %v2298, %v2286
        %v2755 = vpack.c.b16 %v2299, %v2287
        %v2756 = vpack.c.b16 %v2300, %v2288
        %v2757 = vpack.c.b16 %v2313, %v2301
        %v2758 = vpack.c.b16 %v2314, %v2302
        %v2759 = vpack.c.b16 %v2315, %v2303
        %v2760 = vpack.c.b16 %v2316, %v2304
        %v2761 = vpack.c.b16 %v2317, %v2305
        %v2762 = vpack.c.b16 %v2318, %v2306
        %v2763 = vpack.c.b16 %v2319, %v2307
        %v2764 = vpack.c.b16 %v2320, %v2308
        %v2765 = vpack.c.b16 %v2321, %v2309
        %v2766 = vpack.c.b16 %v2322, %v2310
        %v2767 = vpack.c.b16 %v2323, %v2311
        %v2768 = vpack.c.b16 %v2324, %v2312
        %v2769 = vpack.c.b16 %v2337, %v2325
        %v2770 = vpack.c.b16 %v2338, %v2326
        %v2771 = vpack.c.b16 %v2339, %v2327
        %v2772 = vpack.c.b16 %v2340, %v2328
        %v2773 = vpack.c.b16 %v2341, %v2329
        %v2774 = vpack.c.b16 %v2342, %v2330
        %v2775 = vpack.c.b16 %v2343, %v2331
        %v2776 = vpack.c.b16 %v2344, %v2332
        %v2777 = vpack.c.b16 %v2345, %v2333
        %v2778 = vpack.c.b16 %v2346, %v2334
        %v2779 = vpack.c.b16 %v2347, %v2335
        %v2780 = vpack.c.b16 %v2348, %v2336
        %v2781 = vpack.c.b16 %v2361, %v2349
        %v2782 = vpack.c.b16 %v2362, %v2350
        %v2783 = vpack.c.b16 %v2363, %v2351
        %v2784 = vpack.c.b16 %v2364, %v2352
        %v2785 = vpack.c.b16 %v2365, %v2353
        %v2786 = vpack.c.b16 %v2366, %v2354
        %v2787 = vpack.c.b16 %v2367, %v2355
        %v2788 = vpack.c.b16 %v2368, %v2356
        %v2789 = vpack.c.b16 %v2369, %v2357
        %v2790 = vpack.c.b16 %v2370, %v2358
        %v2791 = vpack.c.b16 %v2371, %v2359
        %v2792 = vpack.c.b16 %v2372, %v2360
        %v2793 = vpack.c.b16 %v2385, %v2373
        %v2794 = vpack.c.b16 %v2386, %v2374
        %v2795 = vpack.c.b16 %v2387, %v2375
        %v2796 = vpack.c.b16 %v2388, %v2376
        %v2797 = vpack.c.b16 %v2389, %v2377
        %v2798 = vpack.c.b16 %v2390, %v2378
        %v2799 = vpack.c.b16 %v2391, %v2379
        %v2800 = vpack.c.b16 %v2392, %v2380
        %v2801 = vpack.c.b16 %v2393, %v2381
        %v2802 = vpack.c.b16 %v2394, %v2382
        %v2803 = vpack.c.b16 %v2395, %v2383
        %v2804 = vpack.c.b16 %v2396, %v2384
        %v2805 = vpack.c.b16 %v2409, %v2397
        %v2806 = vpack.c.b16 %v2410, %v2398
        %v2807 = vpack.c.b16 %v2411, %v2399
        %v2808 = vpack.c.b16 %v2412, %v2400
        %v2809 = vpack.c.b16 %v2413, %v2401
        %v2810 = vpack.c.b16 %v2414, %v2402
        %v2811 = vpack.c.b16 %v2415, %v2403
        %v2812 = vpack.c.b16 %v2416, %v2404
        %v2813 = vpack.c.b16 %v2417, %v2405
        %v2814 = vpack.c.b16 %v2418, %v2406
        %v2815 = vpack.c.b16 %v2419, %v2407
        %v2816 = vpack.c.b16 %v2420, %v2408
        %v2817 = vpack.c.b16 %v2433, %v2421
        %v2818 = vpack.c.b16 %v2434, %v2422
        %v2819 = vpack.c.b16 %v2435, %v2423
        %v2820 = vpack.c.b16 %v2436, %v2424
        %v2821 = vpack.c.b16 %v2437, %v2425
        %v2822 = vpack.c.b16 %v2438, %v2426
        %v2823 = vpack.c.b16 %v2439, %v2427
        %v2824 = vpack.c.b16 %v2440, %v2428
        %v2825 = vpack.c.b16 %v2441, %v2429
        %v2826 = vpack.c.b16 %v2442, %v2430
        %v2827 = vpack.c.b16 %v2443, %v2431
        %v2828 = vpack.c.b16 %v2444, %v2432
        %3213 = vmatprep.subr.bf16.mxu0 %v2446
        %3214 = vmatpush1.bf16.msra.mxu0 %v2445
        %3215 = vmatprep.subr.bf16.mxu0 %v2458
        %3216 = vmatpush1.bf16.msra.mxu0 %v2457
        %3217 = vmatprep.subr.bf16.mxu0 %v2470
        %3218 = vmatpush1.bf16.msra.mxu0 %v2469
        %3219 = vmatprep.subr.bf16.mxu0 %v2482
        %3220 = vmatpush1.bf16.msra.mxu0 %v2481
        %3221 = vmatprep.subr.bf16.mxu0 %v2494
        %3222 = vmatpush1.bf16.msra.mxu0 %v2493
        %3223 = vmatprep.subr.bf16.mxu0 %v2506
        %3224 = vmatpush1.bf16.msra.mxu0 %v2505
        %3225 = vmatprep.subr.bf16.mxu0 %v2518
        %3226 = vmatpush1.bf16.msra.mxu0 %v2517
        %3227 = vmatprep.subr.bf16.mxu0 %v2530
        %3228 = vmatpush1.bf16.msra.mxu0 %v2529
        %3229 = vmatprep.subr.bf16.mxu0 %v2542
        %3230 = vmatpush1.bf16.msra.mxu0 %v2541
        %3231 = vmatprep.subr.bf16.mxu0 %v2554
        %3232 = vmatpush1.bf16.msra.mxu0 %v2553
        %3233 = vmatprep.subr.bf16.mxu0 %v2566
        %3234 = vmatpush1.bf16.msra.mxu0 %v2565
        %3235 = vmatprep.subr.bf16.mxu0 %v2578
        %3236 = vmatpush1.bf16.msra.mxu0 %v2577
        %3237 = vmatprep.subr.bf16.mxu0 %v2590
        %3238 = vmatpush1.bf16.msra.mxu0 %v2589
        %3239 = vmatprep.subr.bf16.mxu0 %v2602
        %3240 = vmatpush1.bf16.msra.mxu0 %v2601
        %3241 = vmatprep.subr.bf16.mxu0 %v2614
        %3242 = vmatpush1.bf16.msra.mxu0 %v2613
        %3243 = vmatprep.subr.bf16.mxu0 %v2626
        %3244 = vmatpush1.bf16.msra.mxu0 %v2625
        %3245 = vmatprep.mubr.bf16.mxu0 %v1286
        %3246 = vmatmul.mubr.bf16.gmra.mrb[0].mxu0 %v1285
        %v3247 = vpop.f32.mrb[0].mxu0
        %v3248 = vadd.f32 %v1222, %v3247
        %v3249 = vpop.f32.mrb[0].mxu0
        %v3250 = vadd.f32 %v1226, %v3249
        %v3251 = vpop.f32.mrb[0].mxu0
        %v3252 = vpop.f32.mrb[0].mxu0
        %3253 = vdwg.mxu0
        %3254 = vmatprep.subr.bf16.mxu0 %v2638
        %3255 = vmatpush1.bf16.msra.mxu0 %v2637
        %3256 = vmatprep.subr.bf16.mxu0 %v2650
        %3257 = vmatpush1.bf16.msra.mxu0 %v2649
        %3258 = vmatprep.subr.bf16.mxu0 %v2662
        %3259 = vmatpush1.bf16.msra.mxu0 %v2661
        %3260 = vmatprep.subr.bf16.mxu0 %v2674
        %3261 = vmatpush1.bf16.msra.mxu0 %v2673
        %3262 = vmatprep.subr.bf16.mxu0 %v2686
        %3263 = vmatpush1.bf16.msra.mxu0 %v2685
        %3264 = vmatprep.subr.bf16.mxu0 %v2698
        %3265 = vmatpush1.bf16.msra.mxu0 %v2697
        %3266 = vmatprep.subr.bf16.mxu0 %v2710
        %3267 = vmatpush1.bf16.msra.mxu0 %v2709
        %3268 = vmatprep.subr.bf16.mxu0 %v2722
        %3269 = vmatpush1.bf16.msra.mxu0 %v2721
        %3270 = vmatprep.subr.bf16.mxu0 %v2734
        %3271 = vmatpush1.bf16.msra.mxu0 %v2733
        %3272 = vmatprep.subr.bf16.mxu0 %v2746
        %3273 = vmatpush1.bf16.msra.mxu0 %v2745
        %3274 = vmatprep.subr.bf16.mxu0 %v2758
        %3275 = vmatpush1.bf16.msra.mxu0 %v2757
        %3276 = vmatprep.subr.bf16.mxu0 %v2770
        %3277 = vmatpush1.bf16.msra.mxu0 %v2769
        %3278 = vmatprep.subr.bf16.mxu0 %v2782
        %3279 = vmatpush1.bf16.msra.mxu0 %v2781
        %3280 = vmatprep.subr.bf16.mxu0 %v2794
        %3281 = vmatpush1.bf16.msra.mxu0 %v2793
        %3282 = vmatprep.subr.bf16.mxu0 %v2806
        %3283 = vmatpush1.bf16.msra.mxu0 %v2805
        %3284 = vmatprep.subr.bf16.mxu0 %v2818
        %3285 = vmatpush1.bf16.msra.mxu0 %v2817
        %3286 = vmatprep.mubr.bf16.mxu0 %v1288
        %3287 = vmatmul.mubr.bf16.gmra.mrb[0].mxu0 %v1287
        %v3288 = vpop.f32.mrb[0].mxu0
        %v3289 = vadd.f32 %v3248, %v3288
        %v3290 = vpop.f32.mrb[0].mxu0
        %v3291 = vadd.f32 %v3250, %v3290
        %v3292 = vpop.f32.mrb[0].mxu0
        %v3293 = vpop.f32.mrb[0].mxu0
        %3294 = vdwg.mxu0
        %3295 = vmatprep.subr.bf16.mxu0 %v2448
        %3296 = vmatpush1.bf16.msra.mxu0 %v2447
        %3297 = vmatprep.subr.bf16.mxu0 %v2460
        %3298 = vmatpush1.bf16.msra.mxu0 %v2459
        %3299 = vmatprep.subr.bf16.mxu0 %v2472
        %3300 = vmatpush1.bf16.msra.mxu0 %v2471
        %3301 = vmatprep.subr.bf16.mxu0 %v2484
        %3302 = vmatpush1.bf16.msra.mxu0 %v2483
        %3303 = vmatprep.subr.bf16.mxu0 %v2496
        %3304 = vmatpush1.bf16.msra.mxu0 %v2495
        %3305 = vmatprep.subr.bf16.mxu0 %v2508
        %3306 = vmatpush1.bf16.msra.mxu0 %v2507
        %3307 = vmatprep.subr.bf16.mxu0 %v2520
        %3308 = vmatpush1.bf16.msra.mxu0 %v2519
        %3309 = vmatprep.subr.bf16.mxu0 %v2532
        %3310 = vmatpush1.bf16.msra.mxu0 %v2531
        %3311 = vmatprep.subr.bf16.mxu0 %v2544
        %3312 = vmatpush1.bf16.msra.mxu0 %v2543
        %3313 = vmatprep.subr.bf16.mxu0 %v2556
        %3314 = vmatpush1.bf16.msra.mxu0 %v2555
        %3315 = vmatprep.subr.bf16.mxu0 %v2568
        %3316 = vmatpush1.bf16.msra.mxu0 %v2567
        %3317 = vmatprep.subr.bf16.mxu0 %v2580
        %3318 = vmatpush1.bf16.msra.mxu0 %v2579
        %3319 = vmatprep.subr.bf16.mxu0 %v2592
        %3320 = vmatpush1.bf16.msra.mxu0 %v2591
        %3321 = vmatprep.subr.bf16.mxu0 %v2604
        %3322 = vmatpush1.bf16.msra.mxu0 %v2603
        %3323 = vmatprep.subr.bf16.mxu0 %v2616
        %3324 = vmatpush1.bf16.msra.mxu0 %v2615
        %3325 = vmatprep.subr.bf16.mxu0 %v2628
        %3326 = vmatpush1.bf16.msra.mxu0 %v2627
        %3327 = vmatprep.mubr.bf16.mxu0 %v1286
        %3328 = vmatmul.mubr.bf16.gmra.mrb[0].mxu0 %v1285
        %v3329 = vpop.f32.mrb[0].mxu0
        %v3330 = vadd.f32 %v1230, %v3329
        %v3331 = vpop.f32.mrb[0].mxu0
        %v3332 = vadd.f32 %v1234, %v3331
        %v3333 = vpop.f32.mrb[0].mxu0
        %v3334 = vpop.f32.mrb[0].mxu0
        %3335 = vdwg.mxu0
        %3336 = vmatprep.subr.bf16.mxu0 %v2640
        %3337 = vmatpush1.bf16.msra.mxu0 %v2639
        %3338 = vmatprep.subr.bf16.mxu0 %v2652
        %3339 = vmatpush1.bf16.msra.mxu0 %v2651
        %3340 = vmatprep.subr.bf16.mxu0 %v2664
        %3341 = vmatpush1.bf16.msra.mxu0 %v2663
        %3342 = vmatprep.subr.bf16.mxu0 %v2676
        %3343 = vmatpush1.bf16.msra.mxu0 %v2675
        %3344 = vmatprep.subr.bf16.mxu0 %v2688
        %3345 = vmatpush1.bf16.msra.mxu0 %v2687
        %3346 = vmatprep.subr.bf16.mxu0 %v2700
        %3347 = vmatpush1.bf16.msra.mxu0 %v2699
        %3348 = vmatprep.subr.bf16.mxu0 %v2712
        %3349 = vmatpush1.bf16.msra.mxu0 %v2711
        %3350 = vmatprep.subr.bf16.mxu0 %v2724
        %3351 = vmatpush1.bf16.msra.mxu0 %v2723
        %3352 = vmatprep.subr.bf16.mxu0 %v2736
        %3353 = vmatpush1.bf16.msra.mxu0 %v2735
        %3354 = vmatprep.subr.bf16.mxu0 %v2748
        %3355 = vmatpush1.bf16.msra.mxu0 %v2747
        %3356 = vmatprep.subr.bf16.mxu0 %v2760
        %3357 = vmatpush1.bf16.msra.mxu0 %v2759
        %3358 = vmatprep.subr.bf16.mxu0 %v2772
        %3359 = vmatpush1.bf16.msra.mxu0 %v2771
        %3360 = vmatprep.subr.bf16.mxu0 %v2784
        %3361 = vmatpush1.bf16.msra.mxu0 %v2783
        %3362 = vmatprep.subr.bf16.mxu0 %v2796
        %3363 = vmatpush1.bf16.msra.mxu0 %v2795
        %3364 = vmatprep.subr.bf16.mxu0 %v2808
        %3365 = vmatpush1.bf16.msra.mxu0 %v2807
        %3366 = vmatprep.subr.bf16.mxu0 %v2820
        %3367 = vmatpush1.bf16.msra.mxu0 %v2819
        %3368 = vmatprep.mubr.bf16.mxu0 %v1288
        %3369 = vmatmul.mubr.bf16.gmra.mrb[0].mxu0 %v1287
        %v3370 = vpop.f32.mrb[0].mxu0
        %v3371 = vadd.f32 %v3330, %v3370
        %v3372 = vpop.f32.mrb[0].mxu0
        %v3373 = vadd.f32 %v3332, %v3372
        %v3374 = vpop.f32.mrb[0].mxu0
        %v3375 = vpop.f32.mrb[0].mxu0
        %3376 = vdwg.mxu0
        %3377 = vmatprep.subr.bf16.mxu0 %v2450
        %3378 = vmatpush1.bf16.msra.mxu0 %v2449
        %3379 = vmatprep.subr.bf16.mxu0 %v2462
        %3380 = vmatpush1.bf16.msra.mxu0 %v2461
        %3381 = vmatprep.subr.bf16.mxu0 %v2474
        %3382 = vmatpush1.bf16.msra.mxu0 %v2473
        %3383 = vmatprep.subr.bf16.mxu0 %v2486
        %3384 = vmatpush1.bf16.msra.mxu0 %v2485
        %3385 = vmatprep.subr.bf16.mxu0 %v2498
        %3386 = vmatpush1.bf16.msra.mxu0 %v2497
        %3387 = vmatprep.subr.bf16.mxu0 %v2510
        %3388 = vmatpush1.bf16.msra.mxu0 %v2509
        %3389 = vmatprep.subr.bf16.mxu0 %v2522
        %3390 = vmatpush1.bf16.msra.mxu0 %v2521
        %3391 = vmatprep.subr.bf16.mxu0 %v2534
        %3392 = vmatpush1.bf16.msra.mxu0 %v2533
        %3393 = vmatprep.subr.bf16.mxu0 %v2546
        %3394 = vmatpush1.bf16.msra.mxu0 %v2545
        %3395 = vmatprep.subr.bf16.mxu0 %v2558
        %3396 = vmatpush1.bf16.msra.mxu0 %v2557
        %3397 = vmatprep.subr.bf16.mxu0 %v2570
        %3398 = vmatpush1.bf16.msra.mxu0 %v2569
        %3399 = vmatprep.subr.bf16.mxu0 %v2582
        %3400 = vmatpush1.bf16.msra.mxu0 %v2581
        %3401 = vmatprep.subr.bf16.mxu0 %v2594
        %3402 = vmatpush1.bf16.msra.mxu0 %v2593
        %3403 = vmatprep.subr.bf16.mxu0 %v2606
        %3404 = vmatpush1.bf16.msra.mxu0 %v2605
        %3405 = vmatprep.subr.bf16.mxu0 %v2618
        %3406 = vmatpush1.bf16.msra.mxu0 %v2617
        %3407 = vmatprep.subr.bf16.mxu0 %v2630
        %3408 = vmatpush1.bf16.msra.mxu0 %v2629
        %3409 = vmatprep.mubr.bf16.mxu0 %v1286
        %3410 = vmatmul.mubr.bf16.gmra.mrb[0].mxu0 %v1285
        %v3411 = vpop.f32.mrb[0].mxu0
        %v3412 = vadd.f32 %v1238, %v3411
        %v3413 = vpop.f32.mrb[0].mxu0
        %v3414 = vadd.f32 %v1242, %v3413
        %v3415 = vpop.f32.mrb[0].mxu0
        %v3416 = vpop.f32.mrb[0].mxu0
        %3417 = vdwg.mxu0
        %3418 = vmatprep.subr.bf16.mxu0 %v2642
        %3419 = vmatpush1.bf16.msra.mxu0 %v2641
        %3420 = vmatprep.subr.bf16.mxu0 %v2654
        %3421 = vmatpush1.bf16.msra.mxu0 %v2653
        %3422 = vmatprep.subr.bf16.mxu0 %v2666
        %3423 = vmatpush1.bf16.msra.mxu0 %v2665
        %3424 = vmatprep.subr.bf16.mxu0 %v2678
        %3425 = vmatpush1.bf16.msra.mxu0 %v2677
        %3426 = vmatprep.subr.bf16.mxu0 %v2690
        %3427 = vmatpush1.bf16.msra.mxu0 %v2689
        %3428 = vmatprep.subr.bf16.mxu0 %v2702
        %3429 = vmatpush1.bf16.msra.mxu0 %v2701
        %3430 = vmatprep.subr.bf16.mxu0 %v2714
        %3431 = vmatpush1.bf16.msra.mxu0 %v2713
        %3432 = vmatprep.subr.bf16.mxu0 %v2726
        %3433 = vmatpush1.bf16.msra.mxu0 %v2725
        %3434 = vmatprep.subr.bf16.mxu0 %v2738
        %3435 = vmatpush1.bf16.msra.mxu0 %v2737
        %3436 = vmatprep.subr.bf16.mxu0 %v2750
        %3437 = vmatpush1.bf16.msra.mxu0 %v2749
        %3438 = vmatprep.subr.bf16.mxu0 %v2762
        %3439 = vmatpush1.bf16.msra.mxu0 %v2761
        %3440 = vmatprep.subr.bf16.mxu0 %v2774
        %3441 = vmatpush1.bf16.msra.mxu0 %v2773
        %3442 = vmatprep.subr.bf16.mxu0 %v2786
        %3443 = vmatpush1.bf16.msra.mxu0 %v2785
        %3444 = vmatprep.subr.bf16.mxu0 %v2798
        %3445 = vmatpush1.bf16.msra.mxu0 %v2797
        %3446 = vmatprep.subr.bf16.mxu0 %v2810
        %3447 = vmatpush1.bf16.msra.mxu0 %v2809
        %3448 = vmatprep.subr.bf16.mxu0 %v2822
        %3449 = vmatpush1.bf16.msra.mxu0 %v2821
        %3450 = vmatprep.mubr.bf16.mxu0 %v1288
        %3451 = vmatmul.mubr.bf16.gmra.mrb[0].mxu0 %v1287
        %v3452 = vpop.f32.mrb[0].mxu0
        %v3453 = vadd.f32 %v3412, %v3452
        %v3454 = vpop.f32.mrb[0].mxu0
        %v3455 = vadd.f32 %v3414, %v3454
        %v3456 = vpop.f32.mrb[0].mxu0
        %v3457 = vpop.f32.mrb[0].mxu0
        %3458 = vdwg.mxu0
        %3459 = vmatprep.subr.bf16.mxu0 %v2452
        %3460 = vmatpush1.bf16.msra.mxu0 %v2451
        %3461 = vmatprep.subr.bf16.mxu0 %v2464
        %3462 = vmatpush1.bf16.msra.mxu0 %v2463
        %3463 = vmatprep.subr.bf16.mxu0 %v2476
        %3464 = vmatpush1.bf16.msra.mxu0 %v2475
        %3465 = vmatprep.subr.bf16.mxu0 %v2488
        %3466 = vmatpush1.bf16.msra.mxu0 %v2487
        %3467 = vmatprep.subr.bf16.mxu0 %v2500
        %3468 = vmatpush1.bf16.msra.mxu0 %v2499
        %3469 = vmatprep.subr.bf16.mxu0 %v2512
        %3470 = vmatpush1.bf16.msra.mxu0 %v2511
        %3471 = vmatprep.subr.bf16.mxu0 %v2524
        %3472 = vmatpush1.bf16.msra.mxu0 %v2523
        %3473 = vmatprep.subr.bf16.mxu0 %v2536
        %3474 = vmatpush1.bf16.msra.mxu0 %v2535
        %3475 = vmatprep.subr.bf16.mxu0 %v2548
        %3476 = vmatpush1.bf16.msra.mxu0 %v2547
        %3477 = vmatprep.subr.bf16.mxu0 %v2560
        %3478 = vmatpush1.bf16.msra.mxu0 %v2559
        %3479 = vmatprep.subr.bf16.mxu0 %v2572
        %3480 = vmatpush1.bf16.msra.mxu0 %v2571
        %3481 = vmatprep.subr.bf16.mxu0 %v2584
        %3482 = vmatpush1.bf16.msra.mxu0 %v2583
        %3483 = vmatprep.subr.bf16.mxu0 %v2596
        %3484 = vmatpush1.bf16.msra.mxu0 %v2595
        %3485 = vmatprep.subr.bf16.mxu0 %v2608
        %3486 = vmatpush1.bf16.msra.mxu0 %v2607
        %3487 = vmatprep.subr.bf16.mxu0 %v2620
        %3488 = vmatpush1.bf16.msra.mxu0 %v2619
        %3489 = vmatprep.subr.bf16.mxu0 %v2632
        %3490 = vmatpush1.bf16.msra.mxu0 %v2631
        %3491 = vmatprep.mubr.bf16.mxu0 %v1286
        %3492 = vmatmul.mubr.bf16.gmra.mrb[0].mxu0 %v1285
        %v3493 = vpop.f32.mrb[0].mxu0
        %v3494 = vadd.f32 %v1246, %v3493
        %v3495 = vpop.f32.mrb[0].mxu0
        %v3496 = vadd.f32 %v1250, %v3495
        %v3497 = vpop.f32.mrb[0].mxu0
        %v3498 = vpop.f32.mrb[0].mxu0
        %3499 = vdwg.mxu0
        %3500 = vmatprep.subr.bf16.mxu0 %v2644
        %3501 = vmatpush1.bf16.msra.mxu0 %v2643
        %3502 = vmatprep.subr.bf16.mxu0 %v2656
        %3503 = vmatpush1.bf16.msra.mxu0 %v2655
        %3504 = vmatprep.subr.bf16.mxu0 %v2668
        %3505 = vmatpush1.bf16.msra.mxu0 %v2667
        %3506 = vmatprep.subr.bf16.mxu0 %v2680
        %3507 = vmatpush1.bf16.msra.mxu0 %v2679
        %3508 = vmatprep.subr.bf16.mxu0 %v2692
        %3509 = vmatpush1.bf16.msra.mxu0 %v2691
        %3510 = vmatprep.subr.bf16.mxu0 %v2704
        %3511 = vmatpush1.bf16.msra.mxu0 %v2703
        %3512 = vmatprep.subr.bf16.mxu0 %v2716
        %3513 = vmatpush1.bf16.msra.mxu0 %v2715
        %3514 = vmatprep.subr.bf16.mxu0 %v2728
        %3515 = vmatpush1.bf16.msra.mxu0 %v2727
        %3516 = vmatprep.subr.bf16.mxu0 %v2740
        %3517 = vmatpush1.bf16.msra.mxu0 %v2739
        %3518 = vmatprep.subr.bf16.mxu0 %v2752
        %3519 = vmatpush1.bf16.msra.mxu0 %v2751
        %3520 = vmatprep.subr.bf16.mxu0 %v2764
        %3521 = vmatpush1.bf16.msra.mxu0 %v2763
        %3522 = vmatprep.subr.bf16.mxu0 %v2776
        %3523 = vmatpush1.bf16.msra.mxu0 %v2775
        %3524 = vmatprep.subr.bf16.mxu0 %v2788
        %3525 = vmatpush1.bf16.msra.mxu0 %v2787
        %3526 = vmatprep.subr.bf16.mxu0 %v2800
        %3527 = vmatpush1.bf16.msra.mxu0 %v2799
        %3528 = vmatprep.subr.bf16.mxu0 %v2812
        %3529 = vmatpush1.bf16.msra.mxu0 %v2811
        %3530 = vmatprep.subr.bf16.mxu0 %v2824
        %3531 = vmatpush1.bf16.msra.mxu0 %v2823
        %3532 = vmatprep.mubr.bf16.mxu0 %v1288
        %3533 = vmatmul.mubr.bf16.gmra.mrb[0].mxu0 %v1287
        %v3534 = vpop.f32.mrb[0].mxu0
        %v3535 = vadd.f32 %v3494, %v3534
        %v3536 = vpop.f32.mrb[0].mxu0
        %v3537 = vadd.f32 %v3496, %v3536
        %v3538 = vpop.f32.mrb[0].mxu0
        %v3539 = vpop.f32.mrb[0].mxu0
        %3540 = vdwg.mxu0
        %3541 = vmatprep.subr.bf16.mxu0 %v2454
        %3542 = vmatpush1.bf16.msra.mxu0 %v2453
        %3543 = vmatprep.subr.bf16.mxu0 %v2466
        %3544 = vmatpush1.bf16.msra.mxu0 %v2465
        %3545 = vmatprep.subr.bf16.mxu0 %v2478
        %3546 = vmatpush1.bf16.msra.mxu0 %v2477
        %3547 = vmatprep.subr.bf16.mxu0 %v2490
        %3548 = vmatpush1.bf16.msra.mxu0 %v2489
        %3549 = vmatprep.subr.bf16.mxu0 %v2502
        %3550 = vmatpush1.bf16.msra.mxu0 %v2501
        %3551 = vmatprep.subr.bf16.mxu0 %v2514
        %3552 = vmatpush1.bf16.msra.mxu0 %v2513
        %3553 = vmatprep.subr.bf16.mxu0 %v2526
        %3554 = vmatpush1.bf16.msra.mxu0 %v2525
        %3555 = vmatprep.subr.bf16.mxu0 %v2538
        %3556 = vmatpush1.bf16.msra.mxu0 %v2537
        %3557 = vmatprep.subr.bf16.mxu0 %v2550
        %3558 = vmatpush1.bf16.msra.mxu0 %v2549
        %3559 = vmatprep.subr.bf16.mxu0 %v2562
        %3560 = vmatpush1.bf16.msra.mxu0 %v2561
        %3561 = vmatprep.subr.bf16.mxu0 %v2574
        %3562 = vmatpush1.bf16.msra.mxu0 %v2573
        %3563 = vmatprep.subr.bf16.mxu0 %v2586
        %3564 = vmatpush1.bf16.msra.mxu0 %v2585
        %3565 = vmatprep.subr.bf16.mxu0 %v2598
        %3566 = vmatpush1.bf16.msra.mxu0 %v2597
        %3567 = vmatprep.subr.bf16.mxu0 %v2610
        %3568 = vmatpush1.bf16.msra.mxu0 %v2609
        %3569 = vmatprep.subr.bf16.mxu0 %v2622
        %3570 = vmatpush1.bf16.msra.mxu0 %v2621
        %3571 = vmatprep.subr.bf16.mxu0 %v2634
        %3572 = vmatpush1.bf16.msra.mxu0 %v2633
        %3573 = vmatprep.mubr.bf16.mxu0 %v1286
        %3574 = vmatmul.mubr.bf16.gmra.mrb[0].mxu0 %v1285
        %v3575 = vpop.f32.mrb[0].mxu0
        %v3576 = vadd.f32 %v1254, %v3575
        %v3577 = vpop.f32.mrb[0].mxu0
        %v3578 = vadd.f32 %v1258, %v3577
        %v3579 = vpop.f32.mrb[0].mxu0
        %v3580 = vpop.f32.mrb[0].mxu0
        %3581 = vdwg.mxu0
        %3582 = vmatprep.subr.bf16.mxu0 %v2646
        %3583 = vmatpush1.bf16.msra.mxu0 %v2645
        %3584 = vmatprep.subr.bf16.mxu0 %v2658
        %3585 = vmatpush1.bf16.msra.mxu0 %v2657
        %3586 = vmatprep.subr.bf16.mxu0 %v2670
        %3587 = vmatpush1.bf16.msra.mxu0 %v2669
        %3588 = vmatprep.subr.bf16.mxu0 %v2682
        %3589 = vmatpush1.bf16.msra.mxu0 %v2681
        %3590 = vmatprep.subr.bf16.mxu0 %v2694
        %3591 = vmatpush1.bf16.msra.mxu0 %v2693
        %3592 = vmatprep.subr.bf16.mxu0 %v2706
        %3593 = vmatpush1.bf16.msra.mxu0 %v2705
        %3594 = vmatprep.subr.bf16.mxu0 %v2718
        %3595 = vmatpush1.bf16.msra.mxu0 %v2717
        %3596 = vmatprep.subr.bf16.mxu0 %v2730
        %3597 = vmatpush1.bf16.msra.mxu0 %v2729
        %3598 = vmatprep.subr.bf16.mxu0 %v2742
        %3599 = vmatpush1.bf16.msra.mxu0 %v2741
        %3600 = vmatprep.subr.bf16.mxu0 %v2754
        %3601 = vmatpush1.bf16.msra.mxu0 %v2753
        %3602 = vmatprep.subr.bf16.mxu0 %v2766
        %3603 = vmatpush1.bf16.msra.mxu0 %v2765
        %3604 = vmatprep.subr.bf16.mxu0 %v2778
        %3605 = vmatpush1.bf16.msra.mxu0 %v2777
        %3606 = vmatprep.subr.bf16.mxu0 %v2790
        %3607 = vmatpush1.bf16.msra.mxu0 %v2789
        %3608 = vmatprep.subr.bf16.mxu0 %v2802
        %3609 = vmatpush1.bf16.msra.mxu0 %v2801
        %3610 = vmatprep.subr.bf16.mxu0 %v2814
        %3611 = vmatpush1.bf16.msra.mxu0 %v2813
        %3612 = vmatprep.subr.bf16.mxu0 %v2826
        %3613 = vmatpush1.bf16.msra.mxu0 %v2825
        %3614 = vmatprep.mubr.bf16.mxu0 %v1288
        %3615 = vmatmul.mubr.bf16.gmra.mrb[0].mxu0 %v1287
        %v3616 = vpop.f32.mrb[0].mxu0
        %v3617 = vadd.f32 %v3576, %v3616
        %v3618 = vpop.f32.mrb[0].mxu0
        %v3619 = vadd.f32 %v3578, %v3618
        %v3620 = vpop.f32.mrb[0].mxu0
        %v3621 = vpop.f32.mrb[0].mxu0
        %3622 = vdwg.mxu0
        %3623 = vmatprep.subr.bf16.mxu0 %v2456
        %3624 = vmatpush1.bf16.msra.mxu0 %v2455
        %3625 = vmatprep.subr.bf16.mxu0 %v2468
        %3626 = vmatpush1.bf16.msra.mxu0 %v2467
        %3627 = vmatprep.subr.bf16.mxu0 %v2480
        %3628 = vmatpush1.bf16.msra.mxu0 %v2479
        %3629 = vmatprep.subr.bf16.mxu0 %v2492
        %3630 = vmatpush1.bf16.msra.mxu0 %v2491
        %3631 = vmatprep.subr.bf16.mxu0 %v2504
        %3632 = vmatpush1.bf16.msra.mxu0 %v2503
        %3633 = vmatprep.subr.bf16.mxu0 %v2516
        %3634 = vmatpush1.bf16.msra.mxu0 %v2515
        %3635 = vmatprep.subr.bf16.mxu0 %v2528
        %3636 = vmatpush1.bf16.msra.mxu0 %v2527
        %3637 = vmatprep.subr.bf16.mxu0 %v2540
        %3638 = vmatpush1.bf16.msra.mxu0 %v2539
        %3639 = vmatprep.subr.bf16.mxu0 %v2552
        %3640 = vmatpush1.bf16.msra.mxu0 %v2551
        %3641 = vmatprep.subr.bf16.mxu0 %v2564
        %3642 = vmatpush1.bf16.msra.mxu0 %v2563
        %3643 = vmatprep.subr.bf16.mxu0 %v2576
        %3644 = vmatpush1.bf16.msra.mxu0 %v2575
        %3645 = vmatprep.subr.bf16.mxu0 %v2588
        %3646 = vmatpush1.bf16.msra.mxu0 %v2587
        %3647 = vmatprep.subr.bf16.mxu0 %v2600
        %3648 = vmatpush1.bf16.msra.mxu0 %v2599
        %3649 = vmatprep.subr.bf16.mxu0 %v2612
        %3650 = vmatpush1.bf16.msra.mxu0 %v2611
        %3651 = vmatprep.subr.bf16.mxu0 %v2624
        %3652 = vmatpush1.bf16.msra.mxu0 %v2623
        %3653 = vmatprep.subr.bf16.mxu0 %v2636
        %3654 = vmatpush1.bf16.msra.mxu0 %v2635
        %3655 = vmatprep.mubr.bf16.mxu0 %v1286
        %3656 = vmatmul.mubr.bf16.gmra.mrb[0].mxu0 %v1285
        %v3657 = vpop.f32.mrb[0].mxu0
        %v3658 = vadd.f32 %v1262, %v3657
        %v3659 = vpop.f32.mrb[0].mxu0
        %v3660 = vadd.f32 %v1266, %v3659
        %v3661 = vpop.f32.mrb[0].mxu0
        %v3662 = vpop.f32.mrb[0].mxu0
        %3663 = vdwg.mxu0
        %3664 = vmatprep.subr.bf16.mxu0 %v2648
        %3665 = vmatpush1.bf16.msra.mxu0 %v2647
        %3666 = vmatprep.subr.bf16.mxu0 %v2660
        %3667 = vmatpush1.bf16.msra.mxu0 %v2659
        %3668 = vmatprep.subr.bf16.mxu0 %v2672
        %3669 = vmatpush1.bf16.msra.mxu0 %v2671
        %3670 = vmatprep.subr.bf16.mxu0 %v2684
        %3671 = vmatpush1.bf16.msra.mxu0 %v2683
        %3672 = vmatprep.subr.bf16.mxu0 %v2696
        %3673 = vmatpush1.bf16.msra.mxu0 %v2695
        %3674 = vmatprep.subr.bf16.mxu0 %v2708
        %3675 = vmatpush1.bf16.msra.mxu0 %v2707
        %3676 = vmatprep.subr.bf16.mxu0 %v2720
        %3677 = vmatpush1.bf16.msra.mxu0 %v2719
        %3678 = vmatprep.subr.bf16.mxu0 %v2732
        %3679 = vmatpush1.bf16.msra.mxu0 %v2731
        %3680 = vmatprep.subr.bf16.mxu0 %v2744
        %3681 = vmatpush1.bf16.msra.mxu0 %v2743
        %3682 = vmatprep.subr.bf16.mxu0 %v2756
        %3683 = vmatpush1.bf16.msra.mxu0 %v2755
        %3684 = vmatprep.subr.bf16.mxu0 %v2768
        %3685 = vmatpush1.bf16.msra.mxu0 %v2767
        %3686 = vmatprep.subr.bf16.mxu0 %v2780
        %3687 = vmatpush1.bf16.msra.mxu0 %v2779
        %3688 = vmatprep.subr.bf16.mxu0 %v2792
        %3689 = vmatpush1.bf16.msra.mxu0 %v2791
        %3690 = vmatprep.subr.bf16.mxu0 %v2804
        %3691 = vmatpush1.bf16.msra.mxu0 %v2803
        %3692 = vmatprep.subr.bf16.mxu0 %v2816
        %3693 = vmatpush1.bf16.msra.mxu0 %v2815
        %3694 = vmatprep.subr.bf16.mxu0 %v2828
        %3695 = vmatpush1.bf16.msra.mxu0 %v2827
        %3696 = vmatprep.mubr.bf16.mxu0 %v1288
        %3697 = vmatmul.mubr.bf16.gmra.mrb[0].mxu0 %v1287
        %v3698 = vpop.f32.mrb[0].mxu0
        %v3699 = vadd.f32 %v3658, %v3698
        %v3700 = vpop.f32.mrb[0].mxu0
        %v3701 = vadd.f32 %v3660, %v3700
        %v3702 = vpop.f32.mrb[0].mxu0
        %v3703 = vpop.f32.mrb[0].mxu0
        %3704 = vdwg.mxu0
        %v3705 = vpack.c.bf16 %v3289, %v3289
        %v3706 = vpack.c.bf16 %v3291, %v3291
        %v3707 = vpack.c.bf16 %v3371, %v3371
        %v3708 = vpack.c.bf16 %v3373, %v3373
        %v3709 = vpack.c.bf16 %v3453, %v3453
        %v3710 = vpack.c.bf16 %v3455, %v3455
        %v3711 = vpack.c.bf16 %v3535, %v3535
        %v3712 = vpack.c.bf16 %v3537, %v3537
        %v3713 = vpack.c.bf16 %v3617, %v3617
        %v3714 = vpack.c.bf16 %v3619, %v3619
        %v3715 = vpack.c.bf16 %v3699, %v3699
        %v3716 = vpack.c.bf16 %v3701, %v3701
        %v3717 = vld [vmem:[%s708] sm:$0x1]
        %3718 = vmatprep.subr.bf16.mxu0 0
        %3719 = vmatpush1.bf16.xpose.msra.mxu0 %v3709
        %3720 = vmatprep.subr.bf16.mxu0 0
        %3721 = vmatpush1.bf16.xpose.msra.mxu0 0
        %3722 = vmatprep.subr.bf16.mxu0 0
        %3723 = vmatpush1.bf16.xpose.msra.mxu0 0
        %3724 = vmatprep.subr.bf16.mxu0 0
        %3725 = vmatpush1.bf16.xpose.msra.mxu0 0
        %3726 = vmatprep.subr.bf16.mxu0 0
        %3727 = vmatpush1.bf16.xpose.msra.mxu0 0
        %3728 = vmatprep.subr.bf16.mxu0 0
        %3729 = vmatpush1.bf16.xpose.msra.mxu0 0
        %3730 = vmatprep.subr.bf16.mxu0 0
        %3731 = vmatpush1.bf16.xpose.msra.mxu0 0
        %3732 = vmatprep.subr.bf16.mxu0 0
        %3733 = vmatpush1.bf16.xpose.msra.mxu0 0
        %3734 = vmatprep.subr.bf16.mxu0 0
        %3735 = vmatpush1.bf16.xpose.msra.mxu0 0
        %3736 = vmatprep.subr.bf16.mxu0 0
        %3737 = vmatpush1.bf16.xpose.msra.mxu0 0
        %3738 = vmatprep.subr.bf16.mxu0 0
        %3739 = vmatpush1.bf16.xpose.msra.mxu0 0
        %3740 = vmatprep.subr.bf16.mxu0 0
        %3741 = vmatpush1.bf16.xpose.msra.mxu0 0
        %3742 = vmatprep.subr.bf16.mxu0 0
        %3743 = vmatpush1.bf16.xpose.msra.mxu0 0
        %3744 = vmatprep.subr.bf16.mxu0 0
        %3745 = vmatpush1.bf16.xpose.msra.mxu0 0
        %3746 = vmatprep.subr.bf16.mxu0 0
        %3747 = vmatpush1.bf16.xpose.msra.mxu0 0
        %3748 = vmatprep.subr.bf16.mxu0 0
        %3749 = vmatpush1.bf16.xpose.msra.mxu0 0
        %3750 = vmatprep.mubr.bf16.mxu0 0
        %3751 = vmatmul.mubr.bf16.gmra.mrb[0].mxu0 %v3705
        %v3752 = vpop.f32.mrb[0].mxu0
        %v3753 = vadd.f32 0.0, %v3752
        %v3754 = vpop.f32.mrb[0].mxu0
        %v3755 = vpop.f32.mrb[0].mxu0
        %v3756 = vpop.f32.mrb[0].mxu0
        %3757 = vdwg.mxu0
        %v3758 = vmul.f32 %v3753, 0.088388346
        %v3760 = vlaneseq
        %v3761 = vshrl.u32 %v3760, 7
        %v3762 = vsub.s32 0, %v3761
        %v3763 = vrot.slane %v3717, %v3762
        %v3765 = vadd.f32 %v3758, %v3763
        %vm3766 = vcmask 64512
        %v3767 = vsel %vm3766, %v3765, -inf
        %3768 = vmax.xlane.f32.xlu0 %v3767
        %v3769 = vpop.xlane.xlu0 %3768
        %v3770 = vsub.f32 %v3765, %v3769
        %v3771 = vmul.f32 %v3770, 1.442695
        %v3772 = vpow.pop %v3771
        %v3773 = vsel %vm3766, %v3772, 0.0
        %3774 = vadd.xlane.f32.xlu0 %v3773
        %v3775 = vpop.xlane.xlu0 %3774
        %v3776 = vrcp.pop %v3775
        %v3777 = vmul.f32 %v3772, %v3776
        %v3778 = vpack.c.bf16 %v3777, %v3777
        %v3780 = vsel %vm3766, %v3778, 0
        %vm3782 = vcmask 1043456
        %v3784 = vsel %vm3782, %v3713, 0
        %3786 = vmatprep.subr.bf16.mxu0 0
        %3787 = vmatpush1.bf16.msra.mxu0 %v3784
        %3788 = vmatprep.subr.bf16.mxu0 0
        %3789 = vmatpush1.bf16.msra.mxu0 0
        %3790 = vmatprep.subr.bf16.mxu0 0
        %3791 = vmatpush1.bf16.msra.mxu0 0
        %3792 = vmatprep.subr.bf16.mxu0 0
        %3793 = vmatpush1.bf16.msra.mxu0 0
        %3794 = vmatprep.subr.bf16.mxu0 0
        %3795 = vmatpush1.bf16.msra.mxu0 0
        %3796 = vmatprep.subr.bf16.mxu0 0
        %3797 = vmatpush1.bf16.msra.mxu0 0
        %3798 = vmatprep.subr.bf16.mxu0 0
        %3799 = vmatpush1.bf16.msra.mxu0 0
        %3800 = vmatprep.subr.bf16.mxu0 0
        %3801 = vmatpush1.bf16.msra.mxu0 0
        %3802 = vmatprep.subr.bf16.mxu0 0
        %3803 = vmatpush1.bf16.msra.mxu0 0
        %3804 = vmatprep.subr.bf16.mxu0 0
        %3805 = vmatpush1.bf16.msra.mxu0 0
        %3806 = vmatprep.subr.bf16.mxu0 0
        %3807 = vmatpush1.bf16.msra.mxu0 0
        %3808 = vmatprep.subr.bf16.mxu0 0
        %3809 = vmatpush1.bf16.msra.mxu0 0
        %3810 = vmatprep.subr.bf16.mxu0 0
        %3811 = vmatpush1.bf16.msra.mxu0 0
        %3812 = vmatprep.subr.bf16.mxu0 0
        %3813 = vmatpush1.bf16.msra.mxu0 0
        %3814 = vmatprep.subr.bf16.mxu0 0
        %3815 = vmatpush1.bf16.msra.mxu0 0
        %3816 = vmatprep.subr.bf16.mxu0 0
        %3817 = vmatpush1.bf16.msra.mxu0 0
        %3818 = vmatprep.mubr.bf16.mxu0 0
        %3819 = vmatmul.mubr.bf16.gmra.mrb[0].mxu0 %v3780
        %v3820 = vpop.f32.mrb[0].mxu0
        %v3821 = vadd.f32 0.0, %v3820
        %v3822 = vpop.f32.mrb[0].mxu0
        %v3823 = vpop.f32.mrb[0].mxu0
        %v3824 = vpop.f32.mrb[0].mxu0
        %3825 = vdwg.mxu0
        %3826 = vmatprep.subr.bf16.mxu0 0
        %3827 = vmatpush1.bf16.xpose.msra.mxu0 %v3710
        %3828 = vmatprep.subr.bf16.mxu0 0
        %3829 = vmatpush1.bf16.xpose.msra.mxu0 0
        %3830 = vmatprep.subr.bf16.mxu0 0
        %3831 = vmatpush1.bf16.xpose.msra.mxu0 0
        %3832 = vmatprep.subr.bf16.mxu0 0
        %3833 = vmatpush1.bf16.xpose.msra.mxu0 0
        %3834 = vmatprep.subr.bf16.mxu0 0
        %3835 = vmatpush1.bf16.xpose.msra.mxu0 0
        %3836 = vmatprep.subr.bf16.mxu0 0
        %3837 = vmatpush1.bf16.xpose.msra.mxu0 0
        %3838 = vmatprep.subr.bf16.mxu0 0
        %3839 = vmatpush1.bf16.xpose.msra.mxu0 0
        %3840 = vmatprep.subr.bf16.mxu0 0
        %3841 = vmatpush1.bf16.xpose.msra.mxu0 0
        %3842 = vmatprep.subr.bf16.mxu0 0
        %3843 = vmatpush1.bf16.xpose.msra.mxu0 0
        %3844 = vmatprep.subr.bf16.mxu0 0
        %3845 = vmatpush1.bf16.xpose.msra.mxu0 0
        %3846 = vmatprep.subr.bf16.mxu0 0
        %3847 = vmatpush1.bf16.xpose.msra.mxu0 0
        %3848 = vmatprep.subr.bf16.mxu0 0
        %3849 = vmatpush1.bf16.xpose.msra.mxu0 0
        %3850 = vmatprep.subr.bf16.mxu0 0
        %3851 = vmatpush1.bf16.xpose.msra.mxu0 0
        %3852 = vmatprep.subr.bf16.mxu0 0
        %3853 = vmatpush1.bf16.xpose.msra.mxu0 0
        %3854 = vmatprep.subr.bf16.mxu0 0
        %3855 = vmatpush1.bf16.xpose.msra.mxu0 0
        %3856 = vmatprep.subr.bf16.mxu0 0
        %3857 = vmatpush1.bf16.xpose.msra.mxu0 0
        %3858 = vmatprep.mubr.bf16.mxu0 0
        %3859 = vmatmul.mubr.bf16.gmra.mrb[0].mxu0 %v3706
        %v3860 = vpop.f32.mrb[0].mxu0
        %v3861 = vadd.f32 0.0, %v3860
        %v3862 = vpop.f32.mrb[0].mxu0
        %v3863 = vpop.f32.mrb[0].mxu0
        %v3864 = vpop.f32.mrb[0].mxu0
        %3865 = vdwg.mxu0
        %v3866 = vmul.f32 %v3861, 0.088388346
        %v3867 = vadd.f32 %v3866, %v3763
        %v3868 = vsel %vm3766, %v3867, -inf
        %3869 = vmax.xlane.f32.xlu0 %v3868
        %v3870 = vpop.xlane.xlu0 %3869
        %v3871 = vsub.f32 %v3867, %v3870
        %v3872 = vmul.f32 %v3871, 1.442695
        %v3873 = vpow.pop %v3872
        %v3874 = vsel %vm3766, %v3873, 0.0
        %3875 = vadd.xlane.f32.xlu0 %v3874
        %v3876 = vpop.xlane.xlu0 %3875
        %v3877 = vrcp.pop %v3876
        %v3878 = vmul.f32 %v3873, %v3877
        %v3879 = vpack.c.bf16 %v3878, %v3878
        %v3881 = vsel %vm3766, %v3879, 0
        %v3884 = vsel %vm3782, %v3714, 0
        %3886 = vmatprep.subr.bf16.mxu0 0
        %3887 = vmatpush1.bf16.msra.mxu0 %v3884
        %3888 = vmatprep.subr.bf16.mxu0 0
        %3889 = vmatpush1.bf16.msra.mxu0 0
        %3890 = vmatprep.subr.bf16.mxu0 0
        %3891 = vmatpush1.bf16.msra.mxu0 0
        %3892 = vmatprep.subr.bf16.mxu0 0
        %3893 = vmatpush1.bf16.msra.mxu0 0
        %3894 = vmatprep.subr.bf16.mxu0 0
        %3895 = vmatpush1.bf16.msra.mxu0 0
        %3896 = vmatprep.subr.bf16.mxu0 0
        %3897 = vmatpush1.bf16.msra.mxu0 0
        %3898 = vmatprep.subr.bf16.mxu0 0
        %3899 = vmatpush1.bf16.msra.mxu0 0
        %3900 = vmatprep.subr.bf16.mxu0 0
        %3901 = vmatpush1.bf16.msra.mxu0 0
        %3902 = vmatprep.subr.bf16.mxu0 0
        %3903 = vmatpush1.bf16.msra.mxu0 0
        %3904 = vmatprep.subr.bf16.mxu0 0
        %3905 = vmatpush1.bf16.msra.mxu0 0
        %3906 = vmatprep.subr.bf16.mxu0 0
        %3907 = vmatpush1.bf16.msra.mxu0 0
        %3908 = vmatprep.subr.bf16.mxu0 0
        %3909 = vmatpush1.bf16.msra.mxu0 0
        %3910 = vmatprep.subr.bf16.mxu0 0
        %3911 = vmatpush1.bf16.msra.mxu0 0
        %3912 = vmatprep.subr.bf16.mxu0 0
        %3913 = vmatpush1.bf16.msra.mxu0 0
        %3914 = vmatprep.subr.bf16.mxu0 0
        %3915 = vmatpush1.bf16.msra.mxu0 0
        %3916 = vmatprep.subr.bf16.mxu0 0
        %3917 = vmatpush1.bf16.msra.mxu0 0
        %3918 = vmatprep.mubr.bf16.mxu0 0
        %3919 = vmatmul.mubr.bf16.gmra.mrb[0].mxu0 %v3881
        %v3920 = vpop.f32.mrb[0].mxu0
        %v3921 = vadd.f32 0.0, %v3920
        %v3922 = vpop.f32.mrb[0].mxu0
        %v3923 = vpop.f32.mrb[0].mxu0
        %v3924 = vpop.f32.mrb[0].mxu0
        %3925 = vdwg.mxu0
        %3926 = vmatprep.subr.bf16.mxu0 0
        %3927 = vmatpush1.bf16.xpose.msra.mxu0 %v3711
        %3928 = vmatprep.subr.bf16.mxu0 0
        %3929 = vmatpush1.bf16.xpose.msra.mxu0 0
        %3930 = vmatprep.subr.bf16.mxu0 0
        %3931 = vmatpush1.bf16.xpose.msra.mxu0 0
        %3932 = vmatprep.subr.bf16.mxu0 0
        %3933 = vmatpush1.bf16.xpose.msra.mxu0 0
        %3934 = vmatprep.subr.bf16.mxu0 0
        %3935 = vmatpush1.bf16.xpose.msra.mxu0 0
        %3936 = vmatprep.subr.bf16.mxu0 0
        %3937 = vmatpush1.bf16.xpose.msra.mxu0 0
        %3938 = vmatprep.subr.bf16.mxu0 0
        %3939 = vmatpush1.bf16.xpose.msra.mxu0 0
        %3940 = vmatprep.subr.bf16.mxu0 0
        %3941 = vmatpush1.bf16.xpose.msra.mxu0 0
        %3942 = vmatprep.subr.bf16.mxu0 0
        %3943 = vmatpush1.bf16.xpose.msra.mxu0 0
        %3944 = vmatprep.subr.bf16.mxu0 0
        %3945 = vmatpush1.bf16.xpose.msra.mxu0 0
        %3946 = vmatprep.subr.bf16.mxu0 0
        %3947 = vmatpush1.bf16.xpose.msra.mxu0 0
        %3948 = vmatprep.subr.bf16.mxu0 0
        %3949 = vmatpush1.bf16.xpose.msra.mxu0 0
        %3950 = vmatprep.subr.bf16.mxu0 0
        %3951 = vmatpush1.bf16.xpose.msra.mxu0 0
        %3952 = vmatprep.subr.bf16.mxu0 0
        %3953 = vmatpush1.bf16.xpose.msra.mxu0 0
        %3954 = vmatprep.subr.bf16.mxu0 0
        %3955 = vmatpush1.bf16.xpose.msra.mxu0 0
        %3956 = vmatprep.subr.bf16.mxu0 0
        %3957 = vmatpush1.bf16.xpose.msra.mxu0 0
        %3958 = vmatprep.mubr.bf16.mxu0 0
        %3959 = vmatmul.mubr.bf16.gmra.mrb[0].mxu0 %v3707
        %v3960 = vpop.f32.mrb[0].mxu0
        %v3961 = vadd.f32 0.0, %v3960
        %v3962 = vpop.f32.mrb[0].mxu0
        %v3963 = vpop.f32.mrb[0].mxu0
        %v3964 = vpop.f32.mrb[0].mxu0
        %3965 = vdwg.mxu0
        %v3966 = vmul.f32 %v3961, 0.088388346
        %v3967 = vadd.f32 %v3966, %v3763
        %v3968 = vsel %vm3766, %v3967, -inf
        %3969 = vmax.xlane.f32.xlu0 %v3968
        %v3970 = vpop.xlane.xlu0 %3969
        %v3971 = vsub.f32 %v3967, %v3970
        %v3972 = vmul.f32 %v3971, 1.442695
        %v3973 = vpow.pop %v3972
        %v3974 = vsel %vm3766, %v3973, 0.0
        %3975 = vadd.xlane.f32.xlu0 %v3974
        %v3976 = vpop.xlane.xlu0 %3975
        %v3977 = vrcp.pop %v3976
        %v3978 = vmul.f32 %v3973, %v3977
        %v3979 = vpack.c.bf16 %v3978, %v3978
        %v3981 = vsel %vm3766, %v3979, 0
        %v3984 = vsel %vm3782, %v3715, 0
        %3986 = vmatprep.subr.bf16.mxu0 0
        %3987 = vmatpush1.bf16.msra.mxu0 %v3984
        %3988 = vmatprep.subr.bf16.mxu0 0
        %3989 = vmatpush1.bf16.msra.mxu0 0
        %3990 = vmatprep.subr.bf16.mxu0 0
        %3991 = vmatpush1.bf16.msra.mxu0 0
        %3992 = vmatprep.subr.bf16.mxu0 0
        %3993 = vmatpush1.bf16.msra.mxu0 0
        %3994 = vmatprep.subr.bf16.mxu0 0
        %3995 = vmatpush1.bf16.msra.mxu0 0
        %3996 = vmatprep.subr.bf16.mxu0 0
        %3997 = vmatpush1.bf16.msra.mxu0 0
        %3998 = vmatprep.subr.bf16.mxu0 0
        %3999 = vmatpush1.bf16.msra.mxu0 0
        %4000 = vmatprep.subr.bf16.mxu0 0
        %4001 = vmatpush1.bf16.msra.mxu0 0
        %4002 = vmatprep.subr.bf16.mxu0 0
        %4003 = vmatpush1.bf16.msra.mxu0 0
        %4004 = vmatprep.subr.bf16.mxu0 0
        %4005 = vmatpush1.bf16.msra.mxu0 0
        %4006 = vmatprep.subr.bf16.mxu0 0
        %4007 = vmatpush1.bf16.msra.mxu0 0
        %4008 = vmatprep.subr.bf16.mxu0 0
        %4009 = vmatpush1.bf16.msra.mxu0 0
        %4010 = vmatprep.subr.bf16.mxu0 0
        %4011 = vmatpush1.bf16.msra.mxu0 0
        %4012 = vmatprep.subr.bf16.mxu0 0
        %4013 = vmatpush1.bf16.msra.mxu0 0
        %4014 = vmatprep.subr.bf16.mxu0 0
        %4015 = vmatpush1.bf16.msra.mxu0 0
        %4016 = vmatprep.subr.bf16.mxu0 0
        %4017 = vmatpush1.bf16.msra.mxu0 0
        %4018 = vmatprep.mubr.bf16.mxu0 0
        %4019 = vmatmul.mubr.bf16.gmra.mrb[0].mxu0 %v3981
        %v4020 = vpop.f32.mrb[0].mxu0
        %v4021 = vadd.f32 0.0, %v4020
        %v4022 = vpop.f32.mrb[0].mxu0
        %v4023 = vpop.f32.mrb[0].mxu0
        %v4024 = vpop.f32.mrb[0].mxu0
        %4025 = vdwg.mxu0
        %4026 = vmatprep.subr.bf16.mxu0 0
        %4027 = vmatpush1.bf16.xpose.msra.mxu0 %v3712
        %4028 = vmatprep.subr.bf16.mxu0 0
        %4029 = vmatpush1.bf16.xpose.msra.mxu0 0
        %4030 = vmatprep.subr.bf16.mxu0 0
        %4031 = vmatpush1.bf16.xpose.msra.mxu0 0
        %4032 = vmatprep.subr.bf16.mxu0 0
        %4033 = vmatpush1.bf16.xpose.msra.mxu0 0
        %4034 = vmatprep.subr.bf16.mxu0 0
        %4035 = vmatpush1.bf16.xpose.msra.mxu0 0
        %4036 = vmatprep.subr.bf16.mxu0 0
        %4037 = vmatpush1.bf16.xpose.msra.mxu0 0
        %4038 = vmatprep.subr.bf16.mxu0 0
        %4039 = vmatpush1.bf16.xpose.msra.mxu0 0
        %4040 = vmatprep.subr.bf16.mxu0 0
        %4041 = vmatpush1.bf16.xpose.msra.mxu0 0
        %4042 = vmatprep.subr.bf16.mxu0 0
        %4043 = vmatpush1.bf16.xpose.msra.mxu0 0
        %4044 = vmatprep.subr.bf16.mxu0 0
        %4045 = vmatpush1.bf16.xpose.msra.mxu0 0
        %4046 = vmatprep.subr.bf16.mxu0 0
        %4047 = vmatpush1.bf16.xpose.msra.mxu0 0
        %4048 = vmatprep.subr.bf16.mxu0 0
        %4049 = vmatpush1.bf16.xpose.msra.mxu0 0
        %4050 = vmatprep.subr.bf16.mxu0 0
        %4051 = vmatpush1.bf16.xpose.msra.mxu0 0
        %4052 = vmatprep.subr.bf16.mxu0 0
        %4053 = vmatpush1.bf16.xpose.msra.mxu0 0
        %4054 = vmatprep.subr.bf16.mxu0 0
        %4055 = vmatpush1.bf16.xpose.msra.mxu0 0
        %4056 = vmatprep.subr.bf16.mxu0 0
        %4057 = vmatpush1.bf16.xpose.msra.mxu0 0
        %4058 = vmatprep.mubr.bf16.mxu0 0
        %4059 = vmatmul.mubr.bf16.gmra.mrb[0].mxu0 %v3708
        %v4060 = vpop.f32.mrb[0].mxu0
        %v4061 = vadd.f32 0.0, %v4060
        %v4062 = vpop.f32.mrb[0].mxu0
        %v4063 = vpop.f32.mrb[0].mxu0
        %v4064 = vpop.f32.mrb[0].mxu0
        %4065 = vdwg.mxu0
        %v4066 = vmul.f32 %v4061, 0.088388346
        %v4067 = vadd.f32 %v4066, %v3763
        %v4068 = vsel %vm3766, %v4067, -inf
        %4069 = vmax.xlane.f32.xlu0 %v4068
        %v4070 = vpop.xlane.xlu0 %4069
        %v4071 = vsub.f32 %v4067, %v4070
        %v4072 = vmul.f32 %v4071, 1.442695
        %v4073 = vpow.pop %v4072
        %v4074 = vsel %vm3766, %v4073, 0.0
        %4075 = vadd.xlane.f32.xlu0 %v4074
        %v4076 = vpop.xlane.xlu0 %4075
        %v4077 = vrcp.pop %v4076
        %v4078 = vmul.f32 %v4073, %v4077
        %v4079 = vpack.c.bf16 %v4078, %v4078
        %v4081 = vsel %vm3766, %v4079, 0
        %v4084 = vsel %vm3782, %v3716, 0
        %4086 = vmatprep.subr.bf16.mxu0 0
        %4087 = vmatpush1.bf16.msra.mxu0 %v4084
        %4088 = vmatprep.subr.bf16.mxu0 0
        %4089 = vmatpush1.bf16.msra.mxu0 0
        %4090 = vmatprep.subr.bf16.mxu0 0
        %4091 = vmatpush1.bf16.msra.mxu0 0
        %4092 = vmatprep.subr.bf16.mxu0 0
        %4093 = vmatpush1.bf16.msra.mxu0 0
        %4094 = vmatprep.subr.bf16.mxu0 0
        %4095 = vmatpush1.bf16.msra.mxu0 0
        %4096 = vmatprep.subr.bf16.mxu0 0
        %4097 = vmatpush1.bf16.msra.mxu0 0
        %4098 = vmatprep.subr.bf16.mxu0 0
        %4099 = vmatpush1.bf16.msra.mxu0 0
        %4100 = vmatprep.subr.bf16.mxu0 0
        %4101 = vmatpush1.bf16.msra.mxu0 0
        %4102 = vmatprep.subr.bf16.mxu0 0
        %4103 = vmatpush1.bf16.msra.mxu0 0
        %4104 = vmatprep.subr.bf16.mxu0 0
        %4105 = vmatpush1.bf16.msra.mxu0 0
        %4106 = vmatprep.subr.bf16.mxu0 0
        %4107 = vmatpush1.bf16.msra.mxu0 0
        %4108 = vmatprep.subr.bf16.mxu0 0
        %4109 = vmatpush1.bf16.msra.mxu0 0
        %4110 = vmatprep.subr.bf16.mxu0 0
        %4111 = vmatpush1.bf16.msra.mxu0 0
        %4112 = vmatprep.subr.bf16.mxu0 0
        %4113 = vmatpush1.bf16.msra.mxu0 0
        %4114 = vmatprep.subr.bf16.mxu0 0
        %4115 = vmatpush1.bf16.msra.mxu0 0
        %4116 = vmatprep.subr.bf16.mxu0 0
        %4117 = vmatpush1.bf16.msra.mxu0 0
        %4118 = vmatprep.mubr.bf16.mxu0 0
        %4119 = vmatmul.mubr.bf16.gmra.mrb[0].mxu0 %v4081
        %v4120 = vpop.f32.mrb[0].mxu0
        %v4121 = vadd.f32 0.0, %v4120
        %v4122 = vpop.f32.mrb[0].mxu0
        %v4123 = vpop.f32.mrb[0].mxu0
        %v4124 = vpop.f32.mrb[0].mxu0
        %4125 = vdwg.mxu0
        %v4126 = vpack.c.bf16 %v3821, %v3821
        %v4127 = vpack.c.bf16 %v3921, %v3921
        %v4128 = vpack.c.bf16 %v4021, %v4021
        %v4129 = vpack.c.bf16 %v4121, %v4121
        %v4130 = vld [vmem:[#allocation11] sm:$0xff]
        %v4131 = vld [vmem:[#allocation11 + $0x8] sm:$0xff]
        %v4132 = vld [vmem:[#allocation11 + $0x10] sm:$0xff]
        %v4133 = vld [vmem:[#allocation11 + $0x18] sm:$0xff]
        %v4134 = vld [vmem:[#allocation11 + $0x20] sm:$0xff]
        %v4135 = vld [vmem:[#allocation11 + $0x28] sm:$0xff]
        %v4136 = vld [vmem:[#allocation11 + $0x30] sm:$0xff]
        %v4137 = vld [vmem:[#allocation11 + $0x38] sm:$0xff]
        %v4138 = vld [vmem:[#allocation11 + $0x40] sm:$0xff]
        %v4139 = vld [vmem:[#allocation11 + $0x48] sm:$0xff]
        %v4140 = vld [vmem:[#allocation11 + $0x50] sm:$0xff]
        %v4141 = vld [vmem:[#allocation11 + $0x58] sm:$0xff]
        %v4142 = vld [vmem:[#allocation11 + $0x60] sm:$0xff]
        %v4143 = vld [vmem:[#allocation11 + $0x68] sm:$0xff]
        %v4144 = vld [vmem:[#allocation11 + $0x70] sm:$0xff]
        %v4145 = vld [vmem:[#allocation11 + $0x78] sm:$0xff]
        %v4146 = vld [vmem:[#allocation11 + $0x80] sm:$0xff]
        %v4147 = vld [vmem:[#allocation11 + $0x88] sm:$0xff]
        %v4148 = vld [vmem:[#allocation11 + $0x90] sm:$0xff]
        %v4149 = vld [vmem:[#allocation11 + $0x98] sm:$0xff]
        %v4150 = vld [vmem:[#allocation11 + $0xa0] sm:$0xff]
        %v4151 = vld [vmem:[#allocation11 + $0xa8] sm:$0xff]
        %v4152 = vld [vmem:[#allocation11 + $0xb0] sm:$0xff]
        %v4153 = vld [vmem:[#allocation11 + $0xb8] sm:$0xff]
        %v4154 = vld [vmem:[#allocation11 + $0xc0] sm:$0xff]
        %v4155 = vld [vmem:[#allocation11 + $0xc8] sm:$0xff]
        %v4156 = vld [vmem:[#allocation11 + $0xd0] sm:$0xff]
        %v4157 = vld [vmem:[#allocation11 + $0xd8] sm:$0xff]
        %v4158 = vld [vmem:[#allocation11 + $0xe0] sm:$0xff]
        %v4159 = vld [vmem:[#allocation11 + $0xe8] sm:$0xff]
        %v4160 = vld [vmem:[#allocation11 + $0xf0] sm:$0xff]
        %v4161 = vld [vmem:[#allocation11 + $0xf8] sm:$0xff]
        %v4162 = vld [vmem:[#allocation11 + $0x100] sm:$0xff]
        %v4163 = vld [vmem:[#allocation11 + $0x108] sm:$0xff]
        %v4164 = vld [vmem:[#allocation11 + $0x110] sm:$0xff]
        %v4165 = vld [vmem:[#allocation11 + $0x118] sm:$0xff]
        %v4166 = vld [vmem:[#allocation11 + $0x120] sm:$0xff]
        %v4167 = vld [vmem:[#allocation11 + $0x128] sm:$0xff]
        %v4168 = vld [vmem:[#allocation11 + $0x130] sm:$0xff]
        %v4169 = vld [vmem:[#allocation11 + $0x138] sm:$0xff]
        %v4170 = vld [vmem:[#allocation11 + $0x140] sm:$0xff]
        %v4171 = vld [vmem:[#allocation11 + $0x148] sm:$0xff]
        %v4172 = vld [vmem:[#allocation11 + $0x150] sm:$0xff]
        %v4173 = vld [vmem:[#allocation11 + $0x158] sm:$0xff]
        %v4174 = vld [vmem:[#allocation11 + $0x160] sm:$0xff]
        %v4175 = vld [vmem:[#allocation11 + $0x168] sm:$0xff]
        %v4176 = vld [vmem:[#allocation11 + $0x170] sm:$0xff]
        %v4177 = vld [vmem:[#allocation11 + $0x178] sm:$0xff]
        %v4178 = vld [vmem:[#allocation11 + $0x180] sm:$0xff]
        %v4179 = vld [vmem:[#allocation11 + $0x188] sm:$0xff]
        %v4180 = vld [vmem:[#allocation11 + $0x190] sm:$0xff]
        %v4181 = vld [vmem:[#allocation11 + $0x198] sm:$0xff]
        %v4182 = vld [vmem:[#allocation11 + $0x1a0] sm:$0xff]
        %v4183 = vld [vmem:[#allocation11 + $0x1a8] sm:$0xff]
        %v4184 = vld [vmem:[#allocation11 + $0x1b0] sm:$0xff]
        %v4185 = vld [vmem:[#allocation11 + $0x1b8] sm:$0xff]
        %v4186 = vld [vmem:[#allocation11 + $0x1c0] sm:$0xff]
        %v4187 = vld [vmem:[#allocation11 + $0x1c8] sm:$0xff]
        %v4188 = vld [vmem:[#allocation11 + $0x1d0] sm:$0xff]
        %v4189 = vld [vmem:[#allocation11 + $0x1d8] sm:$0xff]
        %v4190 = vld [vmem:[#allocation11 + $0x1e0] sm:$0xff]
        %v4191 = vld [vmem:[#allocation11 + $0x1e8] sm:$0xff]
        %v4192 = vld [vmem:[#allocation11 + $0x1f0] sm:$0xff]
        %v4193 = vld [vmem:[#allocation11 + $0x1f8] sm:$0xff]
        %v4194 = vld [vmem:[#allocation11 + $0x200] sm:$0xff]
        %v4195 = vld [vmem:[#allocation11 + $0x208] sm:$0xff]
        %v4196 = vld [vmem:[#allocation11 + $0x210] sm:$0xff]
        %v4197 = vld [vmem:[#allocation11 + $0x218] sm:$0xff]
        %v4198 = vld [vmem:[#allocation11 + $0x220] sm:$0xff]
        %v4199 = vld [vmem:[#allocation11 + $0x228] sm:$0xff]
        %v4200 = vld [vmem:[#allocation11 + $0x230] sm:$0xff]
        %v4201 = vld [vmem:[#allocation11 + $0x238] sm:$0xff]
        %v4202 = vld [vmem:[#allocation11 + $0x240] sm:$0xff]
        %v4203 = vld [vmem:[#allocation11 + $0x248] sm:$0xff]
        %v4204 = vld [vmem:[#allocation11 + $0x250] sm:$0xff]
        %v4205 = vld [vmem:[#allocation11 + $0x258] sm:$0xff]
        %v4206 = vld [vmem:[#allocation11 + $0x260] sm:$0xff]
        %v4207 = vld [vmem:[#allocation11 + $0x268] sm:$0xff]
        %v4208 = vld [vmem:[#allocation11 + $0x270] sm:$0xff]
        %v4209 = vld [vmem:[#allocation11 + $0x278] sm:$0xff]
        %v4210 = vld [vmem:[#allocation11 + $0x280] sm:$0xff]
        %v4211 = vld [vmem:[#allocation11 + $0x288] sm:$0xff]
        %v4212 = vld [vmem:[#allocation11 + $0x290] sm:$0xff]
        %v4213 = vld [vmem:[#allocation11 + $0x298] sm:$0xff]
        %v4214 = vld [vmem:[#allocation11 + $0x2a0] sm:$0xff]
        %v4215 = vld [vmem:[#allocation11 + $0x2a8] sm:$0xff]
        %v4216 = vld [vmem:[#allocation11 + $0x2b0] sm:$0xff]
        %v4217 = vld [vmem:[#allocation11 + $0x2b8] sm:$0xff]
        %v4218 = vld [vmem:[#allocation11 + $0x2c0] sm:$0xff]
        %v4219 = vld [vmem:[#allocation11 + $0x2c8] sm:$0xff]
        %v4220 = vld [vmem:[#allocation11 + $0x2d0] sm:$0xff]
        %v4221 = vld [vmem:[#allocation11 + $0x2d8] sm:$0xff]
        %v4222 = vld [vmem:[#allocation11 + $0x2e0] sm:$0xff]
        %v4223 = vld [vmem:[#allocation11 + $0x2e8] sm:$0xff]
        %v4224 = vld [vmem:[#allocation11 + $0x2f0] sm:$0xff]
        %v4225 = vld [vmem:[#allocation11 + $0x2f8] sm:$0xff]
        %v4226 = vld [vmem:[#allocation11 + $0x300] sm:$0xff]
        %v4227 = vld [vmem:[#allocation11 + $0x308] sm:$0xff]
        %v4228 = vld [vmem:[#allocation11 + $0x310] sm:$0xff]
        %v4229 = vld [vmem:[#allocation11 + $0x318] sm:$0xff]
        %v4230 = vld [vmem:[#allocation11 + $0x320] sm:$0xff]
        %v4231 = vld [vmem:[#allocation11 + $0x328] sm:$0xff]
        %v4232 = vld [vmem:[#allocation11 + $0x330] sm:$0xff]
        %v4233 = vld [vmem:[#allocation11 + $0x338] sm:$0xff]
        %v4234 = vld [vmem:[#allocation11 + $0x340] sm:$0xff]
        %v4235 = vld [vmem:[#allocation11 + $0x348] sm:$0xff]
        %v4236 = vld [vmem:[#allocation11 + $0x350] sm:$0xff]
        %v4237 = vld [vmem:[#allocation11 + $0x358] sm:$0xff]
        %v4238 = vld [vmem:[#allocation11 + $0x360] sm:$0xff]
        %v4239 = vld [vmem:[#allocation11 + $0x368] sm:$0xff]
        %v4240 = vld [vmem:[#allocation11 + $0x370] sm:$0xff]
        %v4241 = vld [vmem:[#allocation11 + $0x378] sm:$0xff]
        %v4242 = vld [vmem:[#allocation11 + $0x380] sm:$0xff]
        %v4243 = vld [vmem:[#allocation11 + $0x388] sm:$0xff]
        %v4244 = vld [vmem:[#allocation11 + $0x390] sm:$0xff]
        %v4245 = vld [vmem:[#allocation11 + $0x398] sm:$0xff]
        %v4246 = vld [vmem:[#allocation11 + $0x3a0] sm:$0xff]
        %v4247 = vld [vmem:[#allocation11 + $0x3a8] sm:$0xff]
        %v4248 = vld [vmem:[#allocation11 + $0x3b0] sm:$0xff]
        %v4249 = vld [vmem:[#allocation11 + $0x3b8] sm:$0xff]
        %v4250 = vld [vmem:[#allocation11 + $0x3c0] sm:$0xff]
        %v4251 = vld [vmem:[#allocation11 + $0x3c8] sm:$0xff]
        %v4252 = vld [vmem:[#allocation11 + $0x3d0] sm:$0xff]
        %v4253 = vld [vmem:[#allocation11 + $0x3d8] sm:$0xff]
        %v4254 = vld [vmem:[#allocation11 + $0x3e0] sm:$0xff]
        %v4255 = vld [vmem:[#allocation11 + $0x3e8] sm:$0xff]
        %v4256 = vld [vmem:[#allocation11 + $0x3f0] sm:$0xff]
        %v4257 = vld [vmem:[#allocation11 + $0x3f8] sm:$0xff]
        %v4258 = vld [vmem:[#allocation12] sm:$0xf]
        %v4260 = vlaneseq
        %v4261 = vshrl.u32 %v4260, 7
        %v4262 = vsub.s32 0, %v4261
        %v4263 = vrot.slane %v4258, %v4262
        %v4264 = vlaneseq
        %v4265 = vshrl.u32 %v4264, 7
        %v4266 = vsub.s32 1, %v4265
        %v4267 = vrot.slane %v4258, %v4266
        %v4268 = vlaneseq
        %v4269 = vshrl.u32 %v4268, 7
        %v4270 = vsub.s32 2, %v4269
        %v4271 = vrot.slane %v4258, %v4270
        %v4272 = vlaneseq
        %v4273 = vshrl.u32 %v4272, 7
        %v4274 = vsub.s32 3, %v4273
        %v4275 = vrot.slane %v4258, %v4274
        %v4408 = vunpack.c.l.b16 %v4130
        %v4409 = vunpack.c.h.b16 %v4130
        %v4410 = vunpack.c.l.b16 %v4131
        %v4411 = vunpack.c.h.b16 %v4131
        %v4412 = vunpack.c.l.b16 %v4132
        %v4413 = vunpack.c.h.b16 %v4132
        %v4414 = vunpack.c.l.b16 %v4133
        %v4415 = vunpack.c.h.b16 %v4133
        %v4416 = vunpack.c.l.b16 %v4134
        %v4417 = vunpack.c.h.b16 %v4134
        %v4418 = vunpack.c.l.b16 %v4135
        %v4419 = vunpack.c.h.b16 %v4135
        %v4420 = vunpack.c.l.b16 %v4136
        %v4421 = vunpack.c.h.b16 %v4136
        %v4422 = vunpack.c.l.b16 %v4137
        %v4423 = vunpack.c.h.b16 %v4137
        %v4424 = vunpack.c.l.b16 %v4138
        %v4425 = vunpack.c.h.b16 %v4138
        %v4426 = vunpack.c.l.b16 %v4139
        %v4427 = vunpack.c.h.b16 %v4139
        %v4428 = vunpack.c.l.b16 %v4140
        %v4429 = vunpack.c.h.b16 %v4140
        %v4430 = vunpack.c.l.b16 %v4141
        %v4431 = vunpack.c.h.b16 %v4141
        %v4432 = vunpack.c.l.b16 %v4142
        %v4433 = vunpack.c.h.b16 %v4142
        %v4434 = vunpack.c.l.b16 %v4143
        %v4435 = vunpack.c.h.b16 %v4143
        %v4436 = vunpack.c.l.b16 %v4144
        %v4437 = vunpack.c.h.b16 %v4144
        %v4438 = vunpack.c.l.b16 %v4145
        %v4439 = vunpack.c.h.b16 %v4145
        %v4440 = vunpack.c.l.b16 %v4146
        %v4441 = vunpack.c.h.b16 %v4146
        %v4442 = vunpack.c.l.b16 %v4147
        %v4443 = vunpack.c.h.b16 %v4147
        %v4444 = vunpack.c.l.b16 %v4148
        %v4445 = vunpack.c.h.b16 %v4148
        %v4446 = vunpack.c.l.b16 %v4149
        %v4447 = vunpack.c.h.b16 %v4149
        %v4448 = vunpack.c.l.b16 %v4150
        %v4449 = vunpack.c.h.b16 %v4150
        %v4450 = vunpack.c.l.b16 %v4151
        %v4451 = vunpack.c.h.b16 %v4151
        %v4452 = vunpack.c.l.b16 %v4152
        %v4453 = vunpack.c.h.b16 %v4152
        %v4454 = vunpack.c.l.b16 %v4153
        %v4455 = vunpack.c.h.b16 %v4153
        %v4456 = vunpack.c.l.b16 %v4154
        %v4457 = vunpack.c.h.b16 %v4154
        %v4458 = vunpack.c.l.b16 %v4155
        %v4459 = vunpack.c.h.b16 %v4155
        %v4460 = vunpack.c.l.b16 %v4156
        %v4461 = vunpack.c.h.b16 %v4156
        %v4462 = vunpack.c.l.b16 %v4157
        %v4463 = vunpack.c.h.b16 %v4157
        %v4464 = vunpack.c.l.b16 %v4158
        %v4465 = vunpack.c.h.b16 %v4158
        %v4466 = vunpack.c.l.b16 %v4159
        %v4467 = vunpack.c.h.b16 %v4159
        %v4468 = vunpack.c.l.b16 %v4160
        %v4469 = vunpack.c.h.b16 %v4160
        %v4470 = vunpack.c.l.b16 %v4161
        %v4471 = vunpack.c.h.b16 %v4161
        %v4472 = vunpack.c.l.b16 %v4162
        %v4473 = vunpack.c.h.b16 %v4162
        %v4474 = vunpack.c.l.b16 %v4163
        %v4475 = vunpack.c.h.b16 %v4163
        %v4476 = vunpack.c.l.b16 %v4164
        %v4477 = vunpack.c.h.b16 %v4164
        %v4478 = vunpack.c.l.b16 %v4165
        %v4479 = vunpack.c.h.b16 %v4165
        %v4480 = vunpack.c.l.b16 %v4166
        %v4481 = vunpack.c.h.b16 %v4166
        %v4482 = vunpack.c.l.b16 %v4167
        %v4483 = vunpack.c.h.b16 %v4167
        %v4484 = vunpack.c.l.b16 %v4168
        %v4485 = vunpack.c.h.b16 %v4168
        %v4486 = vunpack.c.l.b16 %v4169
        %v4487 = vunpack.c.h.b16 %v4169
        %v4488 = vunpack.c.l.b16 %v4170
        %v4489 = vunpack.c.h.b16 %v4170
        %v4490 = vunpack.c.l.b16 %v4171
        %v4491 = vunpack.c.h.b16 %v4171
        %v4492 = vunpack.c.l.b16 %v4172
        %v4493 = vunpack.c.h.b16 %v4172
        %v4494 = vunpack.c.l.b16 %v4173
        %v4495 = vunpack.c.h.b16 %v4173
        %v4496 = vunpack.c.l.b16 %v4174
        %v4497 = vunpack.c.h.b16 %v4174
        %v4498 = vunpack.c.l.b16 %v4175
        %v4499 = vunpack.c.h.b16 %v4175
        %v4500 = vunpack.c.l.b16 %v4176
        %v4501 = vunpack.c.h.b16 %v4176
        %v4502 = vunpack.c.l.b16 %v4177
        %v4503 = vunpack.c.h.b16 %v4177
        %v4504 = vunpack.c.l.b16 %v4178
        %v4505 = vunpack.c.h.b16 %v4178
        %v4506 = vunpack.c.l.b16 %v4179
        %v4507 = vunpack.c.h.b16 %v4179
        %v4508 = vunpack.c.l.b16 %v4180
        %v4509 = vunpack.c.h.b16 %v4180
        %v4510 = vunpack.c.l.b16 %v4181
        %v4511 = vunpack.c.h.b16 %v4181
        %v4512 = vunpack.c.l.b16 %v4182
        %v4513 = vunpack.c.h.b16 %v4182
        %v4514 = vunpack.c.l.b16 %v4183
        %v4515 = vunpack.c.h.b16 %v4183
        %v4516 = vunpack.c.l.b16 %v4184
        %v4517 = vunpack.c.h.b16 %v4184
        %v4518 = vunpack.c.l.b16 %v4185
        %v4519 = vunpack.c.h.b16 %v4185
        %v4520 = vunpack.c.l.b16 %v4186
        %v4521 = vunpack.c.h.b16 %v4186
        %v4522 = vunpack.c.l.b16 %v4187
        %v4523 = vunpack.c.h.b16 %v4187
        %v4524 = vunpack.c.l.b16 %v4188
        %v4525 = vunpack.c.h.b16 %v4188
        %v4526 = vunpack.c.l.b16 %v4189
        %v4527 = vunpack.c.h.b16 %v4189
        %v4528 = vunpack.c.l.b16 %v4190
        %v4529 = vunpack.c.h.b16 %v4190
        %v4530 = vunpack.c.l.b16 %v4191
        %v4531 = vunpack.c.h.b16 %v4191
        %v4532 = vunpack.c.l.b16 %v4192
        %v4533 = vunpack.c.h.b16 %v4192
        %v4534 = vunpack.c.l.b16 %v4193
        %v4535 = vunpack.c.h.b16 %v4193
        %v4536 = vunpack.c.l.b16 %v4194
        %v4537 = vunpack.c.h.b16 %v4194
        %v4538 = vunpack.c.l.b16 %v4195
        %v4539 = vunpack.c.h.b16 %v4195
        %v4540 = vunpack.c.l.b16 %v4196
        %v4541 = vunpack.c.h.b16 %v4196
        %v4542 = vunpack.c.l.b16 %v4197
        %v4543 = vunpack.c.h.b16 %v4197
        %v4544 = vunpack.c.l.b16 %v4198
        %v4545 = vunpack.c.h.b16 %v4198
        %v4546 = vunpack.c.l.b16 %v4199
        %v4547 = vunpack.c.h.b16 %v4199
        %v4548 = vunpack.c.l.b16 %v4200
        %v4549 = vunpack.c.h.b16 %v4200
        %v4550 = vunpack.c.l.b16 %v4201
        %v4551 = vunpack.c.h.b16 %v4201
        %v4552 = vunpack.c.l.b16 %v4202
        %v4553 = vunpack.c.h.b16 %v4202
        %v4554 = vunpack.c.l.b16 %v4203
        %v4555 = vunpack.c.h.b16 %v4203
        %v4556 = vunpack.c.l.b16 %v4204
        %v4557 = vunpack.c.h.b16 %v4204
        %v4558 = vunpack.c.l.b16 %v4205
        %v4559 = vunpack.c.h.b16 %v4205
        %v4560 = vunpack.c.l.b16 %v4206
        %v4561 = vunpack.c.h.b16 %v4206
        %v4562 = vunpack.c.l.b16 %v4207
        %v4563 = vunpack.c.h.b16 %v4207
        %v4564 = vunpack.c.l.b16 %v4208
        %v4565 = vunpack.c.h.b16 %v4208
        %v4566 = vunpack.c.l.b16 %v4209
        %v4567 = vunpack.c.h.b16 %v4209
        %v4568 = vunpack.c.l.b16 %v4210
        %v4569 = vunpack.c.h.b16 %v4210
        %v4570 = vunpack.c.l.b16 %v4211
        %v4571 = vunpack.c.h.b16 %v4211
        %v4572 = vunpack.c.l.b16 %v4212
        %v4573 = vunpack.c.h.b16 %v4212
        %v4574 = vunpack.c.l.b16 %v4213
        %v4575 = vunpack.c.h.b16 %v4213
        %v4576 = vunpack.c.l.b16 %v4214
        %v4577 = vunpack.c.h.b16 %v4214
        %v4578 = vunpack.c.l.b16 %v4215
        %v4579 = vunpack.c.h.b16 %v4215
        %v4580 = vunpack.c.l.b16 %v4216
        %v4581 = vunpack.c.h.b16 %v4216
        %v4582 = vunpack.c.l.b16 %v4217
        %v4583 = vunpack.c.h.b16 %v4217
        %v4584 = vunpack.c.l.b16 %v4218
        %v4585 = vunpack.c.h.b16 %v4218
        %v4586 = vunpack.c.l.b16 %v4219
        %v4587 = vunpack.c.h.b16 %v4219
        %v4588 = vunpack.c.l.b16 %v4220
        %v4589 = vunpack.c.h.b16 %v4220
        %v4590 = vunpack.c.l.b16 %v4221
        %v4591 = vunpack.c.h.b16 %v4221
        %v4592 = vunpack.c.l.b16 %v4222
        %v4593 = vunpack.c.h.b16 %v4222
        %v4594 = vunpack.c.l.b16 %v4223
        %v4595 = vunpack.c.h.b16 %v4223
        %v4596 = vunpack.c.l.b16 %v4224
        %v4597 = vunpack.c.h.b16 %v4224
        %v4598 = vunpack.c.l.b16 %v4225
        %v4599 = vunpack.c.h.b16 %v4225
        %v4600 = vunpack.c.l.b16 %v4226
        %v4601 = vunpack.c.h.b16 %v4226
        %v4602 = vunpack.c.l.b16 %v4227
        %v4603 = vunpack.c.h.b16 %v4227
        %v4604 = vunpack.c.l.b16 %v4228
        %v4605 = vunpack.c.h.b16 %v4228
        %v4606 = vunpack.c.l.b16 %v4229
        %v4607 = vunpack.c.h.b16 %v4229
        %v4608 = vunpack.c.l.b16 %v4230
        %v4609 = vunpack.c.h.b16 %v4230
        %v4610 = vunpack.c.l.b16 %v4231
        %v4611 = vunpack.c.h.b16 %v4231
        %v4612 = vunpack.c.l.b16 %v4232
        %v4613 = vunpack.c.h.b16 %v4232
        %v4614 = vunpack.c.l.b16 %v4233
        %v4615 = vunpack.c.h.b16 %v4233
        %v4616 = vunpack.c.l.b16 %v4234
        %v4617 = vunpack.c.h.b16 %v4234
        %v4618 = vunpack.c.l.b16 %v4235
        %v4619 = vunpack.c.h.b16 %v4235
        %v4620 = vunpack.c.l.b16 %v4236
        %v4621 = vunpack.c.h.b16 %v4236
        %v4622 = vunpack.c.l.b16 %v4237
        %v4623 = vunpack.c.h.b16 %v4237
        %v4624 = vunpack.c.l.b16 %v4238
        %v4625 = vunpack.c.h.b16 %v4238
        %v4626 = vunpack.c.l.b16 %v4239
        %v4627 = vunpack.c.h.b16 %v4239
        %v4628 = vunpack.c.l.b16 %v4240
        %v4629 = vunpack.c.h.b16 %v4240
        %v4630 = vunpack.c.l.b16 %v4241
        %v4631 = vunpack.c.h.b16 %v4241
        %v4632 = vunpack.c.l.b16 %v4242
        %v4633 = vunpack.c.h.b16 %v4242
        %v4634 = vunpack.c.l.b16 %v4243
        %v4635 = vunpack.c.h.b16 %v4243
        %v4636 = vunpack.c.l.b16 %v4244
        %v4637 = vunpack.c.h.b16 %v4244
        %v4638 = vunpack.c.l.b16 %v4245
        %v4639 = vunpack.c.h.b16 %v4245
        %v4640 = vunpack.c.l.b16 %v4246
        %v4641 = vunpack.c.h.b16 %v4246
        %v4642 = vunpack.c.l.b16 %v4247
        %v4643 = vunpack.c.h.b16 %v4247
        %v4644 = vunpack.c.l.b16 %v4248
        %v4645 = vunpack.c.h.b16 %v4248
        %v4646 = vunpack.c.l.b16 %v4249
        %v4647 = vunpack.c.h.b16 %v4249
        %v4648 = vunpack.c.l.b16 %v4250
        %v4649 = vunpack.c.h.b16 %v4250
        %v4650 = vunpack.c.l.b16 %v4251
        %v4651 = vunpack.c.h.b16 %v4251
        %v4652 = vunpack.c.l.b16 %v4252
        %v4653 = vunpack.c.h.b16 %v4252
        %v4654 = vunpack.c.l.b16 %v4253
        %v4655 = vunpack.c.h.b16 %v4253
        %v4656 = vunpack.c.l.b16 %v4254
        %v4657 = vunpack.c.h.b16 %v4254
        %v4658 = vunpack.c.l.b16 %v4255
        %v4659 = vunpack.c.h.b16 %v4255
        %v4660 = vunpack.c.l.b16 %v4256
        %v4661 = vunpack.c.h.b16 %v4256
        %v4662 = vunpack.c.l.b16 %v4257
        %v4663 = vunpack.c.h.b16 %v4257
        %v4664 = vpack.c.b16 %v4412, %v4408
        %v4665 = vpack.c.b16 %v4413, %v4409
        %v4666 = vpack.c.b16 %v4414, %v4410
        %v4667 = vpack.c.b16 %v4415, %v4411
        %v4668 = vpack.c.b16 %v4420, %v4416
        %v4669 = vpack.c.b16 %v4421, %v4417
        %v4670 = vpack.c.b16 %v4422, %v4418
        %v4671 = vpack.c.b16 %v4423, %v4419
        %v4672 = vpack.c.b16 %v4428, %v4424
        %v4673 = vpack.c.b16 %v4429, %v4425
        %v4674 = vpack.c.b16 %v4430, %v4426
        %v4675 = vpack.c.b16 %v4431, %v4427
        %v4676 = vpack.c.b16 %v4436, %v4432
        %v4677 = vpack.c.b16 %v4437, %v4433
        %v4678 = vpack.c.b16 %v4438, %v4434
        %v4679 = vpack.c.b16 %v4439, %v4435
        %v4680 = vpack.c.b16 %v4444, %v4440
        %v4681 = vpack.c.b16 %v4445, %v4441
        %v4682 = vpack.c.b16 %v4446, %v4442
        %v4683 = vpack.c.b16 %v4447, %v4443
        %v4684 = vpack.c.b16 %v4452, %v4448
        %v4685 = vpack.c.b16 %v4453, %v4449
        %v4686 = vpack.c.b16 %v4454, %v4450
        %v4687 = vpack.c.b16 %v4455, %v4451
        %v4688 = vpack.c.b16 %v4460, %v4456
        %v4689 = vpack.c.b16 %v4461, %v4457
        %v4690 = vpack.c.b16 %v4462, %v4458
        %v4691 = vpack.c.b16 %v4463, %v4459
        %v4692 = vpack.c.b16 %v4468, %v4464
        %v4693 = vpack.c.b16 %v4469, %v4465
        %v4694 = vpack.c.b16 %v4470, %v4466
        %v4695 = vpack.c.b16 %v4471, %v4467
        %v4696 = vpack.c.b16 %v4476, %v4472
        %v4697 = vpack.c.b16 %v4477, %v4473
        %v4698 = vpack.c.b16 %v4478, %v4474
        %v4699 = vpack.c.b16 %v4479, %v4475
        %v4700 = vpack.c.b16 %v4484, %v4480
        %v4701 = vpack.c.b16 %v4485, %v4481
        %v4702 = vpack.c.b16 %v4486, %v4482
        %v4703 = vpack.c.b16 %v4487, %v4483
        %v4704 = vpack.c.b16 %v4492, %v4488
        %v4705 = vpack.c.b16 %v4493, %v4489
        %v4706 = vpack.c.b16 %v4494, %v4490
        %v4707 = vpack.c.b16 %v4495, %v4491
        %v4708 = vpack.c.b16 %v4500, %v4496
        %v4709 = vpack.c.b16 %v4501, %v4497
        %v4710 = vpack.c.b16 %v4502, %v4498
        %v4711 = vpack.c.b16 %v4503, %v4499
        %v4712 = vpack.c.b16 %v4508, %v4504
        %v4713 = vpack.c.b16 %v4509, %v4505
        %v4714 = vpack.c.b16 %v4510, %v4506
        %v4715 = vpack.c.b16 %v4511, %v4507
        %v4716 = vpack.c.b16 %v4516, %v4512
        %v4717 = vpack.c.b16 %v4517, %v4513
        %v4718 = vpack.c.b16 %v4518, %v4514
        %v4719 = vpack.c.b16 %v4519, %v4515
        %v4720 = vpack.c.b16 %v4524, %v4520
        %v4721 = vpack.c.b16 %v4525, %v4521
        %v4722 = vpack.c.b16 %v4526, %v4522
        %v4723 = vpack.c.b16 %v4527, %v4523
        %v4724 = vpack.c.b16 %v4532, %v4528
        %v4725 = vpack.c.b16 %v4533, %v4529
        %v4726 = vpack.c.b16 %v4534, %v4530
        %v4727 = vpack.c.b16 %v4535, %v4531
        %v4728 = vpack.c.b16 %v4540, %v4536
        %v4729 = vpack.c.b16 %v4541, %v4537
        %v4730 = vpack.c.b16 %v4542, %v4538
        %v4731 = vpack.c.b16 %v4543, %v4539
        %v4732 = vpack.c.b16 %v4548, %v4544
        %v4733 = vpack.c.b16 %v4549, %v4545
        %v4734 = vpack.c.b16 %v4550, %v4546
        %v4735 = vpack.c.b16 %v4551, %v4547
        %v4736 = vpack.c.b16 %v4556, %v4552
        %v4737 = vpack.c.b16 %v4557, %v4553
        %v4738 = vpack.c.b16 %v4558, %v4554
        %v4739 = vpack.c.b16 %v4559, %v4555
        %v4740 = vpack.c.b16 %v4564, %v4560
        %v4741 = vpack.c.b16 %v4565, %v4561
        %v4742 = vpack.c.b16 %v4566, %v4562
        %v4743 = vpack.c.b16 %v4567, %v4563
        %v4744 = vpack.c.b16 %v4572, %v4568
        %v4745 = vpack.c.b16 %v4573, %v4569
        %v4746 = vpack.c.b16 %v4574, %v4570
        %v4747 = vpack.c.b16 %v4575, %v4571
        %v4748 = vpack.c.b16 %v4580, %v4576
        %v4749 = vpack.c.b16 %v4581, %v4577
        %v4750 = vpack.c.b16 %v4582, %v4578
        %v4751 = vpack.c.b16 %v4583, %v4579
        %v4752 = vpack.c.b16 %v4588, %v4584
        %v4753 = vpack.c.b16 %v4589, %v4585
        %v4754 = vpack.c.b16 %v4590, %v4586
        %v4755 = vpack.c.b16 %v4591, %v4587
        %v4756 = vpack.c.b16 %v4596, %v4592
        %v4757 = vpack.c.b16 %v4597, %v4593
        %v4758 = vpack.c.b16 %v4598, %v4594
        %v4759 = vpack.c.b16 %v4599, %v4595
        %v4760 = vpack.c.b16 %v4604, %v4600
        %v4761 = vpack.c.b16 %v4605, %v4601
        %v4762 = vpack.c.b16 %v4606, %v4602
        %v4763 = vpack.c.b16 %v4607, %v4603
        %v4764 = vpack.c.b16 %v4612, %v4608
        %v4765 = vpack.c.b16 %v4613, %v4609
        %v4766 = vpack.c.b16 %v4614, %v4610
        %v4767 = vpack.c.b16 %v4615, %v4611
        %v4768 = vpack.c.b16 %v4620, %v4616
        %v4769 = vpack.c.b16 %v4621, %v4617
        %v4770 = vpack.c.b16 %v4622, %v4618
        %v4771 = vpack.c.b16 %v4623, %v4619
        %v4772 = vpack.c.b16 %v4628, %v4624
        %v4773 = vpack.c.b16 %v4629, %v4625
        %v4774 = vpack.c.b16 %v4630, %v4626
        %v4775 = vpack.c.b16 %v4631, %v4627
        %v4776 = vpack.c.b16 %v4636, %v4632
        %v4777 = vpack.c.b16 %v4637, %v4633
        %v4778 = vpack.c.b16 %v4638, %v4634
        %v4779 = vpack.c.b16 %v4639, %v4635
        %v4780 = vpack.c.b16 %v4644, %v4640
        %v4781 = vpack.c.b16 %v4645, %v4641
        %v4782 = vpack.c.b16 %v4646, %v4642
        %v4783 = vpack.c.b16 %v4647, %v4643
        %v4784 = vpack.c.b16 %v4652, %v4648
        %v4785 = vpack.c.b16 %v4653, %v4649
        %v4786 = vpack.c.b16 %v4654, %v4650
        %v4787 = vpack.c.b16 %v4655, %v4651
        %v4788 = vpack.c.b16 %v4660, %v4656
        %v4789 = vpack.c.b16 %v4661, %v4657
        %v4790 = vpack.c.b16 %v4662, %v4658
        %v4791 = vpack.c.b16 %v4663, %v4659
        %4920 = vmatprep.subr.bf16.mxu0 %v4665
        %4921 = vmatpush1.bf16.msra.mxu0 %v4664
        %4922 = vmatprep.subr.bf16.mxu0 %v4669
        %4923 = vmatpush1.bf16.msra.mxu0 %v4668
        %4924 = vmatprep.subr.bf16.mxu0 %v4673
        %4925 = vmatpush1.bf16.msra.mxu0 %v4672
        %4926 = vmatprep.subr.bf16.mxu0 %v4677
        %4927 = vmatpush1.bf16.msra.mxu0 %v4676
        %4928 = vmatprep.subr.bf16.mxu0 %v4681
        %4929 = vmatpush1.bf16.msra.mxu0 %v4680
        %4930 = vmatprep.subr.bf16.mxu0 %v4685
        %4931 = vmatpush1.bf16.msra.mxu0 %v4684
        %4932 = vmatprep.subr.bf16.mxu0 %v4689
        %4933 = vmatpush1.bf16.msra.mxu0 %v4688
        %4934 = vmatprep.subr.bf16.mxu0 %v4693
        %4935 = vmatpush1.bf16.msra.mxu0 %v4692
        %4936 = vmatprep.subr.bf16.mxu0 %v4697
        %4937 = vmatpush1.bf16.msra.mxu0 %v4696
        %4938 = vmatprep.subr.bf16.mxu0 %v4701
        %4939 = vmatpush1.bf16.msra.mxu0 %v4700
        %4940 = vmatprep.subr.bf16.mxu0 %v4705
        %4941 = vmatpush1.bf16.msra.mxu0 %v4704
        %4942 = vmatprep.subr.bf16.mxu0 %v4709
        %4943 = vmatpush1.bf16.msra.mxu0 %v4708
        %4944 = vmatprep.subr.bf16.mxu0 %v4713
        %4945 = vmatpush1.bf16.msra.mxu0 %v4712
        %4946 = vmatprep.subr.bf16.mxu0 %v4717
        %4947 = vmatpush1.bf16.msra.mxu0 %v4716
        %4948 = vmatprep.subr.bf16.mxu0 %v4721
        %4949 = vmatpush1.bf16.msra.mxu0 %v4720
        %4950 = vmatprep.subr.bf16.mxu0 %v4725
        %4951 = vmatpush1.bf16.msra.mxu0 %v4724
        %4952 = vmatprep.mubr.bf16.mxu0 %v4127
        %4953 = vmatmul.mubr.bf16.gmra.mrb[0].mxu0 %v4126
        %v4954 = vpop.f32.mrb[0].mxu0
        %v4955 = vadd.f32 %v4263, %v4954
        %v4956 = vpop.f32.mrb[0].mxu0
        %v4957 = vadd.f32 %v4267, %v4956
        %v4958 = vpop.f32.mrb[0].mxu0
        %v4959 = vpop.f32.mrb[0].mxu0
        %4960 = vdwg.mxu0
        %4961 = vmatprep.subr.bf16.mxu0 %v4729
        %4962 = vmatpush1.bf16.msra.mxu0 %v4728
        %4963 = vmatprep.subr.bf16.mxu0 %v4733
        %4964 = vmatpush1.bf16.msra.mxu0 %v4732
        %4965 = vmatprep.subr.bf16.mxu0 %v4737
        %4966 = vmatpush1.bf16.msra.mxu0 %v4736
        %4967 = vmatprep.subr.bf16.mxu0 %v4741
        %4968 = vmatpush1.bf16.msra.mxu0 %v4740
        %4969 = vmatprep.subr.bf16.mxu0 %v4745
        %4970 = vmatpush1.bf16.msra.mxu0 %v4744
        %4971 = vmatprep.subr.bf16.mxu0 %v4749
        %4972 = vmatpush1.bf16.msra.mxu0 %v4748
        %4973 = vmatprep.subr.bf16.mxu0 %v4753
        %4974 = vmatpush1.bf16.msra.mxu0 %v4752
        %4975 = vmatprep.subr.bf16.mxu0 %v4757
        %4976 = vmatpush1.bf16.msra.mxu0 %v4756
        %4977 = vmatprep.subr.bf16.mxu0 %v4761
        %4978 = vmatpush1.bf16.msra.mxu0 %v4760
        %4979 = vmatprep.subr.bf16.mxu0 %v4765
        %4980 = vmatpush1.bf16.msra.mxu0 %v4764
        %4981 = vmatprep.subr.bf16.mxu0 %v4769
        %4982 = vmatpush1.bf16.msra.mxu0 %v4768
        %4983 = vmatprep.subr.bf16.mxu0 %v4773
        %4984 = vmatpush1.bf16.msra.mxu0 %v4772
        %4985 = vmatprep.subr.bf16.mxu0 %v4777
        %4986 = vmatpush1.bf16.msra.mxu0 %v4776
        %4987 = vmatprep.subr.bf16.mxu0 %v4781
        %4988 = vmatpush1.bf16.msra.mxu0 %v4780
        %4989 = vmatprep.subr.bf16.mxu0 %v4785
        %4990 = vmatpush1.bf16.msra.mxu0 %v4784
        %4991 = vmatprep.subr.bf16.mxu0 %v4789
        %4992 = vmatpush1.bf16.msra.mxu0 %v4788
        %4993 = vmatprep.mubr.bf16.mxu0 %v4129
        %4994 = vmatmul.mubr.bf16.gmra.mrb[0].mxu0 %v4128
        %v4995 = vpop.f32.mrb[0].mxu0
        %v4996 = vadd.f32 %v4955, %v4995
        %v4997 = vpop.f32.mrb[0].mxu0
        %v4998 = vadd.f32 %v4957, %v4997
        %v4999 = vpop.f32.mrb[0].mxu0
        %v5000 = vpop.f32.mrb[0].mxu0
        %5001 = vdwg.mxu0
        %5002 = vmatprep.subr.bf16.mxu0 %v4667
        %5003 = vmatpush1.bf16.msra.mxu0 %v4666
        %5004 = vmatprep.subr.bf16.mxu0 %v4671
        %5005 = vmatpush1.bf16.msra.mxu0 %v4670
        %5006 = vmatprep.subr.bf16.mxu0 %v4675
        %5007 = vmatpush1.bf16.msra.mxu0 %v4674
        %5008 = vmatprep.subr.bf16.mxu0 %v4679
        %5009 = vmatpush1.bf16.msra.mxu0 %v4678
        %5010 = vmatprep.subr.bf16.mxu0 %v4683
        %5011 = vmatpush1.bf16.msra.mxu0 %v4682
        %5012 = vmatprep.subr.bf16.mxu0 %v4687
        %5013 = vmatpush1.bf16.msra.mxu0 %v4686
        %5014 = vmatprep.subr.bf16.mxu0 %v4691
        %5015 = vmatpush1.bf16.msra.mxu0 %v4690
        %5016 = vmatprep.subr.bf16.mxu0 %v4695
        %5017 = vmatpush1.bf16.msra.mxu0 %v4694
        %5018 = vmatprep.subr.bf16.mxu0 %v4699
        %5019 = vmatpush1.bf16.msra.mxu0 %v4698
        %5020 = vmatprep.subr.bf16.mxu0 %v4703
        %5021 = vmatpush1.bf16.msra.mxu0 %v4702
        %5022 = vmatprep.subr.bf16.mxu0 %v4707
        %5023 = vmatpush1.bf16.msra.mxu0 %v4706
        %5024 = vmatprep.subr.bf16.mxu0 %v4711
        %5025 = vmatpush1.bf16.msra.mxu0 %v4710
        %5026 = vmatprep.subr.bf16.mxu0 %v4715
        %5027 = vmatpush1.bf16.msra.mxu0 %v4714
        %5028 = vmatprep.subr.bf16.mxu0 %v4719
        %5029 = vmatpush1.bf16.msra.mxu0 %v4718
        %5030 = vmatprep.subr.bf16.mxu0 %v4723
        %5031 = vmatpush1.bf16.msra.mxu0 %v4722
        %5032 = vmatprep.subr.bf16.mxu0 %v4727
        %5033 = vmatpush1.bf16.msra.mxu0 %v4726
        %5034 = vmatprep.mubr.bf16.mxu0 %v4127
        %5035 = vmatmul.mubr.bf16.gmra.mrb[0].mxu0 %v4126
        %v5036 = vpop.f32.mrb[0].mxu0
        %v5037 = vadd.f32 %v4271, %v5036
        %v5038 = vpop.f32.mrb[0].mxu0
        %v5039 = vadd.f32 %v4275, %v5038
        %v5040 = vpop.f32.mrb[0].mxu0
        %v5041 = vpop.f32.mrb[0].mxu0
        %5042 = vdwg.mxu0
        %5043 = vmatprep.subr.bf16.mxu0 %v4731
        %5044 = vmatpush1.bf16.msra.mxu0 %v4730
        %5045 = vmatprep.subr.bf16.mxu0 %v4735
        %5046 = vmatpush1.bf16.msra.mxu0 %v4734
        %5047 = vmatprep.subr.bf16.mxu0 %v4739
        %5048 = vmatpush1.bf16.msra.mxu0 %v4738
        %5049 = vmatprep.subr.bf16.mxu0 %v4743
        %5050 = vmatpush1.bf16.msra.mxu0 %v4742
        %5051 = vmatprep.subr.bf16.mxu0 %v4747
        %5052 = vmatpush1.bf16.msra.mxu0 %v4746
        %5053 = vmatprep.subr.bf16.mxu0 %v4751
        %5054 = vmatpush1.bf16.msra.mxu0 %v4750
        %5055 = vmatprep.subr.bf16.mxu0 %v4755
        %5056 = vmatpush1.bf16.msra.mxu0 %v4754
        %5057 = vmatprep.subr.bf16.mxu0 %v4759
        %5058 = vmatpush1.bf16.msra.mxu0 %v4758
        %5059 = vmatprep.subr.bf16.mxu0 %v4763
        %5060 = vmatpush1.bf16.msra.mxu0 %v4762
        %5061 = vmatprep.subr.bf16.mxu0 %v4767
        %5062 = vmatpush1.bf16.msra.mxu0 %v4766
        %5063 = vmatprep.subr.bf16.mxu0 %v4771
        %5064 = vmatpush1.bf16.msra.mxu0 %v4770
        %5065 = vmatprep.subr.bf16.mxu0 %v4775
        %5066 = vmatpush1.bf16.msra.mxu0 %v4774
        %5067 = vmatprep.subr.bf16.mxu0 %v4779
        %5068 = vmatpush1.bf16.msra.mxu0 %v4778
        %5069 = vmatprep.subr.bf16.mxu0 %v4783
        %5070 = vmatpush1.bf16.msra.mxu0 %v4782
        %5071 = vmatprep.subr.bf16.mxu0 %v4787
        %5072 = vmatpush1.bf16.msra.mxu0 %v4786
        %5073 = vmatprep.subr.bf16.mxu0 %v4791
        %5074 = vmatpush1.bf16.msra.mxu0 %v4790
        %5075 = vmatprep.mubr.bf16.mxu0 %v4129
        %5076 = vmatmul.mubr.bf16.gmra.mrb[0].mxu0 %v4128
        %v5077 = vpop.f32.mrb[0].mxu0
        %v5078 = vadd.f32 %v5037, %v5077
        %v5079 = vpop.f32.mrb[0].mxu0
        %v5080 = vadd.f32 %v5039, %v5079
        %v5081 = vpop.f32.mrb[0].mxu0
        %v5082 = vpop.f32.mrb[0].mxu0
        %5083 = vdwg.mxu0
        %v5084 = vadd.f32 %v827, %v4996
        %v5085 = vadd.f32 %v828, %v4998
        %v5086 = vadd.f32 %v829, %v5078
        %v5087 = vadd.f32 %v830, %v5080
        %v5088 = vld [vmem:[#allocation14] sm:$0xf]
        %v5089 = vld [vmem:[#allocation15] sm:$0xf]
        %v5090 = vadd.f32 %v5084, %v5085
        %v5091 = vadd.f32 %v5090, %v5086
        %v5092 = vadd.f32 %v5091, %v5087
        %5093 = vadd.xlane.f32.xlu0 %v5092
        %v5094 = vpop.xlane.xlu0 %5093
        %v5095 = vrcp.pop 512.0
        %v5096 = vmul.f32 %v5094, %v5095
        %v5097 = vsub.f32 %v5084, %v5096
        %v5098 = vsub.f32 %v5085, %v5096
        %v5099 = vsub.f32 %v5086, %v5096
        %v5100 = vsub.f32 %v5087, %v5096
        %v5101 = vmul.f32 %v5097, %v5097
        %v5102 = vmul.f32 %v5098, %v5098
        %v5103 = vmul.f32 %v5099, %v5099
        %v5104 = vmul.f32 %v5100, %v5100
        %v5105 = vadd.f32 %v5101, %v5102
        %v5106 = vadd.f32 %v5105, %v5103
        %v5107 = vadd.f32 %v5106, %v5104
        %5108 = vadd.xlane.f32.xlu0 %v5107
        %v5109 = vpop.xlane.xlu0 %5108
        %v5110 = vmul.f32 %v5109, %v5095
        %v5111 = vadd.f32 %v5110, 1e-05
        %v5112 = vrsqrt.pop %v5111
        %v5113 = vmul.f32 %v5097, %v5112
        %v5114 = vmul.f32 %v5098, %v5112
        %v5115 = vmul.f32 %v5099, %v5112
        %v5116 = vmul.f32 %v5100, %v5112
        %v5118 = vlaneseq
        %v5119 = vshrl.u32 %v5118, 7
        %v5120 = vsub.s32 0, %v5119
        %v5121 = vrot.slane %v5088, %v5120
        %v5122 = vlaneseq
        %v5123 = vshrl.u32 %v5122, 7
        %v5124 = vsub.s32 1, %v5123
        %v5125 = vrot.slane %v5088, %v5124
        %v5126 = vlaneseq
        %v5127 = vshrl.u32 %v5126, 7
        %v5128 = vsub.s32 2, %v5127
        %v5129 = vrot.slane %v5088, %v5128
        %v5130 = vlaneseq
        %v5131 = vshrl.u32 %v5130, 7
        %v5132 = vsub.s32 3, %v5131
        %v5133 = vrot.slane %v5088, %v5132
        %v5138 = vmul.f32 %v5113, %v5121
        %v5139 = vmul.f32 %v5114, %v5125
        %v5140 = vmul.f32 %v5115, %v5129
        %v5141 = vmul.f32 %v5116, %v5133
        %v5143 = vlaneseq
        %v5144 = vshrl.u32 %v5143, 7
        %v5145 = vsub.s32 0, %v5144
        %v5146 = vrot.slane %v5089, %v5145
        %v5147 = vlaneseq
        %v5148 = vshrl.u32 %v5147, 7
        %v5149 = vsub.s32 1, %v5148
        %v5150 = vrot.slane %v5089, %v5149
        %v5151 = vlaneseq
        %v5152 = vshrl.u32 %v5151, 7
        %v5153 = vsub.s32 2, %v5152
        %v5154 = vrot.slane %v5089, %v5153
        %v5155 = vlaneseq
        %v5156 = vshrl.u32 %v5155, 7
        %v5157 = vsub.s32 3, %v5156
        %v5158 = vrot.slane %v5089, %v5157
        %v5163 = vadd.f32 %v5138, %v5146
        %v5164 = vadd.f32 %v5139, %v5150
        %v5165 = vadd.f32 %v5140, %v5154
        %v5166 = vadd.f32 %v5141, %v5158
        %v5167 = vpack.c.bf16 %v5163, %v5163
        %v5168 = vpack.c.bf16 %v5164, %v5164
        %v5169 = vpack.c.bf16 %v5165, %v5165
        %v5170 = vpack.c.bf16 %v5166, %v5166
        %v5171 = vld [vmem:[#allocation17] sm:$0xff]
        %v5172 = vld [vmem:[#allocation17 + $0x8] sm:$0xff]
        %v5173 = vld [vmem:[#allocation17 + $0x10] sm:$0xff]
        %v5174 = vld [vmem:[#allocation17 + $0x18] sm:$0xff]
        %v5175 = vld [vmem:[#allocation17 + $0x20] sm:$0xff]
        %v5176 = vld [vmem:[#allocation17 + $0x28] sm:$0xff]
        %v5177 = vld [vmem:[#allocation17 + $0x30] sm:$0xff]
        %v5178 = vld [vmem:[#allocation17 + $0x38] sm:$0xff]
        %v5179 = vld [vmem:[#allocation17 + $0x40] sm:$0xff]
        %v5180 = vld [vmem:[#allocation17 + $0x48] sm:$0xff]
        %v5181 = vld [vmem:[#allocation17 + $0x50] sm:$0xff]
        %v5182 = vld [vmem:[#allocation17 + $0x58] sm:$0xff]
        %v5183 = vld [vmem:[#allocation17 + $0x60] sm:$0xff]
        %v5184 = vld [vmem:[#allocation17 + $0x68] sm:$0xff]
        %v5185 = vld [vmem:[#allocation17 + $0x70] sm:$0xff]
        %v5186 = vld [vmem:[#allocation17 + $0x78] sm:$0xff]
        %v5187 = vld [vmem:[#allocation17 + $0x80] sm:$0xff]
        %v5188 = vld [vmem:[#allocation17 + $0x88] sm:$0xff]
        %v5189 = vld [vmem:[#allocation17 + $0x90] sm:$0xff]
        %v5190 = vld [vmem:[#allocation17 + $0x98] sm:$0xff]
        %v5191 = vld [vmem:[#allocation17 + $0xa0] sm:$0xff]
        %v5192 = vld [vmem:[#allocation17 + $0xa8] sm:$0xff]
        %v5193 = vld [vmem:[#allocation17 + $0xb0] sm:$0xff]
        %v5194 = vld [vmem:[#allocation17 + $0xb8] sm:$0xff]
        %v5195 = vld [vmem:[#allocation17 + $0xc0] sm:$0xff]
        %v5196 = vld [vmem:[#allocation17 + $0xc8] sm:$0xff]
        %v5197 = vld [vmem:[#allocation17 + $0xd0] sm:$0xff]
        %v5198 = vld [vmem:[#allocation17 + $0xd8] sm:$0xff]
        %v5199 = vld [vmem:[#allocation17 + $0xe0] sm:$0xff]
        %v5200 = vld [vmem:[#allocation17 + $0xe8] sm:$0xff]
        %v5201 = vld [vmem:[#allocation17 + $0xf0] sm:$0xff]
        %v5202 = vld [vmem:[#allocation17 + $0xf8] sm:$0xff]
        %v5203 = vld [vmem:[#allocation17 + $0x100] sm:$0xff]
        %v5204 = vld [vmem:[#allocation17 + $0x108] sm:$0xff]
        %v5205 = vld [vmem:[#allocation17 + $0x110] sm:$0xff]
        %v5206 = vld [vmem:[#allocation17 + $0x118] sm:$0xff]
        %v5207 = vld [vmem:[#allocation17 + $0x120] sm:$0xff]
        %v5208 = vld [vmem:[#allocation17 + $0x128] sm:$0xff]
        %v5209 = vld [vmem:[#allocation17 + $0x130] sm:$0xff]
        %v5210 = vld [vmem:[#allocation17 + $0x138] sm:$0xff]
        %v5211 = vld [vmem:[#allocation17 + $0x140] sm:$0xff]
        %v5212 = vld [vmem:[#allocation17 + $0x148] sm:$0xff]
        %v5213 = vld [vmem:[#allocation17 + $0x150] sm:$0xff]
        %v5214 = vld [vmem:[#allocation17 + $0x158] sm:$0xff]
        %v5215 = vld [vmem:[#allocation17 + $0x160] sm:$0xff]
        %v5216 = vld [vmem:[#allocation17 + $0x168] sm:$0xff]
        %v5217 = vld [vmem:[#allocation17 + $0x170] sm:$0xff]
        %v5218 = vld [vmem:[#allocation17 + $0x178] sm:$0xff]
        %v5219 = vld [vmem:[#allocation17 + $0x180] sm:$0xff]
        %v5220 = vld [vmem:[#allocation17 + $0x188] sm:$0xff]
        %v5221 = vld [vmem:[#allocation17 + $0x190] sm:$0xff]
        %v5222 = vld [vmem:[#allocation17 + $0x198] sm:$0xff]
        %v5223 = vld [vmem:[#allocation17 + $0x1a0] sm:$0xff]
        %v5224 = vld [vmem:[#allocation17 + $0x1a8] sm:$0xff]
        %v5225 = vld [vmem:[#allocation17 + $0x1b0] sm:$0xff]
        %v5226 = vld [vmem:[#allocation17 + $0x1b8] sm:$0xff]
        %v5227 = vld [vmem:[#allocation17 + $0x1c0] sm:$0xff]
        %v5228 = vld [vmem:[#allocation17 + $0x1c8] sm:$0xff]
        %v5229 = vld [vmem:[#allocation17 + $0x1d0] sm:$0xff]
        %v5230 = vld [vmem:[#allocation17 + $0x1d8] sm:$0xff]
        %v5231 = vld [vmem:[#allocation17 + $0x1e0] sm:$0xff]
        %v5232 = vld [vmem:[#allocation17 + $0x1e8] sm:$0xff]
        %v5233 = vld [vmem:[#allocation17 + $0x1f0] sm:$0xff]
        %v5234 = vld [vmem:[#allocation17 + $0x1f8] sm:$0xff]
        %v5235 = vld [vmem:[#allocation18] sm:$0x3]
        %v5237 = vlaneseq
        %v5238 = vshrl.u32 %v5237, 7
        %v5239 = vsub.s32 0, %v5238
        %v5240 = vrot.slane %v5235, %v5239
        %v5241 = vlaneseq
        %v5242 = vshrl.u32 %v5241, 7
        %v5243 = vsub.s32 1, %v5242
        %v5244 = vrot.slane %v5235, %v5243
        %v5311 = vunpack.c.l.b16 %v5171
        %v5312 = vunpack.c.h.b16 %v5171
        %v5313 = vunpack.c.l.b16 %v5172
        %v5314 = vunpack.c.h.b16 %v5172
        %v5315 = vunpack.c.l.b16 %v5173
        %v5316 = vunpack.c.h.b16 %v5173
        %v5317 = vunpack.c.l.b16 %v5174
        %v5318 = vunpack.c.h.b16 %v5174
        %v5319 = vunpack.c.l.b16 %v5175
        %v5320 = vunpack.c.h.b16 %v5175
        %v5321 = vunpack.c.l.b16 %v5176
        %v5322 = vunpack.c.h.b16 %v5176
        %v5323 = vunpack.c.l.b16 %v5177
        %v5324 = vunpack.c.h.b16 %v5177
        %v5325 = vunpack.c.l.b16 %v5178
        %v5326 = vunpack.c.h.b16 %v5178
        %v5327 = vunpack.c.l.b16 %v5179
        %v5328 = vunpack.c.h.b16 %v5179
        %v5329 = vunpack.c.l.b16 %v5180
        %v5330 = vunpack.c.h.b16 %v5180
        %v5331 = vunpack.c.l.b16 %v5181
        %v5332 = vunpack.c.h.b16 %v5181
        %v5333 = vunpack.c.l.b16 %v5182
        %v5334 = vunpack.c.h.b16 %v5182
        %v5335 = vunpack.c.l.b16 %v5183
        %v5336 = vunpack.c.h.b16 %v5183
        %v5337 = vunpack.c.l.b16 %v5184
        %v5338 = vunpack.c.h.b16 %v5184
        %v5339 = vunpack.c.l.b16 %v5185
        %v5340 = vunpack.c.h.b16 %v5185
        %v5341 = vunpack.c.l.b16 %v5186
        %v5342 = vunpack.c.h.b16 %v5186
        %v5343 = vunpack.c.l.b16 %v5187
        %v5344 = vunpack.c.h.b16 %v5187
        %v5345 = vunpack.c.l.b16 %v5188
        %v5346 = vunpack.c.h.b16 %v5188
        %v5347 = vunpack.c.l.b16 %v5189
        %v5348 = vunpack.c.h.b16 %v5189
        %v5349 = vunpack.c.l.b16 %v5190
        %v5350 = vunpack.c.h.b16 %v5190
        %v5351 = vunpack.c.l.b16 %v5191
        %v5352 = vunpack.c.h.b16 %v5191
        %v5353 = vunpack.c.l.b16 %v5192
        %v5354 = vunpack.c.h.b16 %v5192
        %v5355 = vunpack.c.l.b16 %v5193
        %v5356 = vunpack.c.h.b16 %v5193
        %v5357 = vunpack.c.l.b16 %v5194
        %v5358 = vunpack.c.h.b16 %v5194
        %v5359 = vunpack.c.l.b16 %v5195
        %v5360 = vunpack.c.h.b16 %v5195
        %v5361 = vunpack.c.l.b16 %v5196
        %v5362 = vunpack.c.h.b16 %v5196
        %v5363 = vunpack.c.l.b16 %v5197
        %v5364 = vunpack.c.h.b16 %v5197
        %v5365 = vunpack.c.l.b16 %v5198
        %v5366 = vunpack.c.h.b16 %v5198
        %v5367 = vunpack.c.l.b16 %v5199
        %v5368 = vunpack.c.h.b16 %v5199
        %v5369 = vunpack.c.l.b16 %v5200
        %v5370 = vunpack.c.h.b16 %v5200
        %v5371 = vunpack.c.l.b16 %v5201
        %v5372 = vunpack.c.h.b16 %v5201
        %v5373 = vunpack.c.l.b16 %v5202
        %v5374 = vunpack.c.h.b16 %v5202
        %v5375 = vunpack.c.l.b16 %v5203
        %v5376 = vunpack.c.h.b16 %v5203
        %v5377 = vunpack.c.l.b16 %v5204
        %v5378 = vunpack.c.h.b16 %v5204
        %v5379 = vunpack.c.l.b16 %v5205
        %v5380 = vunpack.c.h.b16 %v5205
        %v5381 = vunpack.c.l.b16 %v5206
        %v5382 = vunpack.c.h.b16 %v5206
        %v5383 = vunpack.c.l.b16 %v5207
        %v5384 = vunpack.c.h.b16 %v5207
        %v5385 = vunpack.c.l.b16 %v5208
        %v5386 = vunpack.c.h.b16 %v5208
        %v5387 = vunpack.c.l.b16 %v5209
        %v5388 = vunpack.c.h.b16 %v5209
        %v5389 = vunpack.c.l.b16 %v5210
        %v5390 = vunpack.c.h.b16 %v5210
        %v5391 = vunpack.c.l.b16 %v5211
        %v5392 = vunpack.c.h.b16 %v5211
        %v5393 = vunpack.c.l.b16 %v5212
        %v5394 = vunpack.c.h.b16 %v5212
        %v5395 = vunpack.c.l.b16 %v5213
        %v5396 = vunpack.c.h.b16 %v5213
        %v5397 = vunpack.c.l.b16 %v5214
        %v5398 = vunpack.c.h.b16 %v5214
        %v5399 = vunpack.c.l.b16 %v5215
        %v5400 = vunpack.c.h.b16 %v5215
        %v5401 = vunpack.c.l.b16 %v5216
        %v5402 = vunpack.c.h.b16 %v5216
        %v5403 = vunpack.c.l.b16 %v5217
        %v5404 = vunpack.c.h.b16 %v5217
        %v5405 = vunpack.c.l.b16 %v5218
        %v5406 = vunpack.c.h.b16 %v5218
        %v5407 = vunpack.c.l.b16 %v5219
        %v5408 = vunpack.c.h.b16 %v5219
        %v5409 = vunpack.c.l.b16 %v5220
        %v5410 = vunpack.c.h.b16 %v5220
        %v5411 = vunpack.c.l.b16 %v5221
        %v5412 = vunpack.c.h.b16 %v5221
        %v5413 = vunpack.c.l.b16 %v5222
        %v5414 = vunpack.c.h.b16 %v5222
        %v5415 = vunpack.c.l.b16 %v5223
        %v5416 = vunpack.c.h.b16 %v5223
        %v5417 = vunpack.c.l.b16 %v5224
        %v5418 = vunpack.c.h.b16 %v5224
        %v5419 = vunpack.c.l.b16 %v5225
        %v5420 = vunpack.c.h.b16 %v5225
        %v5421 = vunpack.c.l.b16 %v5226
        %v5422 = vunpack.c.h.b16 %v5226
        %v5423 = vunpack.c.l.b16 %v5227
        %v5424 = vunpack.c.h.b16 %v5227
        %v5425 = vunpack.c.l.b16 %v5228
        %v5426 = vunpack.c.h.b16 %v5228
        %v5427 = vunpack.c.l.b16 %v5229
        %v5428 = vunpack.c.h.b16 %v5229
        %v5429 = vunpack.c.l.b16 %v5230
        %v5430 = vunpack.c.h.b16 %v5230
        %v5431 = vunpack.c.l.b16 %v5231
        %v5432 = vunpack.c.h.b16 %v5231
        %v5433 = vunpack.c.l.b16 %v5232
        %v5434 = vunpack.c.h.b16 %v5232
        %v5435 = vunpack.c.l.b16 %v5233
        %v5436 = vunpack.c.h.b16 %v5233
        %v5437 = vunpack.c.l.b16 %v5234
        %v5438 = vunpack.c.h.b16 %v5234
        %v5439 = vpack.c.b16 %v5313, %v5311
        %v5440 = vpack.c.b16 %v5314, %v5312
        %v5441 = vpack.c.b16 %v5317, %v5315
        %v5442 = vpack.c.b16 %v5318, %v5316
        %v5443 = vpack.c.b16 %v5321, %v5319
        %v5444 = vpack.c.b16 %v5322, %v5320
        %v5445 = vpack.c.b16 %v5325, %v5323
        %v5446 = vpack.c.b16 %v5326, %v5324
        %v5447 = vpack.c.b16 %v5329, %v5327
        %v5448 = vpack.c.b16 %v5330, %v5328
        %v5449 = vpack.c.b16 %v5333, %v5331
        %v5450 = vpack.c.b16 %v5334, %v5332
        %v5451 = vpack.c.b16 %v5337, %v5335
        %v5452 = vpack.c.b16 %v5338, %v5336
        %v5453 = vpack.c.b16 %v5341, %v5339
        %v5454 = vpack.c.b16 %v5342, %v5340
        %v5455 = vpack.c.b16 %v5345, %v5343
        %v5456 = vpack.c.b16 %v5346, %v5344
        %v5457 = vpack.c.b16 %v5349, %v5347
        %v5458 = vpack.c.b16 %v5350, %v5348
        %v5459 = vpack.c.b16 %v5353, %v5351
        %v5460 = vpack.c.b16 %v5354, %v5352
        %v5461 = vpack.c.b16 %v5357, %v5355
        %v5462 = vpack.c.b16 %v5358, %v5356
        %v5463 = vpack.c.b16 %v5361, %v5359
        %v5464 = vpack.c.b16 %v5362, %v5360
        %v5465 = vpack.c.b16 %v5365, %v5363
        %v5466 = vpack.c.b16 %v5366, %v5364
        %v5467 = vpack.c.b16 %v5369, %v5367
        %v5468 = vpack.c.b16 %v5370, %v5368
        %v5469 = vpack.c.b16 %v5373, %v5371
        %v5470 = vpack.c.b16 %v5374, %v5372
        %v5471 = vpack.c.b16 %v5377, %v5375
        %v5472 = vpack.c.b16 %v5378, %v5376
        %v5473 = vpack.c.b16 %v5381, %v5379
        %v5474 = vpack.c.b16 %v5382, %v5380
        %v5475 = vpack.c.b16 %v5385, %v5383
        %v5476 = vpack.c.b16 %v5386, %v5384
        %v5477 = vpack.c.b16 %v5389, %v5387
        %v5478 = vpack.c.b16 %v5390, %v5388
        %v5479 = vpack.c.b16 %v5393, %v5391
        %v5480 = vpack.c.b16 %v5394, %v5392
        %v5481 = vpack.c.b16 %v5397, %v5395
        %v5482 = vpack.c.b16 %v5398, %v5396
        %v5483 = vpack.c.b16 %v5401, %v5399
        %v5484 = vpack.c.b16 %v5402, %v5400
        %v5485 = vpack.c.b16 %v5405, %v5403
        %v5486 = vpack.c.b16 %v5406, %v5404
        %v5487 = vpack.c.b16 %v5409, %v5407
        %v5488 = vpack.c.b16 %v5410, %v5408
        %v5489 = vpack.c.b16 %v5413, %v5411
        %v5490 = vpack.c.b16 %v5414, %v5412
        %v5491 = vpack.c.b16 %v5417, %v5415
        %v5492 = vpack.c.b16 %v5418, %v5416
        %v5493 = vpack.c.b16 %v5421, %v5419
        %v5494 = vpack.c.b16 %v5422, %v5420
        %v5495 = vpack.c.b16 %v5425, %v5423
        %v5496 = vpack.c.b16 %v5426, %v5424
        %v5497 = vpack.c.b16 %v5429, %v5427
        %v5498 = vpack.c.b16 %v5430, %v5428
        %v5499 = vpack.c.b16 %v5433, %v5431
        %v5500 = vpack.c.b16 %v5434, %v5432
        %v5501 = vpack.c.b16 %v5437, %v5435
        %v5502 = vpack.c.b16 %v5438, %v5436
        %5567 = vmatprep.subr.bf16.mxu0 %v5440
        %5568 = vmatpush1.bf16.msra.mxu0 %v5439
        %5569 = vmatprep.subr.bf16.mxu0 %v5442
        %5570 = vmatpush1.bf16.msra.mxu0 %v5441
        %5571 = vmatprep.subr.bf16.mxu0 %v5444
        %5572 = vmatpush1.bf16.msra.mxu0 %v5443
        %5573 = vmatprep.subr.bf16.mxu0 %v5446
        %5574 = vmatpush1.bf16.msra.mxu0 %v5445
        %5575 = vmatprep.subr.bf16.mxu0 %v5448
        %5576 = vmatpush1.bf16.msra.mxu0 %v5447
        %5577 = vmatprep.subr.bf16.mxu0 %v5450
        %5578 = vmatpush1.bf16.msra.mxu0 %v5449
        %5579 = vmatprep.subr.bf16.mxu0 %v5452
        %5580 = vmatpush1.bf16.msra.mxu0 %v5451
        %5581 = vmatprep.subr.bf16.mxu0 %v5454
        %5582 = vmatpush1.bf16.msra.mxu0 %v5453
        %5583 = vmatprep.subr.bf16.mxu0 %v5456
        %5584 = vmatpush1.bf16.msra.mxu0 %v5455
        %5585 = vmatprep.subr.bf16.mxu0 %v5458
        %5586 = vmatpush1.bf16.msra.mxu0 %v5457
        %5587 = vmatprep.subr.bf16.mxu0 %v5460
        %5588 = vmatpush1.bf16.msra.mxu0 %v5459
        %5589 = vmatprep.subr.bf16.mxu0 %v5462
        %5590 = vmatpush1.bf16.msra.mxu0 %v5461
        %5591 = vmatprep.subr.bf16.mxu0 %v5464
        %5592 = vmatpush1.bf16.msra.mxu0 %v5463
        %5593 = vmatprep.subr.bf16.mxu0 %v5466
        %5594 = vmatpush1.bf16.msra.mxu0 %v5465
        %5595 = vmatprep.subr.bf16.mxu0 %v5468
        %5596 = vmatpush1.bf16.msra.mxu0 %v5467
        %5597 = vmatprep.subr.bf16.mxu0 %v5470
        %5598 = vmatpush1.bf16.msra.mxu0 %v5469
        %5599 = vmatprep.mubr.bf16.mxu0 %v5168
        %5600 = vmatmul.mubr.bf16.gmra.mrb[0].mxu0 %v5167
        %v5601 = vpop.f32.mrb[0].mxu0
        %v5602 = vadd.f32 %v5240, %v5601
        %v5603 = vpop.f32.mrb[0].mxu0
        %v5604 = vadd.f32 %v5244, %v5603
        %v5605 = vpop.f32.mrb[0].mxu0
        %v5606 = vpop.f32.mrb[0].mxu0
        %5607 = vdwg.mxu0
        %5608 = vmatprep.subr.bf16.mxu0 %v5472
        %5609 = vmatpush1.bf16.msra.mxu0 %v5471
        %5610 = vmatprep.subr.bf16.mxu0 %v5474
        %5611 = vmatpush1.bf16.msra.mxu0 %v5473
        %5612 = vmatprep.subr.bf16.mxu0 %v5476
        %5613 = vmatpush1.bf16.msra.mxu0 %v5475
        %5614 = vmatprep.subr.bf16.mxu0 %v5478
        %5615 = vmatpush1.bf16.msra.mxu0 %v5477
        %5616 = vmatprep.subr.bf16.mxu0 %v5480
        %5617 = vmatpush1.bf16.msra.mxu0 %v5479
        %5618 = vmatprep.subr.bf16.mxu0 %v5482
        %5619 = vmatpush1.bf16.msra.mxu0 %v5481
        %5620 = vmatprep.subr.bf16.mxu0 %v5484
        %5621 = vmatpush1.bf16.msra.mxu0 %v5483
        %5622 = vmatprep.subr.bf16.mxu0 %v5486
        %5623 = vmatpush1.bf16.msra.mxu0 %v5485
        %5624 = vmatprep.subr.bf16.mxu0 %v5488
        %5625 = vmatpush1.bf16.msra.mxu0 %v5487
        %5626 = vmatprep.subr.bf16.mxu0 %v5490
        %5627 = vmatpush1.bf16.msra.mxu0 %v5489
        %5628 = vmatprep.subr.bf16.mxu0 %v5492
        %5629 = vmatpush1.bf16.msra.mxu0 %v5491
        %5630 = vmatprep.subr.bf16.mxu0 %v5494
        %5631 = vmatpush1.bf16.msra.mxu0 %v5493
        %5632 = vmatprep.subr.bf16.mxu0 %v5496
        %5633 = vmatpush1.bf16.msra.mxu0 %v5495
        %5634 = vmatprep.subr.bf16.mxu0 %v5498
        %5635 = vmatpush1.bf16.msra.mxu0 %v5497
        %5636 = vmatprep.subr.bf16.mxu0 %v5500
        %5637 = vmatpush1.bf16.msra.mxu0 %v5499
        %5638 = vmatprep.subr.bf16.mxu0 %v5502
        %5639 = vmatpush1.bf16.msra.mxu0 %v5501
        %5640 = vmatprep.mubr.bf16.mxu0 %v5170
        %5641 = vmatmul.mubr.bf16.gmra.mrb[0].mxu0 %v5169
        %v5642 = vpop.f32.mrb[0].mxu0
        %v5643 = vadd.f32 %v5602, %v5642
        %v5644 = vpop.f32.mrb[0].mxu0
        %v5645 = vadd.f32 %v5604, %v5644
        %v5646 = vpop.f32.mrb[0].mxu0
        %v5647 = vpop.f32.mrb[0].mxu0
        %5648 = vdwg.mxu0
        %v5649 = vmax.f32 %v5643, 0.0
        %v5650 = vmax.f32 %v5645, 0.0
        %v5651 = vpack.c.bf16 %v5649, %v5649
        %v5652 = vpack.c.bf16 %v5650, %v5650
        %v5653 = vld [vmem:[#allocation20] sm:$0xff]
        %v5654 = vld [vmem:[#allocation20 + $0x8] sm:$0xff]
        %v5655 = vld [vmem:[#allocation20 + $0x10] sm:$0xff]
        %v5656 = vld [vmem:[#allocation20 + $0x18] sm:$0xff]
        %v5657 = vld [vmem:[#allocation20 + $0x20] sm:$0xff]
        %v5658 = vld [vmem:[#allocation20 + $0x28] sm:$0xff]
        %v5659 = vld [vmem:[#allocation20 + $0x30] sm:$0xff]
        %v5660 = vld [vmem:[#allocation20 + $0x38] sm:$0xff]
        %v5661 = vld [vmem:[#allocation20 + $0x40] sm:$0xff]
        %v5662 = vld [vmem:[#allocation20 + $0x48] sm:$0xff]
        %v5663 = vld [vmem:[#allocation20 + $0x50] sm:$0xff]
        %v5664 = vld [vmem:[#allocation20 + $0x58] sm:$0xff]
        %v5665 = vld [vmem:[#allocation20 + $0x60] sm:$0xff]
        %v5666 = vld [vmem:[#allocation20 + $0x68] sm:$0xff]
        %v5667 = vld [vmem:[#allocation20 + $0x70] sm:$0xff]
        %v5668 = vld [vmem:[#allocation20 + $0x78] sm:$0xff]
        %v5669 = vld [vmem:[#allocation20 + $0x80] sm:$0xff]
        %v5670 = vld [vmem:[#allocation20 + $0x88] sm:$0xff]
        %v5671 = vld [vmem:[#allocation20 + $0x90] sm:$0xff]
        %v5672 = vld [vmem:[#allocation20 + $0x98] sm:$0xff]
        %v5673 = vld [vmem:[#allocation20 + $0xa0] sm:$0xff]
        %v5674 = vld [vmem:[#allocation20 + $0xa8] sm:$0xff]
        %v5675 = vld [vmem:[#allocation20 + $0xb0] sm:$0xff]
        %v5676 = vld [vmem:[#allocation20 + $0xb8] sm:$0xff]
        %v5677 = vld [vmem:[#allocation20 + $0xc0] sm:$0xff]
        %v5678 = vld [vmem:[#allocation20 + $0xc8] sm:$0xff]
        %v5679 = vld [vmem:[#allocation20 + $0xd0] sm:$0xff]
        %v5680 = vld [vmem:[#allocation20 + $0xd8] sm:$0xff]
        %v5681 = vld [vmem:[#allocation20 + $0xe0] sm:$0xff]
        %v5682 = vld [vmem:[#allocation20 + $0xe8] sm:$0xff]
        %v5683 = vld [vmem:[#allocation20 + $0xf0] sm:$0xff]
        %v5684 = vld [vmem:[#allocation20 + $0xf8] sm:$0xff]
        %v5685 = vld [vmem:[#allocation20 + $0x100] sm:$0xff]
        %v5686 = vld [vmem:[#allocation20 + $0x108] sm:$0xff]
        %v5687 = vld [vmem:[#allocation20 + $0x110] sm:$0xff]
        %v5688 = vld [vmem:[#allocation20 + $0x118] sm:$0xff]
        %v5689 = vld [vmem:[#allocation20 + $0x120] sm:$0xff]
        %v5690 = vld [vmem:[#allocation20 + $0x128] sm:$0xff]
        %v5691 = vld [vmem:[#allocation20 + $0x130] sm:$0xff]
        %v5692 = vld [vmem:[#allocation20 + $0x138] sm:$0xff]
        %v5693 = vld [vmem:[#allocation20 + $0x140] sm:$0xff]
        %v5694 = vld [vmem:[#allocation20 + $0x148] sm:$0xff]
        %v5695 = vld [vmem:[#allocation20 + $0x150] sm:$0xff]
        %v5696 = vld [vmem:[#allocation20 + $0x158] sm:$0xff]
        %v5697 = vld [vmem:[#allocation20 + $0x160] sm:$0xff]
        %v5698 = vld [vmem:[#allocation20 + $0x168] sm:$0xff]
        %v5699 = vld [vmem:[#allocation20 + $0x170] sm:$0xff]
        %v5700 = vld [vmem:[#allocation20 + $0x178] sm:$0xff]
        %v5701 = vld [vmem:[#allocation20 + $0x180] sm:$0xff]
        %v5702 = vld [vmem:[#allocation20 + $0x188] sm:$0xff]
        %v5703 = vld [vmem:[#allocation20 + $0x190] sm:$0xff]
        %v5704 = vld [vmem:[#allocation20 + $0x198] sm:$0xff]
        %v5705 = vld [vmem:[#allocation20 + $0x1a0] sm:$0xff]
        %v5706 = vld [vmem:[#allocation20 + $0x1a8] sm:$0xff]
        %v5707 = vld [vmem:[#allocation20 + $0x1b0] sm:$0xff]
        %v5708 = vld [vmem:[#allocation20 + $0x1b8] sm:$0xff]
        %v5709 = vld [vmem:[#allocation20 + $0x1c0] sm:$0xff]
        %v5710 = vld [vmem:[#allocation20 + $0x1c8] sm:$0xff]
        %v5711 = vld [vmem:[#allocation20 + $0x1d0] sm:$0xff]
        %v5712 = vld [vmem:[#allocation20 + $0x1d8] sm:$0xff]
        %v5713 = vld [vmem:[#allocation20 + $0x1e0] sm:$0xff]
        %v5714 = vld [vmem:[#allocation20 + $0x1e8] sm:$0xff]
        %v5715 = vld [vmem:[#allocation20 + $0x1f0] sm:$0xff]
        %v5716 = vld [vmem:[#allocation20 + $0x1f8] sm:$0xff]
        %v5717 = vld [vmem:[#allocation21] sm:$0xf]
        %v5719 = vlaneseq
        %v5720 = vshrl.u32 %v5719, 7
        %v5721 = vsub.s32 0, %v5720
        %v5722 = vrot.slane %v5717, %v5721
        %v5723 = vlaneseq
        %v5724 = vshrl.u32 %v5723, 7
        %v5725 = vsub.s32 1, %v5724
        %v5726 = vrot.slane %v5717, %v5725
        %v5727 = vlaneseq
        %v5728 = vshrl.u32 %v5727, 7
        %v5729 = vsub.s32 2, %v5728
        %v5730 = vrot.slane %v5717, %v5729
        %v5731 = vlaneseq
        %v5732 = vshrl.u32 %v5731, 7
        %v5733 = vsub.s32 3, %v5732
        %v5734 = vrot.slane %v5717, %v5733
        %v5803 = vunpack.c.l.b16 %v5653
        %v5804 = vunpack.c.h.b16 %v5653
        %v5805 = vunpack.c.l.b16 %v5654
        %v5806 = vunpack.c.h.b16 %v5654
        %v5807 = vunpack.c.l.b16 %v5655
        %v5808 = vunpack.c.h.b16 %v5655
        %v5809 = vunpack.c.l.b16 %v5656
        %v5810 = vunpack.c.h.b16 %v5656
        %v5811 = vunpack.c.l.b16 %v5657
        %v5812 = vunpack.c.h.b16 %v5657
        %v5813 = vunpack.c.l.b16 %v5658
        %v5814 = vunpack.c.h.b16 %v5658
        %v5815 = vunpack.c.l.b16 %v5659
        %v5816 = vunpack.c.h.b16 %v5659
        %v5817 = vunpack.c.l.b16 %v5660
        %v5818 = vunpack.c.h.b16 %v5660
        %v5819 = vunpack.c.l.b16 %v5661
        %v5820 = vunpack.c.h.b16 %v5661
        %v5821 = vunpack.c.l.b16 %v5662
        %v5822 = vunpack.c.h.b16 %v5662
        %v5823 = vunpack.c.l.b16 %v5663
        %v5824 = vunpack.c.h.b16 %v5663
        %v5825 = vunpack.c.l.b16 %v5664
        %v5826 = vunpack.c.h.b16 %v5664
        %v5827 = vunpack.c.l.b16 %v5665
        %v5828 = vunpack.c.h.b16 %v5665
        %v5829 = vunpack.c.l.b16 %v5666
        %v5830 = vunpack.c.h.b16 %v5666
        %v5831 = vunpack.c.l.b16 %v5667
        %v5832 = vunpack.c.h.b16 %v5667
        %v5833 = vunpack.c.l.b16 %v5668
        %v5834 = vunpack.c.h.b16 %v5668
        %v5835 = vunpack.c.l.b16 %v5669
        %v5836 = vunpack.c.h.b16 %v5669
        %v5837 = vunpack.c.l.b16 %v5670
        %v5838 = vunpack.c.h.b16 %v5670
        %v5839 = vunpack.c.l.b16 %v5671
        %v5840 = vunpack.c.h.b16 %v5671
        %v5841 = vunpack.c.l.b16 %v5672
        %v5842 = vunpack.c.h.b16 %v5672
        %v5843 = vunpack.c.l.b16 %v5673
        %v5844 = vunpack.c.h.b16 %v5673
        %v5845 = vunpack.c.l.b16 %v5674
        %v5846 = vunpack.c.h.b16 %v5674
        %v5847 = vunpack.c.l.b16 %v5675
        %v5848 = vunpack.c.h.b16 %v5675
        %v5849 = vunpack.c.l.b16 %v5676
        %v5850 = vunpack.c.h.b16 %v5676
        %v5851 = vunpack.c.l.b16 %v5677
        %v5852 = vunpack.c.h.b16 %v5677
        %v5853 = vunpack.c.l.b16 %v5678
        %v5854 = vunpack.c.h.b16 %v5678
        %v5855 = vunpack.c.l.b16 %v5679
        %v5856 = vunpack.c.h.b16 %v5679
        %v5857 = vunpack.c.l.b16 %v5680
        %v5858 = vunpack.c.h.b16 %v5680
        %v5859 = vunpack.c.l.b16 %v5681
        %v5860 = vunpack.c.h.b16 %v5681
        %v5861 = vunpack.c.l.b16 %v5682
        %v5862 = vunpack.c.h.b16 %v5682
        %v5863 = vunpack.c.l.b16 %v5683
        %v5864 = vunpack.c.h.b16 %v5683
        %v5865 = vunpack.c.l.b16 %v5684
        %v5866 = vunpack.c.h.b16 %v5684
        %v5867 = vunpack.c.l.b16 %v5685
        %v5868 = vunpack.c.h.b16 %v5685
        %v5869 = vunpack.c.l.b16 %v5686
        %v5870 = vunpack.c.h.b16 %v5686
        %v5871 = vunpack.c.l.b16 %v5687
        %v5872 = vunpack.c.h.b16 %v5687
        %v5873 = vunpack.c.l.b16 %v5688
        %v5874 = vunpack.c.h.b16 %v5688
        %v5875 = vunpack.c.l.b16 %v5689
        %v5876 = vunpack.c.h.b16 %v5689
        %v5877 = vunpack.c.l.b16 %v5690
        %v5878 = vunpack.c.h.b16 %v5690
        %v5879 = vunpack.c.l.b16 %v5691
        %v5880 = vunpack.c.h.b16 %v5691
        %v5881 = vunpack.c.l.b16 %v5692
        %v5882 = vunpack.c.h.b16 %v5692
        %v5883 = vunpack.c.l.b16 %v5693
        %v5884 = vunpack.c.h.b16 %v5693
        %v5885 = vunpack.c.l.b16 %v5694
        %v5886 = vunpack.c.h.b16 %v5694
        %v5887 = vunpack.c.l.b16 %v5695
        %v5888 = vunpack.c.h.b16 %v5695
        %v5889 = vunpack.c.l.b16 %v5696
        %v5890 = vunpack.c.h.b16 %v5696
        %v5891 = vunpack.c.l.b16 %v5697
        %v5892 = vunpack.c.h.b16 %v5697
        %v5893 = vunpack.c.l.b16 %v5698
        %v5894 = vunpack.c.h.b16 %v5698
        %v5895 = vunpack.c.l.b16 %v5699
        %v5896 = vunpack.c.h.b16 %v5699
        %v5897 = vunpack.c.l.b16 %v5700
        %v5898 = vunpack.c.h.b16 %v5700
        %v5899 = vunpack.c.l.b16 %v5701
        %v5900 = vunpack.c.h.b16 %v5701
        %v5901 = vunpack.c.l.b16 %v5702
        %v5902 = vunpack.c.h.b16 %v5702
        %v5903 = vunpack.c.l.b16 %v5703
        %v5904 = vunpack.c.h.b16 %v5703
        %v5905 = vunpack.c.l.b16 %v5704
        %v5906 = vunpack.c.h.b16 %v5704
        %v5907 = vunpack.c.l.b16 %v5705
        %v5908 = vunpack.c.h.b16 %v5705
        %v5909 = vunpack.c.l.b16 %v5706
        %v5910 = vunpack.c.h.b16 %v5706
        %v5911 = vunpack.c.l.b16 %v5707
        %v5912 = vunpack.c.h.b16 %v5707
        %v5913 = vunpack.c.l.b16 %v5708
        %v5914 = vunpack.c.h.b16 %v5708
        %v5915 = vunpack.c.l.b16 %v5709
        %v5916 = vunpack.c.h.b16 %v5709
        %v5917 = vunpack.c.l.b16 %v5710
        %v5918 = vunpack.c.h.b16 %v5710
        %v5919 = vunpack.c.l.b16 %v5711
        %v5920 = vunpack.c.h.b16 %v5711
        %v5921 = vunpack.c.l.b16 %v5712
        %v5922 = vunpack.c.h.b16 %v5712
        %v5923 = vunpack.c.l.b16 %v5713
        %v5924 = vunpack.c.h.b16 %v5713
        %v5925 = vunpack.c.l.b16 %v5714
        %v5926 = vunpack.c.h.b16 %v5714
        %v5927 = vunpack.c.l.b16 %v5715
        %v5928 = vunpack.c.h.b16 %v5715
        %v5929 = vunpack.c.l.b16 %v5716
        %v5930 = vunpack.c.h.b16 %v5716
        %v5931 = vpack.c.b16 %v5807, %v5803
        %v5932 = vpack.c.b16 %v5808, %v5804
        %v5933 = vpack.c.b16 %v5809, %v5805
        %v5934 = vpack.c.b16 %v5810, %v5806
        %v5935 = vpack.c.b16 %v5815, %v5811
        %v5936 = vpack.c.b16 %v5816, %v5812
        %v5937 = vpack.c.b16 %v5817, %v5813
        %v5938 = vpack.c.b16 %v5818, %v5814
        %v5939 = vpack.c.b16 %v5823, %v5819
        %v5940 = vpack.c.b16 %v5824, %v5820
        %v5941 = vpack.c.b16 %v5825, %v5821
        %v5942 = vpack.c.b16 %v5826, %v5822
        %v5943 = vpack.c.b16 %v5831, %v5827
        %v5944 = vpack.c.b16 %v5832, %v5828
        %v5945 = vpack.c.b16 %v5833, %v5829
        %v5946 = vpack.c.b16 %v5834, %v5830
        %v5947 = vpack.c.b16 %v5839, %v5835
        %v5948 = vpack.c.b16 %v5840, %v5836
        %v5949 = vpack.c.b16 %v5841, %v5837
        %v5950 = vpack.c.b16 %v5842, %v5838
        %v5951 = vpack.c.b16 %v5847, %v5843
        %v5952 = vpack.c.b16 %v5848, %v5844
        %v5953 = vpack.c.b16 %v5849, %v5845
        %v5954 = vpack.c.b16 %v5850, %v5846
        %v5955 = vpack.c.b16 %v5855, %v5851
        %v5956 = vpack.c.b16 %v5856, %v5852
        %v5957 = vpack.c.b16 %v5857, %v5853
        %v5958 = vpack.c.b16 %v5858, %v5854
        %v5959 = vpack.c.b16 %v5863, %v5859
        %v5960 = vpack.c.b16 %v5864, %v5860
        %v5961 = vpack.c.b16 %v5865, %v5861
        %v5962 = vpack.c.b16 %v5866, %v5862
        %v5963 = vpack.c.b16 %v5871, %v5867
        %v5964 = vpack.c.b16 %v5872, %v5868
        %v5965 = vpack.c.b16 %v5873, %v5869
        %v5966 = vpack.c.b16 %v5874, %v5870
        %v5967 = vpack.c.b16 %v5879, %v5875
        %v5968 = vpack.c.b16 %v5880, %v5876
        %v5969 = vpack.c.b16 %v5881, %v5877
        %v5970 = vpack.c.b16 %v5882, %v5878
        %v5971 = vpack.c.b16 %v5887, %v5883
        %v5972 = vpack.c.b16 %v5888, %v5884
        %v5973 = vpack.c.b16 %v5889, %v5885
        %v5974 = vpack.c.b16 %v5890, %v5886
        %v5975 = vpack.c.b16 %v5895, %v5891
        %v5976 = vpack.c.b16 %v5896, %v5892
        %v5977 = vpack.c.b16 %v5897, %v5893
        %v5978 = vpack.c.b16 %v5898, %v5894
        %v5979 = vpack.c.b16 %v5903, %v5899
        %v5980 = vpack.c.b16 %v5904, %v5900
        %v5981 = vpack.c.b16 %v5905, %v5901
        %v5982 = vpack.c.b16 %v5906, %v5902
        %v5983 = vpack.c.b16 %v5911, %v5907
        %v5984 = vpack.c.b16 %v5912, %v5908
        %v5985 = vpack.c.b16 %v5913, %v5909
        %v5986 = vpack.c.b16 %v5914, %v5910
        %v5987 = vpack.c.b16 %v5919, %v5915
        %v5988 = vpack.c.b16 %v5920, %v5916
        %v5989 = vpack.c.b16 %v5921, %v5917
        %v5990 = vpack.c.b16 %v5922, %v5918
        %v5991 = vpack.c.b16 %v5927, %v5923
        %v5992 = vpack.c.b16 %v5928, %v5924
        %v5993 = vpack.c.b16 %v5929, %v5925
        %v5994 = vpack.c.b16 %v5930, %v5926
        %6059 = vmatprep.subr.bf16.mxu0 %v5932
        %6060 = vmatpush1.bf16.msra.mxu0 %v5931
        %6061 = vmatprep.subr.bf16.mxu0 %v5936
        %6062 = vmatpush1.bf16.msra.mxu0 %v5935
        %6063 = vmatprep.subr.bf16.mxu0 %v5940
        %6064 = vmatpush1.bf16.msra.mxu0 %v5939
        %6065 = vmatprep.subr.bf16.mxu0 %v5944
        %6066 = vmatpush1.bf16.msra.mxu0 %v5943
        %6067 = vmatprep.subr.bf16.mxu0 %v5948
        %6068 = vmatpush1.bf16.msra.mxu0 %v5947
        %6069 = vmatprep.subr.bf16.mxu0 %v5952
        %6070 = vmatpush1.bf16.msra.mxu0 %v5951
        %6071 = vmatprep.subr.bf16.mxu0 %v5956
        %6072 = vmatpush1.bf16.msra.mxu0 %v5955
        %6073 = vmatprep.subr.bf16.mxu0 %v5960
        %6074 = vmatpush1.bf16.msra.mxu0 %v5959
        %6075 = vmatprep.subr.bf16.mxu0 %v5964
        %6076 = vmatpush1.bf16.msra.mxu0 %v5963
        %6077 = vmatprep.subr.bf16.mxu0 %v5968
        %6078 = vmatpush1.bf16.msra.mxu0 %v5967
        %6079 = vmatprep.subr.bf16.mxu0 %v5972
        %6080 = vmatpush1.bf16.msra.mxu0 %v5971
        %6081 = vmatprep.subr.bf16.mxu0 %v5976
        %6082 = vmatpush1.bf16.msra.mxu0 %v5975
        %6083 = vmatprep.subr.bf16.mxu0 %v5980
        %6084 = vmatpush1.bf16.msra.mxu0 %v5979
        %6085 = vmatprep.subr.bf16.mxu0 %v5984
        %6086 = vmatpush1.bf16.msra.mxu0 %v5983
        %6087 = vmatprep.subr.bf16.mxu0 %v5988
        %6088 = vmatpush1.bf16.msra.mxu0 %v5987
        %6089 = vmatprep.subr.bf16.mxu0 %v5992
        %6090 = vmatpush1.bf16.msra.mxu0 %v5991
        %6091 = vmatprep.mubr.bf16.mxu0 %v5652
        %6092 = vmatmul.mubr.bf16.gmra.mrb[0].mxu0 %v5651
        %v6093 = vpop.f32.mrb[0].mxu0
        %v6094 = vadd.f32 %v5722, %v6093
        %v6095 = vpop.f32.mrb[0].mxu0
        %v6096 = vadd.f32 %v5726, %v6095
        %v6097 = vpop.f32.mrb[0].mxu0
        %v6098 = vpop.f32.mrb[0].mxu0
        %6099 = vdwg.mxu0
        %6100 = vmatprep.subr.bf16.mxu0 %v5934
        %6101 = vmatpush1.bf16.msra.mxu0 %v5933
        %6102 = vmatprep.subr.bf16.mxu0 %v5938
        %6103 = vmatpush1.bf16.msra.mxu0 %v5937
        %6104 = vmatprep.subr.bf16.mxu0 %v5942
        %6105 = vmatpush1.bf16.msra.mxu0 %v5941
        %6106 = vmatprep.subr.bf16.mxu0 %v5946
        %6107 = vmatpush1.bf16.msra.mxu0 %v5945
        %6108 = vmatprep.subr.bf16.mxu0 %v5950
        %6109 = vmatpush1.bf16.msra.mxu0 %v5949
        %6110 = vmatprep.subr.bf16.mxu0 %v5954
        %6111 = vmatpush1.bf16.msra.mxu0 %v5953
        %6112 = vmatprep.subr.bf16.mxu0 %v5958
        %6113 = vmatpush1.bf16.msra.mxu0 %v5957
        %6114 = vmatprep.subr.bf16.mxu0 %v5962
        %6115 = vmatpush1.bf16.msra.mxu0 %v5961
        %6116 = vmatprep.subr.bf16.mxu0 %v5966
        %6117 = vmatpush1.bf16.msra.mxu0 %v5965
        %6118 = vmatprep.subr.bf16.mxu0 %v5970
        %6119 = vmatpush1.bf16.msra.mxu0 %v5969
        %6120 = vmatprep.subr.bf16.mxu0 %v5974
        %6121 = vmatpush1.bf16.msra.mxu0 %v5973
        %6122 = vmatprep.subr.bf16.mxu0 %v5978
        %6123 = vmatpush1.bf16.msra.mxu0 %v5977
        %6124 = vmatprep.subr.bf16.mxu0 %v5982
        %6125 = vmatpush1.bf16.msra.mxu0 %v5981
        %6126 = vmatprep.subr.bf16.mxu0 %v5986
        %6127 = vmatpush1.bf16.msra.mxu0 %v5985
        %6128 = vmatprep.subr.bf16.mxu0 %v5990
        %6129 = vmatpush1.bf16.msra.mxu0 %v5989
        %6130 = vmatprep.subr.bf16.mxu0 %v5994
        %6131 = vmatpush1.bf16.msra.mxu0 %v5993
        %6132 = vmatprep.mubr.bf16.mxu0 %v5652
        %6133 = vmatmul.mubr.bf16.gmra.mrb[0].mxu0 %v5651
        %v6134 = vpop.f32.mrb[0].mxu0
        %v6135 = vadd.f32 %v5730, %v6134
        %v6136 = vpop.f32.mrb[0].mxu0
        %v6137 = vadd.f32 %v5734, %v6136
        %v6138 = vpop.f32.mrb[0].mxu0
        %v6139 = vpop.f32.mrb[0].mxu0
        %6140 = vdwg.mxu0
        %v6141 = vadd.f32 %v5163, %v6094
        %v6142 = vadd.f32 %v5164, %v6096
        %v6143 = vadd.f32 %v5165, %v6135
        %v6144 = vadd.f32 %v5166, %v6137
        %v6145 = vld [vmem:[#allocation23] sm:$0xf]
        %v6146 = vld [vmem:[#allocation24] sm:$0xf]
        %v6147 = vadd.f32 %v6141, %v6142
        %v6148 = vadd.f32 %v6147, %v6143
        %v6149 = vadd.f32 %v6148, %v6144
        %6150 = vadd.xlane.f32.xlu0 %v6149
        %v6151 = vpop.xlane.xlu0 %6150
        %v6152 = vmul.f32 %v6151, %v5095
        %v6153 = vsub.f32 %v6141, %v6152
        %v6154 = vsub.f32 %v6142, %v6152
        %v6155 = vsub.f32 %v6143, %v6152
        %v6156 = vsub.f32 %v6144, %v6152
        %v6157 = vmul.f32 %v6153, %v6153
        %v6158 = vmul.f32 %v6154, %v6154
        %v6159 = vmul.f32 %v6155, %v6155
        %v6160 = vmul.f32 %v6156, %v6156
        %v6161 = vadd.f32 %v6157, %v6158
        %v6162 = vadd.f32 %v6161, %v6159
        %v6163 = vadd.f32 %v6162, %v6160
        %6164 = vadd.xlane.f32.xlu0 %v6163
        %v6165 = vpop.xlane.xlu0 %6164
        %v6166 = vmul.f32 %v6165, %v5095
        %v6167 = vadd.f32 %v6166, 1e-05
        %v6168 = vrsqrt.pop %v6167
        %v6169 = vmul.f32 %v6153, %v6168
        %v6170 = vmul.f32 %v6154, %v6168
        %v6171 = vmul.f32 %v6155, %v6168
        %v6172 = vmul.f32 %v6156, %v6168
        %v6174 = vlaneseq
        %v6175 = vshrl.u32 %v6174, 7
        %v6176 = vsub.s32 0, %v6175
        %v6177 = vrot.slane %v6145, %v6176
        %v6178 = vlaneseq
        %v6179 = vshrl.u32 %v6178, 7
        %v6180 = vsub.s32 1, %v6179
        %v6181 = vrot.slane %v6145, %v6180
        %v6182 = vlaneseq
        %v6183 = vshrl.u32 %v6182, 7
        %v6184 = vsub.s32 2, %v6183
        %v6185 = vrot.slane %v6145, %v6184
        %v6186 = vlaneseq
        %v6187 = vshrl.u32 %v6186, 7
        %v6188 = vsub.s32 3, %v6187
        %v6189 = vrot.slane %v6145, %v6188
        %v6194 = vmul.f32 %v6169, %v6177
        %v6195 = vmul.f32 %v6170, %v6181
        %v6196 = vmul.f32 %v6171, %v6185
        %v6197 = vmul.f32 %v6172, %v6189
        %v6199 = vlaneseq
        %v6200 = vshrl.u32 %v6199, 7
        %v6201 = vsub.s32 0, %v6200
        %v6202 = vrot.slane %v6146, %v6201
        %v6203 = vlaneseq
        %v6204 = vshrl.u32 %v6203, 7
        %v6205 = vsub.s32 1, %v6204
        %v6206 = vrot.slane %v6146, %v6205
        %v6207 = vlaneseq
        %v6208 = vshrl.u32 %v6207, 7
        %v6209 = vsub.s32 2, %v6208
        %v6210 = vrot.slane %v6146, %v6209
        %v6211 = vlaneseq
        %v6212 = vshrl.u32 %v6211, 7
        %v6213 = vsub.s32 3, %v6212
        %v6214 = vrot.slane %v6146, %v6213
        %v6219 = vadd.f32 %v6194, %v6202
        %v6220 = vadd.f32 %v6195, %v6206
        %v6221 = vadd.f32 %v6196, %v6210
        %v6222 = vadd.f32 %v6197, %v6214
        %v6223 = vpack.c.bf16 %v6219, %v6219
        %v6224 = vpack.c.bf16 %v6220, %v6220
        %v6225 = vpack.c.bf16 %v6221, %v6221
        %v6226 = vpack.c.bf16 %v6222, %v6222
        %v6227 = vld [vmem:[#allocation26] sm:$0xf]
        %v6228 = vld [vmem:[#allocation26 + $0x4] sm:$0xf]
        %v6229 = vld [vmem:[#allocation26 + $0x8] sm:$0xf]
        %v6230 = vld [vmem:[#allocation26 + $0xc] sm:$0xf]
        %v6231 = vld [vmem:[#allocation26 + $0x10] sm:$0xf]
        %v6232 = vld [vmem:[#allocation26 + $0x14] sm:$0xf]
        %v6233 = vld [vmem:[#allocation26 + $0x18] sm:$0xf]
        %v6234 = vld [vmem:[#allocation26 + $0x1c] sm:$0xf]
        %v6235 = vld [vmem:[#allocation26 + $0x20] sm:$0xf]
        %v6236 = vld [vmem:[#allocation26 + $0x24] sm:$0xf]
        %v6237 = vld [vmem:[#allocation26 + $0x28] sm:$0xf]
        %v6238 = vld [vmem:[#allocation26 + $0x2c] sm:$0xf]
        %v6239 = vld [vmem:[#allocation26 + $0x30] sm:$0xf]
        %v6240 = vld [vmem:[#allocation26 + $0x34] sm:$0xf]
        %v6241 = vld [vmem:[#allocation26 + $0x38] sm:$0xf]
        %v6242 = vld [vmem:[#allocation26 + $0x3c] sm:$0xf]
        %v6243 = vld [vmem:[#allocation26 + $0x40] sm:$0xf]
        %v6244 = vld [vmem:[#allocation26 + $0x44] sm:$0xf]
        %v6245 = vld [vmem:[#allocation26 + $0x48] sm:$0xf]
        %v6246 = vld [vmem:[#allocation26 + $0x4c] sm:$0xf]
        %v6247 = vld [vmem:[#allocation26 + $0x50] sm:$0xf]
        %v6248 = vld [vmem:[#allocation26 + $0x54] sm:$0xf]
        %v6249 = vld [vmem:[#allocation26 + $0x58] sm:$0xf]
        %v6250 = vld [vmem:[#allocation26 + $0x5c] sm:$0xf]
        %v6251 = vld [vmem:[#allocation26 + $0x60] sm:$0xf]
        %v6252 = vld [vmem:[#allocation26 + $0x64] sm:$0xf]
        %v6253 = vld [vmem:[#allocation26 + $0x68] sm:$0xf]
        %v6254 = vld [vmem:[#allocation26 + $0x6c] sm:$0xf]
        %v6255 = vld [vmem:[#allocation26 + $0x70] sm:$0xf]
        %v6256 = vld [vmem:[#allocation26 + $0x74] sm:$0xf]
        %v6257 = vld [vmem:[#allocation26 + $0x78] sm:$0xf]
        %v6258 = vld [vmem:[#allocation26 + $0x7c] sm:$0xf]
        %v6259 = vld [vmem:[#allocation26 + $0x80] sm:$0xf]
        %v6260 = vld [vmem:[#allocation26 + $0x84] sm:$0xf]
        %v6261 = vld [vmem:[#allocation26 + $0x88] sm:$0xf]
        %v6262 = vld [vmem:[#allocation26 + $0x8c] sm:$0xf]
        %v6263 = vld [vmem:[#allocation26 + $0x90] sm:$0xf]
        %v6264 = vld [vmem:[#allocation26 + $0x94] sm:$0xf]
        %v6265 = vld [vmem:[#allocation26 + $0x98] sm:$0xf]
        %v6266 = vld [vmem:[#allocation26 + $0x9c] sm:$0xf]
        %v6267 = vld [vmem:[#allocation26 + $0xa0] sm:$0xf]
        %v6268 = vld [vmem:[#allocation26 + $0xa4] sm:$0xf]
        %v6269 = vld [vmem:[#allocation26 + $0xa8] sm:$0xf]
        %v6270 = vld [vmem:[#allocation26 + $0xac] sm:$0xf]
        %v6271 = vld [vmem:[#allocation26 + $0xb0] sm:$0xf]
        %v6272 = vld [vmem:[#allocation26 + $0xb4] sm:$0xf]
        %v6273 = vld [vmem:[#allocation26 + $0xb8] sm:$0xf]
        %v6274 = vld [vmem:[#allocation26 + $0xbc] sm:$0xf]
        %v6275 = vld [vmem:[#allocation26 + $0xc0] sm:$0xf]
        %v6276 = vld [vmem:[#allocation26 + $0xc4] sm:$0xf]
        %v6277 = vld [vmem:[#allocation26 + $0xc8] sm:$0xf]
        %v6278 = vld [vmem:[#allocation26 + $0xcc] sm:$0xf]
        %v6279 = vld [vmem:[#allocation26 + $0xd0] sm:$0xf]
        %v6280 = vld [vmem:[#allocation26 + $0xd4] sm:$0xf]
        %v6281 = vld [vmem:[#allocation26 + $0xd8] sm:$0xf]
        %v6282 = vld [vmem:[#allocation26 + $0xdc] sm:$0xf]
        %v6283 = vld [vmem:[#allocation26 + $0xe0] sm:$0xf]
        %v6284 = vld [vmem:[#allocation26 + $0xe4] sm:$0xf]
        %v6285 = vld [vmem:[#allocation26 + $0xe8] sm:$0xf]
        %v6286 = vld [vmem:[#allocation26 + $0xec] sm:$0xf]
        %v6287 = vld [vmem:[#allocation26 + $0xf0] sm:$0xf]
        %v6288 = vld [vmem:[#allocation26 + $0xf4] sm:$0xf]
        %v6289 = vld [vmem:[#allocation26 + $0xf8] sm:$0xf]
        %v6290 = vld [vmem:[#allocation26 + $0xfc] sm:$0xf]
        %v6291 = vld [vmem:[#allocation27] sm:$0x1]
        %v6293 = vlaneseq
        %v6294 = vshrl.u32 %v6293, 7
        %v6295 = vsub.s32 0, %v6294
        %v6296 = vrot.slane %v6291, %v6295
        %v6362 = vunpack.c.l.b16 %v6227
        %v6363 = vunpack.c.l.b16 %v6228
        %v6364 = vunpack.c.l.b16 %v6229
        %v6365 = vunpack.c.l.b16 %v6230
        %v6366 = vunpack.c.l.b16 %v6231
        %v6367 = vunpack.c.l.b16 %v6232
        %v6368 = vunpack.c.l.b16 %v6233
        %v6369 = vunpack.c.l.b16 %v6234
        %v6370 = vunpack.c.l.b16 %v6235
        %v6371 = vunpack.c.l.b16 %v6236
        %v6372 = vunpack.c.l.b16 %v6237
        %v6373 = vunpack.c.l.b16 %v6238
        %v6374 = vunpack.c.l.b16 %v6239
        %v6375 = vunpack.c.l.b16 %v6240
        %v6376 = vunpack.c.l.b16 %v6241
        %v6377 = vunpack.c.l.b16 %v6242
        %v6378 = vunpack.c.l.b16 %v6243
        %v6379 = vunpack.c.l.b16 %v6244
        %v6380 = vunpack.c.l.b16 %v6245
        %v6381 = vunpack.c.l.b16 %v6246
        %v6382 = vunpack.c.l.b16 %v6247
        %v6383 = vunpack.c.l.b16 %v6248
        %v6384 = vunpack.c.l.b16 %v6249
        %v6385 = vunpack.c.l.b16 %v6250
        %v6386 = vunpack.c.l.b16 %v6251
        %v6387 = vunpack.c.l.b16 %v6252
        %v6388 = vunpack.c.l.b16 %v6253
        %v6389 = vunpack.c.l.b16 %v6254
        %v6390 = vunpack.c.l.b16 %v6255
        %v6391 = vunpack.c.l.b16 %v6256
        %v6392 = vunpack.c.l.b16 %v6257
        %v6393 = vunpack.c.l.b16 %v6258
        %v6394 = vunpack.c.l.b16 %v6259
        %v6395 = vunpack.c.l.b16 %v6260
        %v6396 = vunpack.c.l.b16 %v6261
        %v6397 = vunpack.c.l.b16 %v6262
        %v6398 = vunpack.c.l.b16 %v6263
        %v6399 = vunpack.c.l.b16 %v6264
        %v6400 = vunpack.c.l.b16 %v6265
        %v6401 = vunpack.c.l.b16 %v6266
        %v6402 = vunpack.c.l.b16 %v6267
        %v6403 = vunpack.c.l.b16 %v6268
        %v6404 = vunpack.c.l.b16 %v6269
        %v6405 = vunpack.c.l.b16 %v6270
        %v6406 = vunpack.c.l.b16 %v6271
        %v6407 = vunpack.c.l.b16 %v6272
        %v6408 = vunpack.c.l.b16 %v6273
        %v6409 = vunpack.c.l.b16 %v6274
        %v6410 = vunpack.c.l.b16 %v6275
        %v6411 = vunpack.c.l.b16 %v6276
        %v6412 = vunpack.c.l.b16 %v6277
        %v6413 = vunpack.c.l.b16 %v6278
        %v6414 = vunpack.c.l.b16 %v6279
        %v6415 = vunpack.c.l.b16 %v6280
        %v6416 = vunpack.c.l.b16 %v6281
        %v6417 = vunpack.c.l.b16 %v6282
        %v6418 = vunpack.c.l.b16 %v6283
        %v6419 = vunpack.c.l.b16 %v6284
        %v6420 = vunpack.c.l.b16 %v6285
        %v6421 = vunpack.c.l.b16 %v6286
        %v6422 = vunpack.c.l.b16 %v6287
        %v6423 = vunpack.c.l.b16 %v6288
        %v6424 = vunpack.c.l.b16 %v6289
        %v6425 = vunpack.c.l.b16 %v6290
        %v6426 = vpack.c.b16 %v6363, %v6362
        %v6427 = vpack.c.b16 %v6365, %v6364
        %v6428 = vpack.c.b16 %v6367, %v6366
        %v6429 = vpack.c.b16 %v6369, %v6368
        %v6430 = vpack.c.b16 %v6371, %v6370
        %v6431 = vpack.c.b16 %v6373, %v6372
        %v6432 = vpack.c.b16 %v6375, %v6374
        %v6433 = vpack.c.b16 %v6377, %v6376
        %v6434 = vpack.c.b16 %v6379, %v6378
        %v6435 = vpack.c.b16 %v6381, %v6380
        %v6436 = vpack.c.b16 %v6383, %v6382
        %v6437 = vpack.c.b16 %v6385, %v6384
        %v6438 = vpack.c.b16 %v6387, %v6386
        %v6439 = vpack.c.b16 %v6389, %v6388
        %v6440 = vpack.c.b16 %v6391, %v6390
        %v6441 = vpack.c.b16 %v6393, %v6392
        %v6442 = vpack.c.b16 %v6395, %v6394
        %v6443 = vpack.c.b16 %v6397, %v6396
        %v6444 = vpack.c.b16 %v6399, %v6398
        %v6445 = vpack.c.b16 %v6401, %v6400
        %v6446 = vpack.c.b16 %v6403, %v6402
        %v6447 = vpack.c.b16 %v6405, %v6404
        %v6448 = vpack.c.b16 %v6407, %v6406
        %v6449 = vpack.c.b16 %v6409, %v6408
        %v6450 = vpack.c.b16 %v6411, %v6410
        %v6451 = vpack.c.b16 %v6413, %v6412
        %v6452 = vpack.c.b16 %v6415, %v6414
        %v6453 = vpack.c.b16 %v6417, %v6416
        %v6454 = vpack.c.b16 %v6419, %v6418
        %v6455 = vpack.c.b16 %v6421, %v6420
        %v6456 = vpack.c.b16 %v6423, %v6422
        %v6457 = vpack.c.b16 %v6425, %v6424
        %6490 = vmatprep.subr.bf16.mxu0 0
        %6491 = vmatpush1.bf16.msra.mxu0 %v6426
        %6492 = vmatprep.subr.bf16.mxu0 0
        %6493 = vmatpush1.bf16.msra.mxu0 %v6427
        %6494 = vmatprep.subr.bf16.mxu0 0
        %6495 = vmatpush1.bf16.msra.mxu0 %v6428
        %6496 = vmatprep.subr.bf16.mxu0 0
        %6497 = vmatpush1.bf16.msra.mxu0 %v6429
        %6498 = vmatprep.subr.bf16.mxu0 0
        %6499 = vmatpush1.bf16.msra.mxu0 %v6430
        %6500 = vmatprep.subr.bf16.mxu0 0
        %6501 = vmatpush1.bf16.msra.mxu0 %v6431
        %6502 = vmatprep.subr.bf16.mxu0 0
        %6503 = vmatpush1.bf16.msra.mxu0 %v6432
        %6504 = vmatprep.subr.bf16.mxu0 0
        %6505 = vmatpush1.bf16.msra.mxu0 %v6433
        %6506 = vmatprep.subr.bf16.mxu0 0
        %6507 = vmatpush1.bf16.msra.mxu0 %v6434
        %6508 = vmatprep.subr.bf16.mxu0 0
        %6509 = vmatpush1.bf16.msra.mxu0 %v6435
        %6510 = vmatprep.subr.bf16.mxu0 0
        %6511 = vmatpush1.bf16.msra.mxu0 %v6436
        %6512 = vmatprep.subr.bf16.mxu0 0
        %6513 = vmatpush1.bf16.msra.mxu0 %v6437
        %6514 = vmatprep.subr.bf16.mxu0 0
        %6515 = vmatpush1.bf16.msra.mxu0 %v6438
        %6516 = vmatprep.subr.bf16.mxu0 0
        %6517 = vmatpush1.bf16.msra.mxu0 %v6439
        %6518 = vmatprep.subr.bf16.mxu0 0
        %6519 = vmatpush1.bf16.msra.mxu0 %v6440
        %6520 = vmatprep.subr.bf16.mxu0 0
        %6521 = vmatpush1.bf16.msra.mxu0 %v6441
        %6522 = vmatprep.mubr.bf16.mxu0 %v6224
        %6523 = vmatmul.mubr.bf16.gmra.mrb[0].mxu0 %v6223
        %v6524 = vpop.f32.mrb[0].mxu0
        %v6525 = vadd.f32 %v6296, %v6524
        %v6526 = vpop.f32.mrb[0].mxu0
        %v6527 = vpop.f32.mrb[0].mxu0
        %v6528 = vpop.f32.mrb[0].mxu0
        %6529 = vdwg.mxu0
        %6530 = vmatprep.subr.bf16.mxu0 0
        %6531 = vmatpush1.bf16.msra.mxu0 %v6442
        %6532 = vmatprep.subr.bf16.mxu0 0
        %6533 = vmatpush1.bf16.msra.mxu0 %v6443
        %6534 = vmatprep.subr.bf16.mxu0 0
        %6535 = vmatpush1.bf16.msra.mxu0 %v6444
        %6536 = vmatprep.subr.bf16.mxu0 0
        %6537 = vmatpush1.bf16.msra.mxu0 %v6445
        %6538 = vmatprep.subr.bf16.mxu0 0
        %6539 = vmatpush1.bf16.msra.mxu0 %v6446
        %6540 = vmatprep.subr.bf16.mxu0 0
        %6541 = vmatpush1.bf16.msra.mxu0 %v6447
        %6542 = vmatprep.subr.bf16.mxu0 0
        %6543 = vmatpush1.bf16.msra.mxu0 %v6448
        %6544 = vmatprep.subr.bf16.mxu0 0
        %6545 = vmatpush1.bf16.msra.mxu0 %v6449
        %6546 = vmatprep.subr.bf16.mxu0 0
        %6547 = vmatpush1.bf16.msra.mxu0 %v6450
        %6548 = vmatprep.subr.bf16.mxu0 0
        %6549 = vmatpush1.bf16.msra.mxu0 %v6451
        %6550 = vmatprep.subr.bf16.mxu0 0
        %6551 = vmatpush1.bf16.msra.mxu0 %v6452
        %6552 = vmatprep.subr.bf16.mxu0 0
        %6553 = vmatpush1.bf16.msra.mxu0 %v6453
        %6554 = vmatprep.subr.bf16.mxu0 0
        %6555 = vmatpush1.bf16.msra.mxu0 %v6454
        %6556 = vmatprep.subr.bf16.mxu0 0
        %6557 = vmatpush1.bf16.msra.mxu0 %v6455
        %6558 = vmatprep.subr.bf16.mxu0 0
        %6559 = vmatpush1.bf16.msra.mxu0 %v6456
        %6560 = vmatprep.subr.bf16.mxu0 0
        %6561 = vmatpush1.bf16.msra.mxu0 %v6457
        %6562 = vmatprep.mubr.bf16.mxu0 %v6226
        %6563 = vmatmul.mubr.bf16.gmra.mrb[0].mxu0 %v6225
        %v6564 = vpop.f32.mrb[0].mxu0
        %v6565 = vadd.f32 %v6525, %v6564
        %v6566 = vpop.f32.mrb[0].mxu0
        %v6567 = vpop.f32.mrb[0].mxu0
        %v6568 = vpop.f32.mrb[0].mxu0
        %6569 = vdwg.mxu0
        %v6570 = vmax.f32 %v6565, 0.0
        %v6571 = vld [vmem:[#allocation29] sm:$0x1]
        %v6572 = vld [vmem:[#allocation2] sm:$0x1]
        %6574 = vset.pattern.permute.xlu0 0
        %6575 = vperm.xlu0 %6574, %v6572
        %v6576 = vpop.permute.xlu0 %6575
        %v6578 = vlaneseq
        %v6579 = vshrl.u32 %v6578, 7
        %v6580 = vsub.s32 0, %v6579
        %v6581 = vrot.slane %v6576, %v6580
        %6582 = vmatprep.subr.mxu0 0.0
        %6583 = vmatpush1.xpose.msra.mxu0 %v6570
        %6584 = vmatprep.subr.mxu0 0.0
        %6585 = vmatpush1.xpose.msra.mxu0 0.0
        %6586 = vmatprep.subr.mxu0 0.0
        %6587 = vmatpush1.xpose.msra.mxu0 0.0
        %6588 = vmatprep.subr.mxu0 0.0
        %6589 = vmatpush1.xpose.msra.mxu0 0.0
        %6590 = vmatprep.subr.mxu0 0.0
        %6591 = vmatpush1.xpose.msra.mxu0 0.0
        %6592 = vmatprep.subr.mxu0 0.0
        %6593 = vmatpush1.xpose.msra.mxu0 0.0
        %6594 = vmatprep.subr.mxu0 0.0
        %6595 = vmatpush1.xpose.msra.mxu0 0.0
        %6596 = vmatprep.subr.mxu0 0.0
        %6597 = vmatpush1.xpose.msra.mxu0 0.0
        %6598 = vmatprep.subr.mxu0 0.0
        %6599 = vmatpush1.xpose.msra.mxu0 0.0
        %6600 = vmatprep.subr.mxu0 0.0
        %6601 = vmatpush1.xpose.msra.mxu0 0.0
        %6602 = vmatprep.subr.mxu0 0.0
        %6603 = vmatpush1.xpose.msra.mxu0 0.0
        %6604 = vmatprep.subr.mxu0 0.0
        %6605 = vmatpush1.xpose.msra.mxu0 0.0
        %6606 = vmatprep.subr.mxu0 0.0
        %6607 = vmatpush1.xpose.msra.mxu0 0.0
        %6608 = vmatprep.subr.mxu0 0.0
        %6609 = vmatpush1.xpose.msra.mxu0 0.0
        %6610 = vmatprep.subr.mxu0 0.0
        %6611 = vmatpush1.xpose.msra.mxu0 0.0
        %6612 = vmatprep.subr.mxu0 0.0
        %6613 = vmatpush1.xpose.msra.mxu0 0.0
        %6614 = vmatprep.subr.mxu0 0.0
        %6615 = vmatpush1.xpose.msra.mxu0 0.0
        %6616 = vmatprep.subr.mxu0 0.0
        %6617 = vmatpush1.xpose.msra.mxu0 0.0
        %6618 = vmatprep.subr.mxu0 0.0
        %6619 = vmatpush1.xpose.msra.mxu0 0.0
        %6620 = vmatprep.subr.mxu0 0.0
        %6621 = vmatpush1.xpose.msra.mxu0 0.0
        %6622 = vmatprep.subr.mxu0 0.0
        %6623 = vmatpush1.xpose.msra.mxu0 0.0
        %6624 = vmatprep.subr.mxu0 0.0
        %6625 = vmatpush1.xpose.msra.mxu0 0.0
        %6626 = vmatprep.subr.mxu0 0.0
        %6627 = vmatpush1.xpose.msra.mxu0 0.0
        %6628 = vmatprep.subr.mxu0 0.0
        %6629 = vmatpush1.xpose.msra.mxu0 0.0
        %6630 = vmatprep.subr.mxu0 0.0
        %6631 = vmatpush1.xpose.msra.mxu0 0.0
        %6632 = vmatprep.subr.mxu0 0.0
        %6633 = vmatpush1.xpose.msra.mxu0 0.0
        %6634 = vmatprep.subr.mxu0 0.0
        %6635 = vmatpush1.xpose.msra.mxu0 0.0
        %6636 = vmatprep.subr.mxu0 0.0
        %6637 = vmatpush1.xpose.msra.mxu0 0.0
        %6638 = vmatprep.subr.mxu0 0.0
        %6639 = vmatpush1.xpose.msra.mxu0 0.0
        %6640 = vmatprep.subr.mxu0 0.0
        %6641 = vmatpush1.xpose.msra.mxu0 0.0
        %6642 = vmatprep.subr.mxu0 0.0
        %6643 = vmatpush1.xpose.msra.mxu0 0.0
        %6644 = vmatprep.subr.mxu0 0.0
        %6645 = vmatpush1.xpose.msra.mxu0 0.0
        %6646 = vmatprep.mubr.f32.mxu0 0.0
        %6647 = vmatmul.mubr.f32.gmra.mrb[0].mxu0 %v6571
        %v6648 = vpop.f32.mrb[0].mxu0
        %v6649 = vadd.f32 %v6581, %v6648
        %v6650 = vpop.f32.mrb[0].mxu0
        %6651 = vdwg.mxu0
        %vm6652 = vcmask 57344
        %6653 = vst.msk [vmem:[%s823] sm:$0x1] %vm6652, %v6649
        %s6654 = sand.u32 %s443, 1
        %s6655 = scalar_lea.sflag [#allocation5], %s6654
        %s6656 = sand.u32 %s443, 1
        %s6657 = scalar_lea.vmem [#allocation30], %s6656
        // Predicated region
        $region161: #{tpu_custom_call.1} parent=91 // pred_check
          %p6658 = pneg %p453
        $region162: #{tpu_custom_call.1} parent=91 // pred_check_branch
          %6660 = sbr.rel (%p6658) target = $region164
        $region163: #{tpu_custom_call.1} parent=91 // pred_region
          %s6662 = ssub.s32 16, 16
          %6663 = vsyncadd %s6655, %s6662
          %s6664 = smul.addr %s47, 16
          %s6665 = scalar_lea.hbm %s18, %s6664
          %s6667 = sshll.u32 %s6657, 4
          %s6668 = int_to_ptr.vmem [resolvable:$true] %s6667
          %6670 = dma.vmem_to_hbm [thread:$0]  %s6668, 16, %s6665, %s6655
        $region164: #{tpu_custom_call.1} parent=91 // pred_fallthru
          _
      $region92: #{tpu_custom_call.1} parent=5 // pred_fallthru
        _
      %p6671 = scmp.le.s32.totalorder 2, %s42
      // Predicated region
      $region165: #{tpu_custom_call.1} parent=5 // pred_check
        %p6672 = pneg %p6671
      $region166: #{tpu_custom_call.1} parent=5 // pred_check_branch
        %6674 = sbr.rel (%p6672) target = $region168
      $region167: #{tpu_custom_call.1} parent=5 // pred_region
        %s6675 = ssub.s32 %s42, 2
        // Predicated region
        $region169: #{tpu_custom_call.1} parent=167 // pred_check
          %p6676 = pneg %p459
        $region170: #{tpu_custom_call.1} parent=167 // pred_check_branch
          %6678 = sbr.rel (%p6676) target = $region172
        $region171: #{tpu_custom_call.1} parent=167 // pred_region
          %s6679 = sand.u32 %s444, 1
          %s6680 = scalar_lea.sflag [#allocation5], %s6679
          %s6681 = sand.u32 %s444, 1
          %s6682 = scalar_lea.vmem [#allocation30], %s6681
          %6683 = dma.done %s6680, 16
        $region172: #{tpu_custom_call.1} parent=167 // pred_fallthru
          _
      $region168: #{tpu_custom_call.1} parent=5 // pred_fallthru
        _
    $region6: #{tpu_custom_call.1} parent=1 // loop_footer
      %s46 = sadd.s32 1, %s42
    $region7: #{tpu_custom_call.1} parent=1 // loop_footer_branch
      %41 = sbr.rel target = $region3
    $region8: #{tpu_custom_call.1} parent=1 // loop_exit
      _
    %6684 = vsyncpa [#allocation4], 1
    %s6685 = scalar_lea.sflag [#allocation4], 1
    %6686 = vsyncpa %s6685, 1
    %6687 = vsyncpa [#allocation7], 1
    %s6688 = scalar_lea.sflag [#allocation7], 1
    %6689 = vsyncpa %s6688, 1
    %6690 = vsyncpa [#allocation10], 1
    %6691 = vsyncpa [#allocation13], 1
    %6692 = vsyncpa [#allocation16], 1
    %6693 = vsyncpa [#allocation19], 1
    %6694 = vsyncpa [#allocation22], 1
    %6695 = vsyncpa [#allocation25], 1
    %6696 = vsyncpa [#allocation28], 1
    %6697 = vsyncpa [#allocation5], 1
    %s6698 = scalar_lea.sflag [#allocation5], 1
    %6699 = vsyncpa %s6698, 1

</llo_original>
